<compile_context>
chip_gen: v6e
topology: v6e:2x2x1
jax: 0.10.0
libtpu: 0.0.40
codegen_flags: <defaults>
</compile_context>

<pallas_src>
import functools

import numpy as np
import jax
import jax.numpy as jnp
from jax.experimental import pallas as pl
from jax.experimental.pallas import tpu as pltpu

# ----- network config (config.channels.conv1 / conv2) -----
C1, C2 = 4, 8
H_IN = W_IN = 28          # implied by fc1 = Linear(12*12*conv2, 128)
H1 = W1 = 26              # after conv1 3x3 VALID
H2 = W2 = 24              # after conv2 3x3 VALID
HP = WP = 12              # after 2x2 max pool
FC_IN = HP * WP * C2      # 1152
FC_HID = 128
FC_OUT = 10
FC_PAD = 128              # fc2 output padded to a full lane tile


def _round_up(a, m):
    return ((a + m - 1) // m) * m


# ------------------------- fused Pallas kernel -------------------------
def net_kernel(x_ref, w1_ref, b1_ref, w2_ref, b2_ref, g1_ref, fb1_ref,
               fw2_ref, fb2_ref, o_ref, a1_ref, a2_ref, *, tb):
    """One batch tile: rows are ordered (y, b); lanes are (x, channel)."""
    # ---- conv1 + bias + ReLU: 3 banded matmuls (one per kernel row dy),
    #      accumulated into the a1 VMEM scratch ref ----
    a1_ref[...] = jnp.dot(x_ref[0:H1 * tb, :], w1_ref[0],
                          preferred_element_type=jnp.float32)
    for dy in (1, 2):
        a1_ref[...] += jnp.dot(x_ref[dy * tb:(dy + H1) * tb, :], w1_ref[dy],
                               preferred_element_type=jnp.float32)
    a1_ref[...] = jnp.maximum(a1_ref[...] + b1_ref[...], 0.0)   # (26*tb, 26*C1)

    # ---- conv2 + bias + ReLU ----
    a2_ref[...] = jnp.dot(a1_ref[0:H2 * tb, :], w2_ref[0],
                          preferred_element_type=jnp.float32)
    for dy in (1, 2):
        a2_ref[...] += jnp.dot(a1_ref[dy * tb:(dy + H2) * tb, :], w2_ref[dy],
                               preferred_element_type=jnp.float32)
    a2_ref[...] = jnp.maximum(a2_ref[...] + b2_ref[...], 0.0)   # (24*tb, 24*C2)

    # ---- 2x2 max pool + flatten + fc1, fused per pooled row i.
    #      Height pool: adjacent (tb,192) row slabs; width pool: shifted-lane max
    #      (valid at even x groups, odd groups are zeroed inside g1). ----
    h = None
    for i in range(HP):
        top = a2_ref[(2 * i) * tb:(2 * i + 1) * tb, :]
        bot = a2_ref[(2 * i + 1) * tb:(2 * i + 2) * tb, :]
        m2 = jnp.maximum(top, bot)                               # (tb, 192)
        mw = jnp.maximum(m2[:, :(W2 - 1) * C2], m2[:, C2:])      # (tb, 184)
        part = jnp.dot(mw, g1_ref[i], preferred_element_type=jnp.float32)
        h = part if h is None else h + part
    h = jnp.maximum(h + fb1_ref[...], 0.0)                       # (tb, 128)

    # ---- fc2, padded to 128 output lanes -> lane-dense (unmasked) store ----
    o_ref[...] = jnp.dot(h, fw2_ref[...],
                         preferred_element_type=jnp.float32) + fb2_ref[...]


# ------------------------- host-side weight preparation -------------------------
def _conv_band(w_oihw, win):
    """(Cout,Cin,3,3) conv weight -> (3, Win*Cin, Wout*Cout) banded matrices."""
    cout, cin, kh, kw = w_oihw.shape
    wout = win - kw + 1
    m = np.zeros((kh, win * cin, wout * cout), np.float32)
    for dy in range(kh):
        for xo in range(wout):
            for dx in range(kw):
                xi = xo + dx
                # m[dy, xi*cin + ci, xo*cout + co] = w[co, ci, dy, dx]
                m[dy, xi * cin:(xi + 1) * cin, xo * cout:(xo + 1) * cout] = \
                    np.transpose(w_oihw[:, :, dy, dx])
    return m


def prepare_kernel_params(p):
    w1 = np.asarray(p['w1'], np.float32)          # (C1, 1, 3, 3)
    w2 = np.asarray(p['w2'], np.float32)          # (C2, C1, 3, 3)
    fw1 = np.asarray(p['fw1'], np.float32)        # (128, 1152), in idx = c*144+i*12+j

    # fc1 folded with the even-x-group pool selection and PyTorch NCHW flatten order.
    g1 = np.zeros((HP, (W2 - 1) * C2, FC_HID), np.float32)      # (12, 184, 128)
    for i in range(HP):
        for j in range(WP):
            xg = 2 * j
            for co in range(C2):
                g1[i, xg * C2 + co, :] = fw1[:, co * HP * WP + i * WP + j]

    # fc2 padded to 128 output lanes (columns 10..127 are zero).
    fw2p = np.zeros((FC_HID, FC_PAD), np.float32)
    fw2p[:, :FC_OUT] = np.asarray(p['fw2'], np.float32).T
    fb2p = np.zeros((1, FC_PAD), np.float32)
    fb2p[0, :FC_OUT] = np.asarray(p['fb2'], np.float32)

    return dict(
        w1b=jnp.asarray(_conv_band(w1, W_IN)),                       # (3, 28, 104)
        b1t=jnp.asarray(np.tile(np.asarray(p['b1']), W1)[None, :]),  # (1, 104)
        w2b=jnp.asarray(_conv_band(w2, W1)),                         # (3, 104, 192)
        b2t=jnp.asarray(np.tile(np.asarray(p['b2']), W2)[None, :]),  # (1, 192)
        g1=jnp.asarray(g1),                                          # (12, 184, 128)
        fb1r=jnp.asarray(np.asarray(p['fb1'])[None, :]),             # (1, 128)
        fw2p=jnp.asarray(fw2p),                                      # (128, 128)
        fb2p=jnp.asarray(fb2p),                                      # (1, 128)
    )


# ------------------------- cost estimate (scheduling hint) -------------------------
def _cost_estimate(n_pad):
    flops_per_img = 2 * (3 * H1 * W_IN * (W1 * C1)            # conv1 banded matmuls
                         + 3 * H2 * (W1 * C1) * (W2 * C2)     # conv2 banded matmuls
                         + HP * ((W2 - 1) * C2) * FC_HID      # folded fc1
                         + FC_HID * FC_PAD)                   # fc2 (padded)
    weight_bytes = 4 * (3 * W_IN * W1 * C1 + W1 * C1
                        + 3 * W1 * C1 * W2 * C2 + W2 * C2
                        + HP * (W2 - 1) * C2 * FC_HID + FC_HID
                        + FC_HID * FC_PAD + FC_PAD)
    io_bytes = n_pad * 4 * (H_IN * W_IN + FC_PAD)
    return pl.CostEstimate(flops=int(flops_per_img) * int(n_pad),
                           transcendentals=0,
                           bytes_accessed=int(io_bytes + weight_bytes))


# ------------------------- wrappers -------------------------
def net_forward_rows(x_rows, n_pad, kparams, tb):
    """x_rows: (n_pad//tb * 28 * tb, 28) float32, rows ordered (tile, y, b)."""
    assert tb % 8 == 0 and n_pad % tb == 0
    t = n_pad // tb
    kernel = functools.partial(net_kernel, tb=tb)
    return pl.pallas_call(
        kernel,
        out_shape=jax.ShapeDtypeStruct((n_pad, FC_PAD), jnp.float32),
        grid=(t,),
        in_specs=[
            pl.BlockSpec((H_IN * tb, W_IN), lambda i: (i, 0)),            # x tile
            pl.BlockSpec((3, W_IN, W1 * C1), lambda i: (0, 0, 0)),        # conv1 bands
            pl.BlockSpec((1, W1 * C1), lambda i: (0, 0)),                 # conv1 bias
            pl.BlockSpec((3, W1 * C1, W2 * C2), lambda i: (0, 0, 0)),     # conv2 bands
            pl.BlockSpec((1, W2 * C2), lambda i: (0, 0)),                 # conv2 bias
            pl.BlockSpec((HP, (W2 - 1) * C2, FC_HID), lambda i: (0, 0, 0)),  # fc1 folded
            pl.BlockSpec((1, FC_HID), lambda i: (0, 0)),                  # fc1 bias
            pl.BlockSpec((FC_HID, FC_PAD), lambda i: (0, 0)),             # fc2 weight^T (padded)
            pl.BlockSpec((1, FC_PAD), lambda i: (0, 0)),                  # fc2 bias (padded)
        ],
        out_specs=pl.BlockSpec((tb, FC_PAD), lambda i: (i, 0)),
        scratch_shapes=[
            pltpu.VMEM((H1 * tb, W1 * C1), jnp.float32),                  # a1
            pltpu.VMEM((H2 * tb, W2 * C2), jnp.float32),                  # a2
        ],
        compiler_params=pltpu.CompilerParams(
            dimension_semantics=("parallel",),
            vmem_limit_bytes=48 * 1024 * 1024),
        cost_estimate=_cost_estimate(n_pad),
    )(x_rows, kparams['w1b'], kparams['b1t'], kparams['w2b'], kparams['b2t'],
      kparams['g1'], kparams['fb1r'], kparams['fw2p'], kparams['fb2p'])


def net_forward(x, kparams, tb=128):
    """x: (N, 1, 28, 28) NCHW float32 -> logits (N, 10)."""
    n = x.shape[0]
    # Clamp the batch tile for small batches; keep it a multiple of 8.
    tb = max(8, min(_round_up(tb, 8), _round_up(n, 8)))
    n_pad = _round_up(n, tb)
    t = n_pad // tb

    xs = x.reshape(n, H_IN, W_IN).astype(jnp.float32)
    if n_pad != n:
        xs = jnp.pad(xs, ((0, n_pad - n), (0, 0), (0, 0)))
    # Rows ordered (tile, y, b): each grid step sees one contiguous (28*tb, 28) slab.
    x_rows = jnp.transpose(xs.reshape(t, tb, H_IN, W_IN),
                           (0, 2, 1, 3)).reshape(t * H_IN * tb, W_IN)

    out = net_forward_rows(x_rows, n_pad, kparams, tb)
    return out[:n, :FC_OUT]


# ------------------------- parameters (deterministic, synthetic) -------------------------
def init_params(key):
    ks = jax.random.split(key, 8)

    def uni(k, shape, fan_in):
        bound = 1.0 / np.sqrt(float(fan_in))
        return jax.random.uniform(k, shape, jnp.float32, -bound, bound)

    return dict(
        w1=uni(ks[0], (C1, 1, 3, 3), 9),          b1=uni(ks[1], (C1,), 9),
        w2=uni(ks[2], (C2, C1, 3, 3), C1 * 9),    b2=uni(ks[3], (C2,), C1 * 9),
        fw1=uni(ks[4], (FC_HID, FC_IN), FC_IN),   fb1=uni(ks[5], (FC_HID,), FC_IN),
        fw2=uni(ks[6], (FC_OUT, FC_HID), FC_HID), fb2=uni(ks[7], (FC_OUT,), FC_HID),
    )


# ------------------------- pure-JAX reference (semantics check) -------------------------
def net_forward_ref(x, p):
    a1 = jax.lax.conv_general_dilated(x, p['w1'], (1, 1), 'VALID',
                                      dimension_numbers=('NCHW', 'OIHW', 'NCHW'))
    a1 = jnp.maximum(a1 + p['b1'].reshape(1, C1, 1, 1), 0.0)
    a2 = jax.lax.conv_general_dilated(a1, p['w2'], (1, 1), 'VALID',
                                      dimension_numbers=('NCHW', 'OIHW', 'NCHW'))
    a2 = jnp.maximum(a2 + p['b2'].reshape(1, C2, 1, 1), 0.0)
    pooled = jax.lax.reduce_window(a2, -jnp.inf, jax.lax.max,
                                   (1, 1, 2, 2), (1, 1, 2, 2), 'VALID')
    flat = pooled.reshape(x.shape[0], FC_IN)       # PyTorch NCHW flatten order
    h = jnp.maximum(flat @ p['fw1'].T + p['fb1'], 0.0)
    return h @ p['fw2'].T + p['fb2']


if __name__ == "__main__":
    key = jax.random.PRNGKey(0)
    pkey, xkey, xkey2 = jax.random.split(key, 3)
    params = init_params(pkey)
    kparams = prepare_kernel_params(params)

    # Small smoke test (batch=2): tb clamps to 8, single grid step.
    x = jax.random.normal(xkey, (2, 1, 28, 28), jnp.float32)
    out = jax.block_until_ready(net_forward(x, kparams))
    ref = net_forward_ref(x, params)
    assert out.shape == (2, 10), out.shape
    # Tolerance accounts for TPU default (bf16-pass) matmul precision combined with a
    # different summation structure (banded conv matmuls / split fc1) vs the XLA ref.
    assert jnp.allclose(out, ref, atol=2e-2, rtol=2e-2), \
        f"max abs diff = {jnp.max(jnp.abs(out - ref))}"

    # Multi-tile check (batch not a multiple of tb): exercises grid > 1 and padding.
    x2 = jax.random.normal(xkey2, (44, 1, 28, 28), jnp.float32)
    out2 = jax.block_until_ready(net_forward(x2, kparams, tb=16))
    ref2 = net_forward_ref(x2, params)
    assert out2.shape == (44, 10), out2.shape
    assert jnp.allclose(out2, ref2, atol=2e-2, rtol=2e-2), \
        f"max abs diff = {jnp.max(jnp.abs(out2 - ref2))}"

    print("KERNEL_OK")
</pallas_src>

<mosaic_0001>
module attributes {stable_mosaic.version = 11 : i64} {
  func.func @net_kernel(%arg0: i32, %arg1: memref<224x28xf32, #tpu.memory_space<vmem>>, %arg2: memref<3x28x104xf32, #tpu.memory_space<vmem>>, %arg3: memref<1x104xf32, #tpu.memory_space<vmem>>, %arg4: memref<3x104x192xf32, #tpu.memory_space<vmem>>, %arg5: memref<1x192xf32, #tpu.memory_space<vmem>>, %arg6: memref<12x184x128xf32, #tpu.memory_space<vmem>>, %arg7: memref<1x128xf32, #tpu.memory_space<vmem>>, %arg8: memref<128x128xf32, #tpu.memory_space<vmem>>, %arg9: memref<1x128xf32, #tpu.memory_space<vmem>>, %arg10: memref<8x128xf32, #tpu.memory_space<vmem>>, %arg11: memref<208x104xf32, #tpu.memory_space<vmem>>, %arg12: memref<192x192xf32, #tpu.memory_space<vmem>>) attributes {dimension_semantics = [#tpu.dimension_semantics<parallel>], iteration_bounds = array<i64: 1>, scalar_prefetch = 0 : i64, scratch_operands = 2 : i64, tpu.core_type = #tpu.core_type<tc>, window_params = [{transform_indices = @transform_0, window_bounds = array<i64: 224, 28>}, {pipeline_mode = #tpu.pipeline_mode<synchronous>, transform_indices = @transform_1, window_bounds = array<i64: 3, 28, 104>}, {pipeline_mode = #tpu.pipeline_mode<synchronous>, transform_indices = @transform_2, window_bounds = array<i64: 1, 104>}, {pipeline_mode = #tpu.pipeline_mode<synchronous>, transform_indices = @transform_3, window_bounds = array<i64: 3, 104, 192>}, {pipeline_mode = #tpu.pipeline_mode<synchronous>, transform_indices = @transform_4, window_bounds = array<i64: 1, 192>}, {pipeline_mode = #tpu.pipeline_mode<synchronous>, transform_indices = @transform_5, window_bounds = array<i64: 12, 184, 128>}, {pipeline_mode = #tpu.pipeline_mode<synchronous>, transform_indices = @transform_6, window_bounds = array<i64: 1, 128>}, {pipeline_mode = #tpu.pipeline_mode<synchronous>, transform_indices = @transform_7, window_bounds = array<i64: 128, 128>}, {pipeline_mode = #tpu.pipeline_mode<synchronous>, transform_indices = @transform_8, window_bounds = array<i64: 1, 128>}, {transform_indices = @transform_9, window_bounds = array<i64: 8, 128>}]} {
    %c0 = arith.constant 0 : index
    %c0_0 = arith.constant 0 : index
    %0 = vector.load %arg1[%c0, %c0_0] : memref<224x28xf32, #tpu.memory_space<vmem>>, vector<208x28xf32>
    %c0_1 = arith.constant 0 : index
    %c0_2 = arith.constant 0 : index
    %c0_3 = arith.constant 0 : index
    %1 = vector.load %arg2[%c0_1, %c0_2, %c0_3] : memref<3x28x104xf32, #tpu.memory_space<vmem>>, vector<1x28x104xf32>
    %2 = vector.shape_cast %1 : vector<1x28x104xf32> to vector<28x104xf32>
    %cst = arith.constant dense<0.000000e+00> : vector<208x104xf32>
    %3 = tpu.matmul %0, %2, %cst {dimension_numbers = #tpu.dot_dimension_numbers<[1], [0], [0], [1], [0, 0, 1, 1], [], []>} : vector<208x28xf32>, vector<28x104xf32>, vector<208x104xf32> -> vector<208x104xf32>
    %c0_4 = arith.constant 0 : index
    %c0_5 = arith.constant 0 : index
    %4 = vector.load %arg11[%c0_4, %c0_5] : memref<208x104xf32, #tpu.memory_space<vmem>>, vector<208x104xf32>
    tpu.vector_store %arg11[%c0_4, %c0_5], %3 {strides = array<i32>} : memref<208x104xf32, #tpu.memory_space<vmem>>, vector<208x104xf32>,
    %c0_6 = arith.constant 0 : index
    %c0_7 = arith.constant 0 : index
    %5 = vector.load %arg11[%c0_6, %c0_7] : memref<208x104xf32, #tpu.memory_space<vmem>>, vector<208x104xf32>
    %c8 = arith.constant 8 : index
    %c0_8 = arith.constant 0 : index
    %6 = vector.load %arg1[%c8, %c0_8] : memref<224x28xf32, #tpu.memory_space<vmem>>, vector<208x28xf32>
    %c1 = arith.constant 1 : index
    %c0_9 = arith.constant 0 : index
    %c0_10 = arith.constant 0 : index
    %7 = vector.load %arg2[%c1, %c0_9, %c0_10] : memref<3x28x104xf32, #tpu.memory_space<vmem>>, vector<1x28x104xf32>
    %8 = vector.shape_cast %7 : vector<1x28x104xf32> to vector<28x104xf32>
    %cst_11 = arith.constant dense<0.000000e+00> : vector<208x104xf32>
    %9 = tpu.matmul %6, %8, %cst_11 {dimension_numbers = #tpu.dot_dimension_numbers<[1], [0], [0], [1], [0, 0, 1, 1], [], []>} : vector<208x28xf32>, vector<28x104xf32>, vector<208x104xf32> -> vector<208x104xf32>
    %10 = arith.addf %5, %9 : vector<208x104xf32>
    %c0_12 = arith.constant 0 : index
    %c0_13 = arith.constant 0 : index
    %11 = vector.load %arg11[%c0_12, %c0_13] : memref<208x104xf32, #tpu.memory_space<vmem>>, vector<208x104xf32>
    tpu.vector_store %arg11[%c0_12, %c0_13], %10 {strides = array<i32>} : memref<208x104xf32, #tpu.memory_space<vmem>>, vector<208x104xf32>,
    %c0_14 = arith.constant 0 : index
    %c0_15 = arith.constant 0 : index
    %12 = vector.load %arg11[%c0_14, %c0_15] : memref<208x104xf32, #tpu.memory_space<vmem>>, vector<208x104xf32>
    %c16 = arith.constant 16 : index
    %c0_16 = arith.constant 0 : index
    %13 = vector.load %arg1[%c16, %c0_16] : memref<224x28xf32, #tpu.memory_space<vmem>>, vector<208x28xf32>
    %c2 = arith.constant 2 : index
    %c0_17 = arith.constant 0 : index
    %c0_18 = arith.constant 0 : index
    %14 = vector.load %arg2[%c2, %c0_17, %c0_18] : memref<3x28x104xf32, #tpu.memory_space<vmem>>, vector<1x28x104xf32>
    %15 = vector.shape_cast %14 : vector<1x28x104xf32> to vector<28x104xf32>
    %cst_19 = arith.constant dense<0.000000e+00> : vector<208x104xf32>
    %16 = tpu.matmul %13, %15, %cst_19 {dimension_numbers = #tpu.dot_dimension_numbers<[1], [0], [0], [1], [0, 0, 1, 1], [], []>} : vector<208x28xf32>, vector<28x104xf32>, vector<208x104xf32> -> vector<208x104xf32>
    %17 = arith.addf %12, %16 : vector<208x104xf32>
    %c0_20 = arith.constant 0 : index
    %c0_21 = arith.constant 0 : index
    %18 = vector.load %arg11[%c0_20, %c0_21] : memref<208x104xf32, #tpu.memory_space<vmem>>, vector<208x104xf32>
    tpu.vector_store %arg11[%c0_20, %c0_21], %17 {strides = array<i32>} : memref<208x104xf32, #tpu.memory_space<vmem>>, vector<208x104xf32>,
    %c0_22 = arith.constant 0 : index
    %c0_23 = arith.constant 0 : index
    %19 = vector.load %arg11[%c0_22, %c0_23] : memref<208x104xf32, #tpu.memory_space<vmem>>, vector<208x104xf32>
    %c0_24 = arith.constant 0 : index
    %c0_25 = arith.constant 0 : index
    %20 = vector.load %arg3[%c0_24, %c0_25] : memref<1x104xf32, #tpu.memory_space<vmem>>, vector<1x104xf32>
    %21 = vector.broadcast %20 : vector<1x104xf32> to vector<208x104xf32>
    %22 = arith.addf %19, %21 : vector<208x104xf32>
    %cst_26 = arith.constant 0.000000e+00 : f32
    %23 = vector.broadcast %cst_26 : f32 to vector<208x104xf32>
    %24 = arith.maximumf %22, %23 : vector<208x104xf32>
    %c0_27 = arith.constant 0 : index
    %c0_28 = arith.constant 0 : index
    %25 = vector.load %arg11[%c0_27, %c0_28] : memref<208x104xf32, #tpu.memory_space<vmem>>, vector<208x104xf32>
    tpu.vector_store %arg11[%c0_27, %c0_28], %24 {strides = array<i32>} : memref<208x104xf32, #tpu.memory_space<vmem>>, vector<208x104xf32>,
    %c0_29 = arith.constant 0 : index
    %c0_30 = arith.constant 0 : index
    %26 = vector.load %arg11[%c0_29, %c0_30] : memref<208x104xf32, #tpu.memory_space<vmem>>, vector<192x104xf32>
    %c0_31 = arith.constant 0 : index
    %c0_32 = arith.constant 0 : index
    %c0_33 = arith.constant 0 : index
    %27 = vector.load %arg4[%c0_31, %c0_32, %c0_33] : memref<3x104x192xf32, #tpu.memory_space<vmem>>, vector<1x104x192xf32>
    %28 = vector.shape_cast %27 : vector<1x104x192xf32> to vector<104x192xf32>
    %cst_34 = arith.constant dense<0.000000e+00> : vector<192x192xf32>
    %29 = tpu.matmul %26, %28, %cst_34 {dimension_numbers = #tpu.dot_dimension_numbers<[1], [0], [0], [1], [0, 0, 1, 1], [], []>} : vector<192x104xf32>, vector<104x192xf32>, vector<192x192xf32> -> vector<192x192xf32>
    %c0_35 = arith.constant 0 : index
    %c0_36 = arith.constant 0 : index
    %30 = vector.load %arg12[%c0_35, %c0_36] : memref<192x192xf32, #tpu.memory_space<vmem>>, vector<192x192xf32>
    tpu.vector_store %arg12[%c0_35, %c0_36], %29 {strides = array<i32>} : memref<192x192xf32, #tpu.memory_space<vmem>>, vector<192x192xf32>,
    %c0_37 = arith.constant 0 : index
    %c0_38 = arith.constant 0 : index
    %31 = vector.load %arg12[%c0_37, %c0_38] : memref<192x192xf32, #tpu.memory_space<vmem>>, vector<192x192xf32>
    %c8_39 = arith.constant 8 : index
    %c0_40 = arith.constant 0 : index
    %32 = vector.load %arg11[%c8_39, %c0_40] : memref<208x104xf32, #tpu.memory_space<vmem>>, vector<192x104xf32>
    %c1_41 = arith.constant 1 : index
    %c0_42 = arith.constant 0 : index
    %c0_43 = arith.constant 0 : index
    %33 = vector.load %arg4[%c1_41, %c0_42, %c0_43] : memref<3x104x192xf32, #tpu.memory_space<vmem>>, vector<1x104x192xf32>
    %34 = vector.shape_cast %33 : vector<1x104x192xf32> to vector<104x192xf32>
    %cst_44 = arith.constant dense<0.000000e+00> : vector<192x192xf32>
    %35 = tpu.matmul %32, %34, %cst_44 {dimension_numbers = #tpu.dot_dimension_numbers<[1], [0], [0], [1], [0, 0, 1, 1], [], []>} : vector<192x104xf32>, vector<104x192xf32>, vector<192x192xf32> -> vector<192x192xf32>
    %36 = arith.addf %31, %35 : vector<192x192xf32>
    %c0_45 = arith.constant 0 : index
    %c0_46 = arith.constant 0 : index
    %37 = vector.load %arg12[%c0_45, %c0_46] : memref<192x192xf32, #tpu.memory_space<vmem>>, vector<192x192xf32>
    tpu.vector_store %arg12[%c0_45, %c0_46], %36 {strides = array<i32>} : memref<192x192xf32, #tpu.memory_space<vmem>>, vector<192x192xf32>,
    %c0_47 = arith.constant 0 : index
    %c0_48 = arith.constant 0 : index
    %38 = vector.load %arg12[%c0_47, %c0_48] : memref<192x192xf32, #tpu.memory_space<vmem>>, vector<192x192xf32>
    %c16_49 = arith.constant 16 : index
    %c0_50 = arith.constant 0 : index
    %39 = vector.load %arg11[%c16_49, %c0_50] : memref<208x104xf32, #tpu.memory_space<vmem>>, vector<192x104xf32>
    %c2_51 = arith.constant 2 : index
    %c0_52 = arith.constant 0 : index
    %c0_53 = arith.constant 0 : index
    %40 = vector.load %arg4[%c2_51, %c0_52, %c0_53] : memref<3x104x192xf32, #tpu.memory_space<vmem>>, vector<1x104x192xf32>
    %41 = vector.shape_cast %40 : vector<1x104x192xf32> to vector<104x192xf32>
    %cst_54 = arith.constant dense<0.000000e+00> : vector<192x192xf32>
    %42 = tpu.matmul %39, %41, %cst_54 {dimension_numbers = #tpu.dot_dimension_numbers<[1], [0], [0], [1], [0, 0, 1, 1], [], []>} : vector<192x104xf32>, vector<104x192xf32>, vector<192x192xf32> -> vector<192x192xf32>
    %43 = arith.addf %38, %42 : vector<192x192xf32>
    %c0_55 = arith.constant 0 : index
    %c0_56 = arith.constant 0 : index
    %44 = vector.load %arg12[%c0_55, %c0_56] : memref<192x192xf32, #tpu.memory_space<vmem>>, vector<192x192xf32>
    tpu.vector_store %arg12[%c0_55, %c0_56], %43 {strides = array<i32>} : memref<192x192xf32, #tpu.memory_space<vmem>>, vector<192x192xf32>,
    %c0_57 = arith.constant 0 : index
    %c0_58 = arith.constant 0 : index
    %45 = vector.load %arg12[%c0_57, %c0_58] : memref<192x192xf32, #tpu.memory_space<vmem>>, vector<192x192xf32>
    %c0_59 = arith.constant 0 : index
    %c0_60 = arith.constant 0 : index
    %46 = vector.load %arg5[%c0_59, %c0_60] : memref<1x192xf32, #tpu.memory_space<vmem>>, vector<1x192xf32>
    %47 = vector.broadcast %46 : vector<1x192xf32> to vector<192x192xf32>
    %48 = arith.addf %45, %47 : vector<192x192xf32>
    %cst_61 = arith.constant 0.000000e+00 : f32
    %49 = vector.broadcast %cst_61 : f32 to vector<192x192xf32>
    %50 = arith.maximumf %48, %49 : vector<192x192xf32>
    %c0_62 = arith.constant 0 : index
    %c0_63 = arith.constant 0 : index
    %51 = vector.load %arg12[%c0_62, %c0_63] : memref<192x192xf32, #tpu.memory_space<vmem>>, vector<192x192xf32>
    tpu.vector_store %arg12[%c0_62, %c0_63], %50 {strides = array<i32>} : memref<192x192xf32, #tpu.memory_space<vmem>>, vector<192x192xf32>,
    %c0_64 = arith.constant 0 : index
    %c0_65 = arith.constant 0 : index
    %52 = vector.load %arg12[%c0_64, %c0_65] : memref<192x192xf32, #tpu.memory_space<vmem>>, vector<8x192xf32>
    %c8_66 = arith.constant 8 : index
    %c0_67 = arith.constant 0 : index
    %53 = vector.load %arg12[%c8_66, %c0_67] : memref<192x192xf32, #tpu.memory_space<vmem>>, vector<8x192xf32>
    %54 = arith.maximumf %52, %53 : vector<8x192xf32>
    %55 = vector.extract_strided_slice %54 {offsets = [0, 0], sizes = [8, 184], strides = [1, 1]} : vector<8x192xf32> to vector<8x184xf32>
    %56 = vector.extract_strided_slice %54 {offsets = [0, 8], sizes = [8, 184], strides = [1, 1]} : vector<8x192xf32> to vector<8x184xf32>
    %57 = arith.maximumf %55, %56 : vector<8x184xf32>
    %c0_68 = arith.constant 0 : index
    %c0_69 = arith.constant 0 : index
    %c0_70 = arith.constant 0 : index
    %58 = vector.load %arg6[%c0_68, %c0_69, %c0_70] : memref<12x184x128xf32, #tpu.memory_space<vmem>>, vector<1x184x128xf32>
    %59 = vector.shape_cast %58 : vector<1x184x128xf32> to vector<184x128xf32>
    %cst_71 = arith.constant dense<0.000000e+00> : vector<8x128xf32>
    %60 = tpu.matmul %57, %59, %cst_71 {dimension_numbers = #tpu.dot_dimension_numbers<[1], [0], [0], [1], [0, 0, 1, 1], [], []>} : vector<8x184xf32>, vector<184x128xf32>, vector<8x128xf32> -> vector<8x128xf32>
    %c16_72 = arith.constant 16 : index
    %c0_73 = arith.constant 0 : index
    %61 = vector.load %arg12[%c16_72, %c0_73] : memref<192x192xf32, #tpu.memory_space<vmem>>, vector<8x192xf32>
    %c24 = arith.constant 24 : index
    %c0_74 = arith.constant 0 : index
    %62 = vector.load %arg12[%c24, %c0_74] : memref<192x192xf32, #tpu.memory_space<vmem>>, vector<8x192xf32>
    %63 = arith.maximumf %61, %62 : vector<8x192xf32>
    %64 = vector.extract_strided_slice %63 {offsets = [0, 0], sizes = [8, 184], strides = [1, 1]} : vector<8x192xf32> to vector<8x184xf32>
    %65 = vector.extract_strided_slice %63 {offsets = [0, 8], sizes = [8, 184], strides = [1, 1]} : vector<8x192xf32> to vector<8x184xf32>
    %66 = arith.maximumf %64, %65 : vector<8x184xf32>
    %c1_75 = arith.constant 1 : index
    %c0_76 = arith.constant 0 : index
    %c0_77 = arith.constant 0 : index
    %67 = vector.load %arg6[%c1_75, %c0_76, %c0_77] : memref<12x184x128xf32, #tpu.memory_space<vmem>>, vector<1x184x128xf32>
    %68 = vector.shape_cast %67 : vector<1x184x128xf32> to vector<184x128xf32>
    %cst_78 = arith.constant dense<0.000000e+00> : vector<8x128xf32>
    %69 = tpu.matmul %66, %68, %cst_78 {dimension_numbers = #tpu.dot_dimension_numbers<[1], [0], [0], [1], [0, 0, 1, 1], [], []>} : vector<8x184xf32>, vector<184x128xf32>, vector<8x128xf32> -> vector<8x128xf32>
    %70 = arith.addf %60, %69 : vector<8x128xf32>
    %c32 = arith.constant 32 : index
    %c0_79 = arith.constant 0 : index
    %71 = vector.load %arg12[%c32, %c0_79] : memref<192x192xf32, #tpu.memory_space<vmem>>, vector<8x192xf32>
    %c40 = arith.constant 40 : index
    %c0_80 = arith.constant 0 : index
    %72 = vector.load %arg12[%c40, %c0_80] : memref<192x192xf32, #tpu.memory_space<vmem>>, vector<8x192xf32>
    %73 = arith.maximumf %71, %72 : vector<8x192xf32>
    %74 = vector.extract_strided_slice %73 {offsets = [0, 0], sizes = [8, 184], strides = [1, 1]} : vector<8x192xf32> to vector<8x184xf32>
    %75 = vector.extract_strided_slice %73 {offsets = [0, 8], sizes = [8, 184], strides = [1, 1]} : vector<8x192xf32> to vector<8x184xf32>
    %76 = arith.maximumf %74, %75 : vector<8x184xf32>
    %c2_81 = arith.constant 2 : index
    %c0_82 = arith.constant 0 : index
    %c0_83 = arith.constant 0 : index
    %77 = vector.load %arg6[%c2_81, %c0_82, %c0_83] : memref<12x184x128xf32, #tpu.memory_space<vmem>>, vector<1x184x128xf32>
    %78 = vector.shape_cast %77 : vector<1x184x128xf32> to vector<184x128xf32>
    %cst_84 = arith.constant dense<0.000000e+00> : vector<8x128xf32>
    %79 = tpu.matmul %76, %78, %cst_84 {dimension_numbers = #tpu.dot_dimension_numbers<[1], [0], [0], [1], [0, 0, 1, 1], [], []>} : vector<8x184xf32>, vector<184x128xf32>, vector<8x128xf32> -> vector<8x128xf32>
    %80 = arith.addf %70, %79 : vector<8x128xf32>
    %c48 = arith.constant 48 : index
    %c0_85 = arith.constant 0 : index
    %81 = vector.load %arg12[%c48, %c0_85] : memref<192x192xf32, #tpu.memory_space<vmem>>, vector<8x192xf32>
    %c56 = arith.constant 56 : index
    %c0_86 = arith.constant 0 : index
    %82 = vector.load %arg12[%c56, %c0_86] : memref<192x192xf32, #tpu.memory_space<vmem>>, vector<8x192xf32>
    %83 = arith.maximumf %81, %82 : vector<8x192xf32>
    %84 = vector.extract_strided_slice %83 {offsets = [0, 0], sizes = [8, 184], strides = [1, 1]} : vector<8x192xf32> to vector<8x184xf32>
    %85 = vector.extract_strided_slice %83 {offsets = [0, 8], sizes = [8, 184], strides = [1, 1]} : vector<8x192xf32> to vector<8x184xf32>
    %86 = arith.maximumf %84, %85 : vector<8x184xf32>
    %c3 = arith.constant 3 : index
    %c0_87 = arith.constant 0 : index
    %c0_88 = arith.constant 0 : index
    %87 = vector.load %arg6[%c3, %c0_87, %c0_88] : memref<12x184x128xf32, #tpu.memory_space<vmem>>, vector<1x184x128xf32>
    %88 = vector.shape_cast %87 : vector<1x184x128xf32> to vector<184x128xf32>
    %cst_89 = arith.constant dense<0.000000e+00> : vector<8x128xf32>
    %89 = tpu.matmul %86, %88, %cst_89 {dimension_numbers = #tpu.dot_dimension_numbers<[1], [0], [0], [1], [0, 0, 1, 1], [], []>} : vector<8x184xf32>, vector<184x128xf32>, vector<8x128xf32> -> vector<8x128xf32>
    %90 = arith.addf %80, %89 : vector<8x128xf32>
    %c64 = arith.constant 64 : index
    %c0_90 = arith.constant 0 : index
    %91 = vector.load %arg12[%c64, %c0_90] : memref<192x192xf32, #tpu.memory_space<vmem>>, vector<8x192xf32>
    %c72 = arith.constant 72 : index
    %c0_91 = arith.constant 0 : index
    %92 = vector.load %arg12[%c72, %c0_91] : memref<192x192xf32, #tpu.memory_space<vmem>>, vector<8x192xf32>
    %93 = arith.maximumf %91, %92 : vector<8x192xf32>
    %94 = vector.extract_strided_slice %93 {offsets = [0, 0], sizes = [8, 184], strides = [1, 1]} : vector<8x192xf32> to vector<8x184xf32>
    %95 = vector.extract_strided_slice %93 {offsets = [0, 8], sizes = [8, 184], strides = [1, 1]} : vector<8x192xf32> to vector<8x184xf32>
    %96 = arith.maximumf %94, %95 : vector<8x184xf32>
    %c4 = arith.constant 4 : index
    %c0_92 = arith.constant 0 : index
    %c0_93 = arith.constant 0 : index
    %97 = vector.load %arg6[%c4, %c0_92, %c0_93] : memref<12x184x128xf32, #tpu.memory_space<vmem>>, vector<1x184x128xf32>
    %98 = vector.shape_cast %97 : vector<1x184x128xf32> to vector<184x128xf32>
    %cst_94 = arith.constant dense<0.000000e+00> : vector<8x128xf32>
    %99 = tpu.matmul %96, %98, %cst_94 {dimension_numbers = #tpu.dot_dimension_numbers<[1], [0], [0], [1], [0, 0, 1, 1], [], []>} : vector<8x184xf32>, vector<184x128xf32>, vector<8x128xf32> -> vector<8x128xf32>
    %100 = arith.addf %90, %99 : vector<8x128xf32>
    %c80 = arith.constant 80 : index
    %c0_95 = arith.constant 0 : index
    %101 = vector.load %arg12[%c80, %c0_95] : memref<192x192xf32, #tpu.memory_space<vmem>>, vector<8x192xf32>
    %c88 = arith.constant 88 : index
    %c0_96 = arith.constant 0 : index
    %102 = vector.load %arg12[%c88, %c0_96] : memref<192x192xf32, #tpu.memory_space<vmem>>, vector<8x192xf32>
    %103 = arith.maximumf %101, %102 : vector<8x192xf32>
    %104 = vector.extract_strided_slice %103 {offsets = [0, 0], sizes = [8, 184], strides = [1, 1]} : vector<8x192xf32> to vector<8x184xf32>
    %105 = vector.extract_strided_slice %103 {offsets = [0, 8], sizes = [8, 184], strides = [1, 1]} : vector<8x192xf32> to vector<8x184xf32>
    %106 = arith.maximumf %104, %105 : vector<8x184xf32>
    %c5 = arith.constant 5 : index
    %c0_97 = arith.constant 0 : index
    %c0_98 = arith.constant 0 : index
    %107 = vector.load %arg6[%c5, %c0_97, %c0_98] : memref<12x184x128xf32, #tpu.memory_space<vmem>>, vector<1x184x128xf32>
    %108 = vector.shape_cast %107 : vector<1x184x128xf32> to vector<184x128xf32>
    %cst_99 = arith.constant dense<0.000000e+00> : vector<8x128xf32>
    %109 = tpu.matmul %106, %108, %cst_99 {dimension_numbers = #tpu.dot_dimension_numbers<[1], [0], [0], [1], [0, 0, 1, 1], [], []>} : vector<8x184xf32>, vector<184x128xf32>, vector<8x128xf32> -> vector<8x128xf32>
    %110 = arith.addf %100, %109 : vector<8x128xf32>
    %c96 = arith.constant 96 : index
    %c0_100 = arith.constant 0 : index
    %111 = vector.load %arg12[%c96, %c0_100] : memref<192x192xf32, #tpu.memory_space<vmem>>, vector<8x192xf32>
    %c104 = arith.constant 104 : index
    %c0_101 = arith.constant 0 : index
    %112 = vector.load %arg12[%c104, %c0_101] : memref<192x192xf32, #tpu.memory_space<vmem>>, vector<8x192xf32>
    %113 = arith.maximumf %111, %112 : vector<8x192xf32>
    %114 = vector.extract_strided_slice %113 {offsets = [0, 0], sizes = [8, 184], strides = [1, 1]} : vector<8x192xf32> to vector<8x184xf32>
    %115 = vector.extract_strided_slice %113 {offsets = [0, 8], sizes = [8, 184], strides = [1, 1]} : vector<8x192xf32> to vector<8x184xf32>
    %116 = arith.maximumf %114, %115 : vector<8x184xf32>
    %c6 = arith.constant 6 : index
    %c0_102 = arith.constant 0 : index
    %c0_103 = arith.constant 0 : index
    %117 = vector.load %arg6[%c6, %c0_102, %c0_103] : memref<12x184x128xf32, #tpu.memory_space<vmem>>, vector<1x184x128xf32>
    %118 = vector.shape_cast %117 : vector<1x184x128xf32> to vector<184x128xf32>
    %cst_104 = arith.constant dense<0.000000e+00> : vector<8x128xf32>
    %119 = tpu.matmul %116, %118, %cst_104 {dimension_numbers = #tpu.dot_dimension_numbers<[1], [0], [0], [1], [0, 0, 1, 1], [], []>} : vector<8x184xf32>, vector<184x128xf32>, vector<8x128xf32> -> vector<8x128xf32>
    %120 = arith.addf %110, %119 : vector<8x128xf32>
    %c112 = arith.constant 112 : index
    %c0_105 = arith.constant 0 : index
    %121 = vector.load %arg12[%c112, %c0_105] : memref<192x192xf32, #tpu.memory_space<vmem>>, vector<8x192xf32>
    %c120 = arith.constant 120 : index
    %c0_106 = arith.constant 0 : index
    %122 = vector.load %arg12[%c120, %c0_106] : memref<192x192xf32, #tpu.memory_space<vmem>>, vector<8x192xf32>
    %123 = arith.maximumf %121, %122 : vector<8x192xf32>
    %124 = vector.extract_strided_slice %123 {offsets = [0, 0], sizes = [8, 184], strides = [1, 1]} : vector<8x192xf32> to vector<8x184xf32>
    %125 = vector.extract_strided_slice %123 {offsets = [0, 8], sizes = [8, 184], strides = [1, 1]} : vector<8x192xf32> to vector<8x184xf32>
    %126 = arith.maximumf %124, %125 : vector<8x184xf32>
    %c7 = arith.constant 7 : index
    %c0_107 = arith.constant 0 : index
    %c0_108 = arith.constant 0 : index
    %127 = vector.load %arg6[%c7, %c0_107, %c0_108] : memref<12x184x128xf32, #tpu.memory_space<vmem>>, vector<1x184x128xf32>
    %128 = vector.shape_cast %127 : vector<1x184x128xf32> to vector<184x128xf32>
    %cst_109 = arith.constant dense<0.000000e+00> : vector<8x128xf32>
    %129 = tpu.matmul %126, %128, %cst_109 {dimension_numbers = #tpu.dot_dimension_numbers<[1], [0], [0], [1], [0, 0, 1, 1], [], []>} : vector<8x184xf32>, vector<184x128xf32>, vector<8x128xf32> -> vector<8x128xf32>
    %130 = arith.addf %120, %129 : vector<8x128xf32>
    %c128 = arith.constant 128 : index
    %c0_110 = arith.constant 0 : index
    %131 = vector.load %arg12[%c128, %c0_110] : memref<192x192xf32, #tpu.memory_space<vmem>>, vector<8x192xf32>
    %c136 = arith.constant 136 : index
    %c0_111 = arith.constant 0 : index
    %132 = vector.load %arg12[%c136, %c0_111] : memref<192x192xf32, #tpu.memory_space<vmem>>, vector<8x192xf32>
    %133 = arith.maximumf %131, %132 : vector<8x192xf32>
    %134 = vector.extract_strided_slice %133 {offsets = [0, 0], sizes = [8, 184], strides = [1, 1]} : vector<8x192xf32> to vector<8x184xf32>
    %135 = vector.extract_strided_slice %133 {offsets = [0, 8], sizes = [8, 184], strides = [1, 1]} : vector<8x192xf32> to vector<8x184xf32>
    %136 = arith.maximumf %134, %135 : vector<8x184xf32>
    %c8_112 = arith.constant 8 : index
    %c0_113 = arith.constant 0 : index
    %c0_114 = arith.constant 0 : index
    %137 = vector.load %arg6[%c8_112, %c0_113, %c0_114] : memref<12x184x128xf32, #tpu.memory_space<vmem>>, vector<1x184x128xf32>
    %138 = vector.shape_cast %137 : vector<1x184x128xf32> to vector<184x128xf32>
    %cst_115 = arith.constant dense<0.000000e+00> : vector<8x128xf32>
    %139 = tpu.matmul %136, %138, %cst_115 {dimension_numbers = #tpu.dot_dimension_numbers<[1], [0], [0], [1], [0, 0, 1, 1], [], []>} : vector<8x184xf32>, vector<184x128xf32>, vector<8x128xf32> -> vector<8x128xf32>
    %140 = arith.addf %130, %139 : vector<8x128xf32>
    %c144 = arith.constant 144 : index
    %c0_116 = arith.constant 0 : index
    %141 = vector.load %arg12[%c144, %c0_116] : memref<192x192xf32, #tpu.memory_space<vmem>>, vector<8x192xf32>
    %c152 = arith.constant 152 : index
    %c0_117 = arith.constant 0 : index
    %142 = vector.load %arg12[%c152, %c0_117] : memref<192x192xf32, #tpu.memory_space<vmem>>, vector<8x192xf32>
    %143 = arith.maximumf %141, %142 : vector<8x192xf32>
    %144 = vector.extract_strided_slice %143 {offsets = [0, 0], sizes = [8, 184], strides = [1, 1]} : vector<8x192xf32> to vector<8x184xf32>
    %145 = vector.extract_strided_slice %143 {offsets = [0, 8], sizes = [8, 184], strides = [1, 1]} : vector<8x192xf32> to vector<8x184xf32>
    %146 = arith.maximumf %144, %145 : vector<8x184xf32>
    %c9 = arith.constant 9 : index
    %c0_118 = arith.constant 0 : index
    %c0_119 = arith.constant 0 : index
    %147 = vector.load %arg6[%c9, %c0_118, %c0_119] : memref<12x184x128xf32, #tpu.memory_space<vmem>>, vector<1x184x128xf32>
    %148 = vector.shape_cast %147 : vector<1x184x128xf32> to vector<184x128xf32>
    %cst_120 = arith.constant dense<0.000000e+00> : vector<8x128xf32>
    %149 = tpu.matmul %146, %148, %cst_120 {dimension_numbers = #tpu.dot_dimension_numbers<[1], [0], [0], [1], [0, 0, 1, 1], [], []>} : vector<8x184xf32>, vector<184x128xf32>, vector<8x128xf32> -> vector<8x128xf32>
    %150 = arith.addf %140, %149 : vector<8x128xf32>
    %c160 = arith.constant 160 : index
    %c0_121 = arith.constant 0 : index
    %151 = vector.load %arg12[%c160, %c0_121] : memref<192x192xf32, #tpu.memory_space<vmem>>, vector<8x192xf32>
    %c168 = arith.constant 168 : index
    %c0_122 = arith.constant 0 : index
    %152 = vector.load %arg12[%c168, %c0_122] : memref<192x192xf32, #tpu.memory_space<vmem>>, vector<8x192xf32>
    %153 = arith.maximumf %151, %152 : vector<8x192xf32>
    %154 = vector.extract_strided_slice %153 {offsets = [0, 0], sizes = [8, 184], strides = [1, 1]} : vector<8x192xf32> to vector<8x184xf32>
    %155 = vector.extract_strided_slice %153 {offsets = [0, 8], sizes = [8, 184], strides = [1, 1]} : vector<8x192xf32> to vector<8x184xf32>
    %156 = arith.maximumf %154, %155 : vector<8x184xf32>
    %c10 = arith.constant 10 : index
    %c0_123 = arith.constant 0 : index
    %c0_124 = arith.constant 0 : index
    %157 = vector.load %arg6[%c10, %c0_123, %c0_124] : memref<12x184x128xf32, #tpu.memory_space<vmem>>, vector<1x184x128xf32>
    %158 = vector.shape_cast %157 : vector<1x184x128xf32> to vector<184x128xf32>
    %cst_125 = arith.constant dense<0.000000e+00> : vector<8x128xf32>
    %159 = tpu.matmul %156, %158, %cst_125 {dimension_numbers = #tpu.dot_dimension_numbers<[1], [0], [0], [1], [0, 0, 1, 1], [], []>} : vector<8x184xf32>, vector<184x128xf32>, vector<8x128xf32> -> vector<8x128xf32>
    %160 = arith.addf %150, %159 : vector<8x128xf32>
    %c176 = arith.constant 176 : index
    %c0_126 = arith.constant 0 : index
    %161 = vector.load %arg12[%c176, %c0_126] : memref<192x192xf32, #tpu.memory_space<vmem>>, vector<8x192xf32>
    %c184 = arith.constant 184 : index
    %c0_127 = arith.constant 0 : index
    %162 = vector.load %arg12[%c184, %c0_127] : memref<192x192xf32, #tpu.memory_space<vmem>>, vector<8x192xf32>
    %163 = arith.maximumf %161, %162 : vector<8x192xf32>
    %164 = vector.extract_strided_slice %163 {offsets = [0, 0], sizes = [8, 184], strides = [1, 1]} : vector<8x192xf32> to vector<8x184xf32>
    %165 = vector.extract_strided_slice %163 {offsets = [0, 8], sizes = [8, 184], strides = [1, 1]} : vector<8x192xf32> to vector<8x184xf32>
    %166 = arith.maximumf %164, %165 : vector<8x184xf32>
    %c11 = arith.constant 11 : index
    %c0_128 = arith.constant 0 : index
    %c0_129 = arith.constant 0 : index
    %167 = vector.load %arg6[%c11, %c0_128, %c0_129] : memref<12x184x128xf32, #tpu.memory_space<vmem>>, vector<1x184x128xf32>
    %168 = vector.shape_cast %167 : vector<1x184x128xf32> to vector<184x128xf32>
    %cst_130 = arith.constant dense<0.000000e+00> : vector<8x128xf32>
    %169 = tpu.matmul %166, %168, %cst_130 {dimension_numbers = #tpu.dot_dimension_numbers<[1], [0], [0], [1], [0, 0, 1, 1], [], []>} : vector<8x184xf32>, vector<184x128xf32>, vector<8x128xf32> -> vector<8x128xf32>
    %170 = arith.addf %160, %169 : vector<8x128xf32>
    %c0_131 = arith.constant 0 : index
    %c0_132 = arith.constant 0 : index
    %171 = vector.load %arg7[%c0_131, %c0_132] : memref<1x128xf32, #tpu.memory_space<vmem>>, vector<1x128xf32>
    %172 = vector.broadcast %171 : vector<1x128xf32> to vector<8x128xf32>
    %173 = arith.addf %170, %172 : vector<8x128xf32>
    %cst_133 = arith.constant 0.000000e+00 : f32
    %174 = vector.broadcast %cst_133 : f32 to vector<8x128xf32>
    %175 = arith.maximumf %173, %174 : vector<8x128xf32>
    %c0_134 = arith.constant 0 : index
    %c0_135 = arith.constant 0 : index
    %176 = vector.load %arg8[%c0_134, %c0_135] : memref<128x128xf32, #tpu.memory_space<vmem>>, vector<128x128xf32>
    %cst_136 = arith.constant dense<0.000000e+00> : vector<8x128xf32>
    %177 = tpu.matmul %175, %176, %cst_136 {dimension_numbers = #tpu.dot_dimension_numbers<[1], [0], [0], [1], [0, 0, 1, 1], [], []>} : vector<8x128xf32>, vector<128x128xf32>, vector<8x128xf32> -> vector<8x128xf32>
    %c0_137 = arith.constant 0 : index
    %c0_138 = arith.constant 0 : index
    %178 = vector.load %arg9[%c0_137, %c0_138] : memref<1x128xf32, #tpu.memory_space<vmem>>, vector<1x128xf32>
    %179 = vector.broadcast %178 : vector<1x128xf32> to vector<8x128xf32>
    %180 = arith.addf %177, %179 : vector<8x128xf32>
    %c0_139 = arith.constant 0 : index
    %c0_140 = arith.constant 0 : index
    %181 = vector.load %arg10[%c0_139, %c0_140] : memref<8x128xf32, #tpu.memory_space<vmem>>, vector<8x128xf32>
    tpu.vector_store %arg10[%c0_139, %c0_140], %180 {strides = array<i32>} : memref<8x128xf32, #tpu.memory_space<vmem>>, vector<8x128xf32>,
    return
  }
  func.func @transform_0(%arg0: i32) -> (i32, i32) {
    %c0_i32 = arith.constant 0 : i32
    %c0_i32_0 = arith.constant 0 : i32
    return %arg0, %c0_i32 : i32, i32
  }
  func.func @transform_1(%arg0: i32) -> (i32, i32, i32) {
    %c0_i32 = arith.constant 0 : i32
    %c0_i32_0 = arith.constant 0 : i32
    %c0_i32_1 = arith.constant 0 : i32
    %c0_i32_2 = arith.constant 0 : i32
    return %c0_i32, %c0_i32_0, %c0_i32_1 : i32, i32, i32
  }
  func.func @transform_2(%arg0: i32) -> (i32, i32) {
    %c0_i32 = arith.constant 0 : i32
    %c0_i32_0 = arith.constant 0 : i32
    %c0_i32_1 = arith.constant 0 : i32
    return %c0_i32, %c0_i32_0 : i32, i32
  }
  func.func @transform_3(%arg0: i32) -> (i32, i32, i32) {
    %c0_i32 = arith.constant 0 : i32
    %c0_i32_0 = arith.constant 0 : i32
    %c0_i32_1 = arith.constant 0 : i32
    %c0_i32_2 = arith.constant 0 : i32
    return %c0_i32, %c0_i32_0, %c0_i32_1 : i32, i32, i32
  }
  func.func @transform_4(%arg0: i32) -> (i32, i32) {
    %c0_i32 = arith.constant 0 : i32
    %c0_i32_0 = arith.constant 0 : i32
    %c0_i32_1 = arith.constant 0 : i32
    return %c0_i32, %c0_i32_0 : i32, i32
  }
  func.func @transform_5(%arg0: i32) -> (i32, i32, i32) {
    %c0_i32 = arith.constant 0 : i32
    %c0_i32_0 = arith.constant 0 : i32
    %c0_i32_1 = arith.constant 0 : i32
    %c0_i32_2 = arith.constant 0 : i32
    return %c0_i32, %c0_i32_0, %c0_i32_1 : i32, i32, i32
  }
  func.func @transform_6(%arg0: i32) -> (i32, i32) {
    %c0_i32 = arith.constant 0 : i32
    %c0_i32_0 = arith.constant 0 : i32
    %c0_i32_1 = arith.constant 0 : i32
    return %c0_i32, %c0_i32_0 : i32, i32
  }
  func.func @transform_7(%arg0: i32) -> (i32, i32) {
    %c0_i32 = arith.constant 0 : i32
    %c0_i32_0 = arith.constant 0 : i32
    %c0_i32_1 = arith.constant 0 : i32
    return %c0_i32, %c0_i32_0 : i32, i32
  }
  func.func @transform_8(%arg0: i32) -> (i32, i32) {
    %c0_i32 = arith.constant 0 : i32
    %c0_i32_0 = arith.constant 0 : i32
    %c0_i32_1 = arith.constant 0 : i32
    return %c0_i32, %c0_i32_0 : i32, i32
  }
  func.func @transform_9(%arg0: i32) -> (i32, i32) {
    %c0_i32 = arith.constant 0 : i32
    %c0_i32_0 = arith.constant 0 : i32
    return %arg0, %c0_i32 : i32, i32
  }
}

</mosaic_0001>

<llo_original>
// kernel: tpu_custom_call.1
$region0: #{tpu_custom_call.1}
  #allocation0 [shape = 'u32[]', space=smem, size = 0x4, offset = 0x4, fixed_abs, tag = 'smem constant byte address 0x4 - core index']
  #allocation1 [shape = 'u32[144,128]{1,0:T(1,128)}', space=vmem, size = 0x12000, scoped, tag = 'internal scratch']
  #allocation2 [shape = 'f32[208,104]{1,0:T(8,128)}', space=vmem, size = 0x1a000, scoped, tag = 'scratch operand']
  #allocation3 [shape = 'f32[192,192]{1,0:T(8,128)}', space=vmem, size = 0x30000, scoped, tag = 'scratch operand']
  %s0 = inlined_call_operand.vmem [shape: f32[224,28], index: 0, kind: input, shape index: {}]
  %s1 = inlined_call_operand.hbm [shape: f32[3,28,104], index: 1, kind: input, shape index: {}]
  %s2 = inlined_call_operand.hbm [shape: f32[1,104], index: 2, kind: input, shape index: {}]
  %s3 = inlined_call_operand.vmem [shape: f32[3,104,192], index: 3, kind: input, shape index: {}]
  %s4 = inlined_call_operand.hbm [shape: f32[1,192], index: 4, kind: input, shape index: {}]
  %s5 = inlined_call_operand.hbm [shape: f32[12,184,128], index: 5, kind: input, shape index: {}]
  %s6 = inlined_call_operand.hbm [shape: f32[1,128], index: 6, kind: input, shape index: {}]
  %s7 = inlined_call_operand.hbm [shape: f32[128,128], index: 7, kind: input, shape index: {}]
  %s8 = inlined_call_operand.hbm [shape: f32[1,128], index: 8, kind: input, shape index: {}]
  %s9 = inlined_call_operand.hbm [shape: f32[8,128], index: 9, kind: output, shape index: {}]
  %s10 = sld [smem:[#allocation0]]
  $region74: #{tpu_custom_call.1} parent=0
    _
  %s12 = ssub.s32 1, %s10
  %s13 = scalar_select 0, %s12, %s10
  $region1: #{tpu_custom_call.1} parent=0
    #allocation4 [shape = 'u8[49152]{0}', space=vmem, size = 0xc000, scoped, tag = 'input window, operand 1, single buffered']
    #allocation5 [shape = 's32[1]{0}', space=sflag, size = 0x4, scoped, tag = 'scoped memory for tpu_custom_call.1']
    #allocation6 [shape = 's32[1]{0}', space=sflag, size = 0x4, scoped, tag = 'scoped memory for tpu_custom_call.1']
    #allocation7 [shape = 'u8[512]{0}', space=vmem, size = 0x400, scoped, tag = 'input window, operand 2, single buffered']
    #allocation8 [shape = 's32[1]{0}', space=sflag, size = 0x4, scoped, tag = 'scoped memory for tpu_custom_call.1']
    #allocation9 [shape = 'u8[1024]{0}', space=vmem, size = 0x400, scoped, tag = 'input window, operand 4, single buffered']
    #allocation10 [shape = 'u8[1130496]{0}', space=vmem, size = 0x114000, scoped, tag = 'input window, operand 5, single buffered']
    #allocation11 [shape = 's32[1]{0}', space=sflag, size = 0x4, scoped, tag = 'scoped memory for tpu_custom_call.1']
    #allocation12 [shape = 'u8[512]{0}', space=vmem, size = 0x400, scoped, tag = 'input window, operand 6, single buffered']
    #allocation13 [shape = 'u8[65536]{0}', space=vmem, size = 0x10000, scoped, tag = 'input window, operand 7, single buffered']
    #allocation14 [shape = 's32[1]{0}', space=sflag, size = 0x4, scoped, tag = 'scoped memory for tpu_custom_call.1']
    #allocation15 [shape = 'u8[512]{0}', space=vmem, size = 0x400, scoped, tag = 'input window, operand 8, single buffered']
    #allocation16 [shape = 'u8[4096]{0}', space=vmem, size = 0x1000, scoped, tag = 'output window, operand 0, single buffered']
    %14 = vsyncpa [#allocation5], 0
    %15 = vsyncpa [#allocation8], 0
    %16 = vsyncpa [#allocation11], 0
    %17 = vsyncpa [#allocation14], 0
    %18 = vsyncpa [#allocation6], 0
    // Predicated region
    $region2: #{tpu_custom_call.1} parent=1 // pred_check
      _
    $region3: #{tpu_custom_call.1} parent=1 // pred_check_branch
      %20 = sbr.rel (0) target = $region5
    $region4: #{tpu_custom_call.1} parent=1 // pred_region
      _
    $region5: #{tpu_custom_call.1} parent=1 // pred_fallthru
      _
    // Predicated region
    $region6: #{tpu_custom_call.1} parent=1 // pred_check
      _
    $region7: #{tpu_custom_call.1} parent=1 // pred_check_branch
      %22 = sbr.rel (0) target = $region9
    $region8: #{tpu_custom_call.1} parent=1 // pred_region
      %s24 = ssub.s32 1536, 1536
      %25 = vsyncadd [#allocation5], %s24
      %s26 = sshll.u32 [#allocation4], 4
      %s27 = int_to_ptr.vmem [resolvable:$true] %s26
      %32 = dma.hbm_to_vmem [thread:$0]  %s1, 1536, %s27, [#allocation5], 128, 128, 8
    $region9: #{tpu_custom_call.1} parent=1 // pred_fallthru
      _
    // Predicated region
    $region10: #{tpu_custom_call.1} parent=1 // pred_check
      _
    $region11: #{tpu_custom_call.1} parent=1 // pred_check_branch
      %34 = sbr.rel (0) target = $region13
    $region12: #{tpu_custom_call.1} parent=1 // pred_region
      %s36 = ssub.s32 16, 16
      %37 = vsyncadd [#allocation8], %s36
      %s39 = sshll.u32 [#allocation7], 4
      %s40 = int_to_ptr.vmem [resolvable:$true] %s39
      %42 = dma.hbm_to_vmem [thread:$0]  %s2, 16, %s40, [#allocation8]
    $region13: #{tpu_custom_call.1} parent=1 // pred_fallthru
      _
    // Predicated region
    $region14: #{tpu_custom_call.1} parent=1 // pred_check
      _
    $region15: #{tpu_custom_call.1} parent=1 // pred_check_branch
      %44 = sbr.rel (0) target = $region17
    $region16: #{tpu_custom_call.1} parent=1 // pred_region
      _
    $region17: #{tpu_custom_call.1} parent=1 // pred_fallthru
      _
    // Predicated region
    $region18: #{tpu_custom_call.1} parent=1 // pred_check
      _
    $region19: #{tpu_custom_call.1} parent=1 // pred_check_branch
      %46 = sbr.rel (0) target = $region21
    $region20: #{tpu_custom_call.1} parent=1 // pred_region
      %s48 = ssub.s32 32, 32
      %49 = vsyncadd [#allocation8], %s48
      %s51 = sshll.u32 [#allocation9], 4
      %s52 = int_to_ptr.vmem [resolvable:$true] %s51
      %54 = dma.hbm_to_vmem [thread:$0]  %s4, 32, %s52, [#allocation8]
    $region21: #{tpu_custom_call.1} parent=1 // pred_fallthru
      _
    // Predicated region
    $region22: #{tpu_custom_call.1} parent=1 // pred_check
      _
    $region23: #{tpu_custom_call.1} parent=1 // pred_check_branch
      %56 = sbr.rel (0) target = $region25
    $region24: #{tpu_custom_call.1} parent=1 // pred_region
      %s58 = ssub.s32 35328, 35328
      %59 = vsyncadd [#allocation11], %s58
      %s60 = sshll.u32 [#allocation10], 4
      %s61 = int_to_ptr.vmem [resolvable:$true] %s60
      %66 = dma.hbm_to_vmem [thread:$0]  %s5, 35328, %s61, [#allocation11], 128, 128, 8
    $region25: #{tpu_custom_call.1} parent=1 // pred_fallthru
      _
    // Predicated region
    $region26: #{tpu_custom_call.1} parent=1 // pred_check
      _
    $region27: #{tpu_custom_call.1} parent=1 // pred_check_branch
      %68 = sbr.rel (0) target = $region29
    $region28: #{tpu_custom_call.1} parent=1 // pred_region
      %s70 = ssub.s32 16, 16
      %71 = vsyncadd [#allocation11], %s70
      %s73 = sshll.u32 [#allocation12], 4
      %s74 = int_to_ptr.vmem [resolvable:$true] %s73
      %76 = dma.hbm_to_vmem [thread:$0]  %s6, 16, %s74, [#allocation11]
    $region29: #{tpu_custom_call.1} parent=1 // pred_fallthru
      _
    // Predicated region
    $region30: #{tpu_custom_call.1} parent=1 // pred_check
      _
    $region31: #{tpu_custom_call.1} parent=1 // pred_check_branch
      %78 = sbr.rel (0) target = $region33
    $region32: #{tpu_custom_call.1} parent=1 // pred_region
      %s80 = ssub.s32 2048, 2048
      %81 = vsyncadd [#allocation14], %s80
      %s82 = sshll.u32 [#allocation13], 4
      %s83 = int_to_ptr.vmem [resolvable:$true] %s82
      %88 = dma.hbm_to_vmem [thread:$0]  %s7, 2048, %s83, [#allocation14], 128, 128, 8
    $region33: #{tpu_custom_call.1} parent=1 // pred_fallthru
      _
    // Predicated region
    $region34: #{tpu_custom_call.1} parent=1 // pred_check
      _
    $region35: #{tpu_custom_call.1} parent=1 // pred_check_branch
      %90 = sbr.rel (0) target = $region37
    $region36: #{tpu_custom_call.1} parent=1 // pred_region
      %s92 = ssub.s32 16, 16
      %93 = vsyncadd [#allocation14], %s92
      %s95 = sshll.u32 [#allocation15], 4
      %s96 = int_to_ptr.vmem [resolvable:$true] %s95
      %98 = dma.hbm_to_vmem [thread:$0]  %s8, 16, %s96, [#allocation14]
    $region37: #{tpu_custom_call.1} parent=1 // pred_fallthru
      _
    // Predicated region
    $region38: #{tpu_custom_call.1} parent=1 // pred_check
      _
    $region39: #{tpu_custom_call.1} parent=1 // pred_check_branch
      %100 = sbr.rel (0) target = $region41
    $region40: #{tpu_custom_call.1} parent=1 // pred_region
      %101 = dma.done [#allocation5], 1536
    $region41: #{tpu_custom_call.1} parent=1 // pred_fallthru
      _
    // Predicated region
    $region42: #{tpu_custom_call.1} parent=1 // pred_check
      _
    $region43: #{tpu_custom_call.1} parent=1 // pred_check_branch
      %103 = sbr.rel (0) target = $region45
    $region44: #{tpu_custom_call.1} parent=1 // pred_region
      %104 = dma.done [#allocation8], 16
    $region45: #{tpu_custom_call.1} parent=1 // pred_fallthru
      _
    // Predicated region
    $region46: #{tpu_custom_call.1} parent=1 // pred_check
      _
    $region47: #{tpu_custom_call.1} parent=1 // pred_check_branch
      %106 = sbr.rel (0) target = $region49
    $region48: #{tpu_custom_call.1} parent=1 // pred_region
      %107 = dma.done [#allocation8], 32
    $region49: #{tpu_custom_call.1} parent=1 // pred_fallthru
      _
    // Predicated region
    $region50: #{tpu_custom_call.1} parent=1 // pred_check
      _
    $region51: #{tpu_custom_call.1} parent=1 // pred_check_branch
      %109 = sbr.rel (0) target = $region53
    $region52: #{tpu_custom_call.1} parent=1 // pred_region
      %110 = dma.done [#allocation11], 35328
    $region53: #{tpu_custom_call.1} parent=1 // pred_fallthru
      _
    // Predicated region
    $region54: #{tpu_custom_call.1} parent=1 // pred_check
      _
    $region55: #{tpu_custom_call.1} parent=1 // pred_check_branch
      %112 = sbr.rel (0) target = $region57
    $region56: #{tpu_custom_call.1} parent=1 // pred_region
      %113 = dma.done [#allocation11], 16
    $region57: #{tpu_custom_call.1} parent=1 // pred_fallthru
      _
    // Predicated region
    $region58: #{tpu_custom_call.1} parent=1 // pred_check
      _
    $region59: #{tpu_custom_call.1} parent=1 // pred_check_branch
      %115 = sbr.rel (0) target = $region61
    $region60: #{tpu_custom_call.1} parent=1 // pred_region
      %116 = dma.done [#allocation14], 2048
    $region61: #{tpu_custom_call.1} parent=1 // pred_fallthru
      _
    // Predicated region
    $region62: #{tpu_custom_call.1} parent=1 // pred_check
      _
    $region63: #{tpu_custom_call.1} parent=1 // pred_check_branch
      %118 = sbr.rel (0) target = $region65
    $region64: #{tpu_custom_call.1} parent=1 // pred_region
      %119 = dma.done [#allocation14], 16
    $region65: #{tpu_custom_call.1} parent=1 // pred_fallthru
      _
    %v120 = vld [vmem:[%s0] sm:$0xff]
    %v121 = vld [vmem:[%s0 + $0x8] sm:$0xff]
    %v122 = vld [vmem:[%s0 + $0x10] sm:$0xff]
    %v123 = vld [vmem:[%s0 + $0x18] sm:$0xff]
    %v124 = vld [vmem:[%s0 + $0x20] sm:$0xff]
    %v125 = vld [vmem:[%s0 + $0x28] sm:$0xff]
    %v126 = vld [vmem:[%s0 + $0x30] sm:$0xff]
    %v127 = vld [vmem:[%s0 + $0x38] sm:$0xff]
    %v128 = vld [vmem:[%s0 + $0x40] sm:$0xff]
    %v129 = vld [vmem:[%s0 + $0x48] sm:$0xff]
    %v130 = vld [vmem:[%s0 + $0x50] sm:$0xff]
    %v131 = vld [vmem:[%s0 + $0x58] sm:$0xff]
    %v132 = vld [vmem:[%s0 + $0x60] sm:$0xff]
    %v133 = vld [vmem:[%s0 + $0x68] sm:$0xff]
    %v134 = vld [vmem:[%s0 + $0x70] sm:$0xff]
    %v135 = vld [vmem:[%s0 + $0x78] sm:$0xff]
    %v136 = vld [vmem:[%s0 + $0x80] sm:$0xff]
    %v137 = vld [vmem:[%s0 + $0x88] sm:$0xff]
    %v138 = vld [vmem:[%s0 + $0x90] sm:$0xff]
    %v139 = vld [vmem:[%s0 + $0x98] sm:$0xff]
    %v140 = vld [vmem:[%s0 + $0xa0] sm:$0xff]
    %v141 = vld [vmem:[%s0 + $0xa8] sm:$0xff]
    %v142 = vld [vmem:[%s0 + $0xb0] sm:$0xff]
    %v143 = vld [vmem:[%s0 + $0xb8] sm:$0xff]
    %v144 = vld [vmem:[%s0 + $0xc0] sm:$0xff]
    %v145 = vld [vmem:[%s0 + $0xc8] sm:$0xff]
    %v146 = vld [vmem:[#allocation4] sm:$0xff]
    %v147 = vld [vmem:[#allocation4 + $0x8] sm:$0xff]
    %v148 = vld [vmem:[#allocation4 + $0x10] sm:$0xff]
    %v149 = vld [vmem:[#allocation4 + $0x18] sm:$0xf]
    %vm150 = vcmask 228352
    %v152 = vsel %vm150, %v120, 0
    %v155 = vsel %vm150, %v121, 0
    %v158 = vsel %vm150, %v122, 0
    %v161 = vsel %vm150, %v123, 0
    %v164 = vsel %vm150, %v124, 0
    %v167 = vsel %vm150, %v125, 0
    %v170 = vsel %vm150, %v126, 0
    %v173 = vsel %vm150, %v127, 0
    %v176 = vsel %vm150, %v128, 0
    %v179 = vsel %vm150, %v129, 0
    %v182 = vsel %vm150, %v130, 0
    %v185 = vsel %vm150, %v131, 0
    %v188 = vsel %vm150, %v132, 0
    %v191 = vsel %vm150, %v133, 0
    %v194 = vsel %vm150, %v134, 0
    %v197 = vsel %vm150, %v135, 0
    %v200 = vsel %vm150, %v136, 0
    %v203 = vsel %vm150, %v137, 0
    %v206 = vsel %vm150, %v138, 0
    %v209 = vsel %vm150, %v139, 0
    %v212 = vsel %vm150, %v140, 0
    %v215 = vsel %vm150, %v141, 0
    %v218 = vsel %vm150, %v142, 0
    %v221 = vsel %vm150, %v143, 0
    %v224 = vsel %vm150, %v144, 0
    %v227 = vsel %vm150, %v145, 0
    %vm229 = vcmask 1043456
    %v231 = vsel %vm229, %v149, 0
    %233 = vmatprep.subr.mxu0 0.0
    %234 = vmatpush1.msra.mxu0 0.0
    %235 = vmatprep.subr.mxu0 0.0
    %236 = vmatpush1.msra.mxu0 0.0
    %237 = vmatprep.subr.mxu0 0.0
    %238 = vmatpush1.msra.mxu0 0.0
    %239 = vmatprep.subr.mxu0 0.0
    %240 = vmatpush1.msra.mxu0 0.0
    %241 = vmatprep.subr.mxu0 0.0
    %242 = vmatpush1.msra.mxu0 0.0
    %243 = vmatprep.subr.mxu0 0.0
    %244 = vmatpush1.msra.mxu0 0.0
    %245 = vmatprep.subr.mxu0 0.0
    %246 = vmatpush1.msra.mxu0 0.0
    %247 = vmatprep.subr.mxu0 0.0
    %248 = vmatpush1.msra.mxu0 0.0
    %249 = vmatprep.subr.mxu0 0.0
    %250 = vmatpush1.msra.mxu0 0.0
    %251 = vmatprep.subr.mxu0 0.0
    %252 = vmatpush1.msra.mxu0 0.0
    %253 = vmatprep.subr.mxu0 0.0
    %254 = vmatpush1.msra.mxu0 0.0
    %255 = vmatprep.subr.mxu0 0.0
    %256 = vmatpush1.msra.mxu0 0.0
    %257 = vmatprep.subr.mxu0 0.0
    %258 = vmatpush1.msra.mxu0 %v231
    %259 = vmatprep.subr.mxu0 0.0
    %260 = vmatpush1.msra.mxu0 %v148
    %261 = vmatprep.subr.mxu0 0.0
    %262 = vmatpush1.msra.mxu0 %v147
    %263 = vmatprep.subr.mxu0 0.0
    %264 = vmatpush1.msra.mxu0 %v146
    %265 = vmatprep.subr.mxu0 0.0
    %266 = vmatpush2.msra.mxu0 0.0
    %267 = vmatprep.subr.mxu0 0.0
    %268 = vmatpush2.msra.mxu0 0.0
    %269 = vmatprep.subr.mxu0 0.0
    %270 = vmatpush2.msra.mxu0 0.0
    %271 = vmatprep.subr.mxu0 0.0
    %272 = vmatpush2.msra.mxu0 0.0
    %273 = vmatprep.subr.mxu0 0.0
    %274 = vmatpush2.msra.mxu0 0.0
    %275 = vmatprep.subr.mxu0 0.0
    %276 = vmatpush2.msra.mxu0 0.0
    %277 = vmatprep.subr.mxu0 0.0
    %278 = vmatpush2.msra.mxu0 0.0
    %279 = vmatprep.subr.mxu0 0.0
    %280 = vmatpush2.msra.mxu0 0.0
    %281 = vmatprep.subr.mxu0 0.0
    %282 = vmatpush2.msra.mxu0 0.0
    %283 = vmatprep.subr.mxu0 0.0
    %284 = vmatpush2.msra.mxu0 0.0
    %285 = vmatprep.subr.mxu0 0.0
    %286 = vmatpush2.msra.mxu0 0.0
    %287 = vmatprep.subr.mxu0 0.0
    %288 = vmatpush2.msra.mxu0 0.0
    %289 = vmatprep.subr.mxu0 0.0
    %290 = vmatpush2.msra.mxu0 0.0
    %291 = vmatprep.subr.mxu0 0.0
    %292 = vmatpush2.msra.mxu0 0.0
    %293 = vmatprep.subr.mxu0 0.0
    %294 = vmatpush2.msra.mxu0 0.0
    %295 = vmatprep.subr.mxu0 0.0
    %296 = vmatpush2.msra.mxu0 0.0
    %297 = vmatprep.mubr.f32.mxu0 0.0
    %298 = vmatmul.mubr.f32.gmra.mxu0 %v152
    %v299 = vpop.f32.mrf.mxu0
    %v300 = vadd.f32 0.0, %v299
    %v301 = vpop.f32.mrf.mxu0
    %302 = vmatprep.mubr.f32.mxu0 0.0
    %303 = vmatmul.mubr.f32.gmra.mxu0 %v155
    %v304 = vpop.f32.mrf.mxu0
    %v305 = vadd.f32 0.0, %v304
    %v306 = vpop.f32.mrf.mxu0
    %307 = vmatprep.mubr.f32.mxu0 0.0
    %308 = vmatmul.mubr.f32.gmra.mxu0 %v158
    %v309 = vpop.f32.mrf.mxu0
    %v310 = vadd.f32 0.0, %v309
    %v311 = vpop.f32.mrf.mxu0
    %312 = vmatprep.mubr.f32.mxu0 0.0
    %313 = vmatmul.mubr.f32.gmra.mxu0 %v161
    %v314 = vpop.f32.mrf.mxu0
    %v315 = vadd.f32 0.0, %v314
    %v316 = vpop.f32.mrf.mxu0
    %317 = vmatprep.mubr.f32.mxu0 0.0
    %318 = vmatmul.mubr.f32.gmra.mxu0 %v164
    %v319 = vpop.f32.mrf.mxu0
    %v320 = vadd.f32 0.0, %v319
    %v321 = vpop.f32.mrf.mxu0
    %322 = vmatprep.mubr.f32.mxu0 0.0
    %323 = vmatmul.mubr.f32.gmra.mxu0 %v167
    %v324 = vpop.f32.mrf.mxu0
    %v325 = vadd.f32 0.0, %v324
    %v326 = vpop.f32.mrf.mxu0
    %327 = vmatprep.mubr.f32.mxu0 0.0
    %328 = vmatmul.mubr.f32.gmra.mxu0 %v170
    %v329 = vpop.f32.mrf.mxu0
    %v330 = vadd.f32 0.0, %v329
    %v331 = vpop.f32.mrf.mxu0
    %332 = vmatprep.mubr.f32.mxu0 0.0
    %333 = vmatmul.mubr.f32.gmra.mxu0 %v173
    %v334 = vpop.f32.mrf.mxu0
    %v335 = vadd.f32 0.0, %v334
    %v336 = vpop.f32.mrf.mxu0
    %337 = vmatprep.mubr.f32.mxu0 0.0
    %338 = vmatmul.mubr.f32.gmra.mxu0 %v176
    %v339 = vpop.f32.mrf.mxu0
    %v340 = vadd.f32 0.0, %v339
    %v341 = vpop.f32.mrf.mxu0
    %342 = vmatprep.mubr.f32.mxu0 0.0
    %343 = vmatmul.mubr.f32.gmra.mxu0 %v179
    %v344 = vpop.f32.mrf.mxu0
    %v345 = vadd.f32 0.0, %v344
    %v346 = vpop.f32.mrf.mxu0
    %347 = vmatprep.mubr.f32.mxu0 0.0
    %348 = vmatmul.mubr.f32.gmra.mxu0 %v182
    %v349 = vpop.f32.mrf.mxu0
    %v350 = vadd.f32 0.0, %v349
    %v351 = vpop.f32.mrf.mxu0
    %352 = vmatprep.mubr.f32.mxu0 0.0
    %353 = vmatmul.mubr.f32.gmra.mxu0 %v185
    %v354 = vpop.f32.mrf.mxu0
    %v355 = vadd.f32 0.0, %v354
    %v356 = vpop.f32.mrf.mxu0
    %357 = vmatprep.mubr.f32.mxu0 0.0
    %358 = vmatmul.mubr.f32.gmra.mxu0 %v188
    %v359 = vpop.f32.mrf.mxu0
    %v360 = vadd.f32 0.0, %v359
    %v361 = vpop.f32.mrf.mxu0
    %362 = vmatprep.mubr.f32.mxu0 0.0
    %363 = vmatmul.mubr.f32.gmra.mxu0 %v191
    %v364 = vpop.f32.mrf.mxu0
    %v365 = vadd.f32 0.0, %v364
    %v366 = vpop.f32.mrf.mxu0
    %367 = vmatprep.mubr.f32.mxu0 0.0
    %368 = vmatmul.mubr.f32.gmra.mxu0 %v194
    %v369 = vpop.f32.mrf.mxu0
    %v370 = vadd.f32 0.0, %v369
    %v371 = vpop.f32.mrf.mxu0
    %372 = vmatprep.mubr.f32.mxu0 0.0
    %373 = vmatmul.mubr.f32.gmra.mxu0 %v197
    %v374 = vpop.f32.mrf.mxu0
    %v375 = vadd.f32 0.0, %v374
    %v376 = vpop.f32.mrf.mxu0
    %377 = vmatprep.mubr.f32.mxu0 0.0
    %378 = vmatmul.mubr.f32.gmra.mxu0 %v200
    %v379 = vpop.f32.mrf.mxu0
    %v380 = vadd.f32 0.0, %v379
    %v381 = vpop.f32.mrf.mxu0
    %382 = vmatprep.mubr.f32.mxu0 0.0
    %383 = vmatmul.mubr.f32.gmra.mxu0 %v203
    %v384 = vpop.f32.mrf.mxu0
    %v385 = vadd.f32 0.0, %v384
    %v386 = vpop.f32.mrf.mxu0
    %387 = vmatprep.mubr.f32.mxu0 0.0
    %388 = vmatmul.mubr.f32.gmra.mxu0 %v206
    %v389 = vpop.f32.mrf.mxu0
    %v390 = vadd.f32 0.0, %v389
    %v391 = vpop.f32.mrf.mxu0
    %392 = vmatprep.mubr.f32.mxu0 0.0
    %393 = vmatmul.mubr.f32.gmra.mxu0 %v209
    %v394 = vpop.f32.mrf.mxu0
    %v395 = vadd.f32 0.0, %v394
    %v396 = vpop.f32.mrf.mxu0
    %397 = vmatprep.mubr.f32.mxu0 0.0
    %398 = vmatmul.mubr.f32.gmra.mxu0 %v212
    %v399 = vpop.f32.mrf.mxu0
    %v400 = vadd.f32 0.0, %v399
    %v401 = vpop.f32.mrf.mxu0
    %402 = vmatprep.mubr.f32.mxu0 0.0
    %403 = vmatmul.mubr.f32.gmra.mxu0 %v215
    %v404 = vpop.f32.mrf.mxu0
    %v405 = vadd.f32 0.0, %v404
    %v406 = vpop.f32.mrf.mxu0
    %407 = vmatprep.mubr.f32.mxu0 0.0
    %408 = vmatmul.mubr.f32.gmra.mxu0 %v218
    %v409 = vpop.f32.mrf.mxu0
    %v410 = vadd.f32 0.0, %v409
    %v411 = vpop.f32.mrf.mxu0
    %412 = vmatprep.mubr.f32.mxu0 0.0
    %413 = vmatmul.mubr.f32.gmra.mxu0 %v221
    %v414 = vpop.f32.mrf.mxu0
    %v415 = vadd.f32 0.0, %v414
    %v416 = vpop.f32.mrf.mxu0
    %417 = vmatprep.mubr.f32.mxu0 0.0
    %418 = vmatmul.mubr.f32.gmra.mxu0 %v224
    %v419 = vpop.f32.mrf.mxu0
    %v420 = vadd.f32 0.0, %v419
    %v421 = vpop.f32.mrf.mxu0
    %422 = vmatprep.mubr.f32.mxu0 0.0
    %423 = vmatmul.mubr.f32.gmra.mxu0 %v227
    %v424 = vpop.f32.mrf.mxu0
    %v425 = vadd.f32 0.0, %v424
    %v426 = vpop.f32.mrf.mxu0
    %427 = vdwg.mxu0
    %vm428 = vcmask 850944
    %429 = vst.msk [vmem:[#allocation2] sm:$0xff] %vm428, %v300
    %430 = vst.msk [vmem:[#allocation2 + $0x8] sm:$0xff] %vm428, %v305
    %431 = vst.msk [vmem:[#allocation2 + $0x10] sm:$0xff] %vm428, %v310
    %432 = vst.msk [vmem:[#allocation2 + $0x18] sm:$0xff] %vm428, %v315
    %433 = vst.msk [vmem:[#allocation2 + $0x20] sm:$0xff] %vm428, %v320
    %434 = vst.msk [vmem:[#allocation2 + $0x28] sm:$0xff] %vm428, %v325
    %435 = vst.msk [vmem:[#allocation2 + $0x30] sm:$0xff] %vm428, %v330
    %436 = vst.msk [vmem:[#allocation2 + $0x38] sm:$0xff] %vm428, %v335
    %437 = vst.msk [vmem:[#allocation2 + $0x40] sm:$0xff] %vm428, %v340
    %438 = vst.msk [vmem:[#allocation2 + $0x48] sm:$0xff] %vm428, %v345
    %439 = vst.msk [vmem:[#allocation2 + $0x50] sm:$0xff] %vm428, %v350
    %440 = vst.msk [vmem:[#allocation2 + $0x58] sm:$0xff] %vm428, %v355
    %441 = vst.msk [vmem:[#allocation2 + $0x60] sm:$0xff] %vm428, %v360
    %442 = vst.msk [vmem:[#allocation2 + $0x68] sm:$0xff] %vm428, %v365
    %443 = vst.msk [vmem:[#allocation2 + $0x70] sm:$0xff] %vm428, %v370
    %444 = vst.msk [vmem:[#allocation2 + $0x78] sm:$0xff] %vm428, %v375
    %445 = vst.msk [vmem:[#allocation2 + $0x80] sm:$0xff] %vm428, %v380
    %446 = vst.msk [vmem:[#allocation2 + $0x88] sm:$0xff] %vm428, %v385
    %447 = vst.msk [vmem:[#allocation2 + $0x90] sm:$0xff] %vm428, %v390
    %448 = vst.msk [vmem:[#allocation2 + $0x98] sm:$0xff] %vm428, %v395
    %449 = vst.msk [vmem:[#allocation2 + $0xa0] sm:$0xff] %vm428, %v400
    %450 = vst.msk [vmem:[#allocation2 + $0xa8] sm:$0xff] %vm428, %v405
    %451 = vst.msk [vmem:[#allocation2 + $0xb0] sm:$0xff] %vm428, %v410
    %452 = vst.msk [vmem:[#allocation2 + $0xb8] sm:$0xff] %vm428, %v415
    %453 = vst.msk [vmem:[#allocation2 + $0xc0] sm:$0xff] %vm428, %v420
    %454 = vst.msk [vmem:[#allocation2 + $0xc8] sm:$0xff] %vm428, %v425
    %v455 = vld [vmem:[#allocation2] sm:$0xff]
    %v456 = vld [vmem:[#allocation2 + $0x8] sm:$0xff]
    %v457 = vld [vmem:[#allocation2 + $0x10] sm:$0xff]
    %v458 = vld [vmem:[#allocation2 + $0x18] sm:$0xff]
    %v459 = vld [vmem:[#allocation2 + $0x20] sm:$0xff]
    %v460 = vld [vmem:[#allocation2 + $0x28] sm:$0xff]
    %v461 = vld [vmem:[#allocation2 + $0x30] sm:$0xff]
    %v462 = vld [vmem:[#allocation2 + $0x38] sm:$0xff]
    %v463 = vld [vmem:[#allocation2 + $0x40] sm:$0xff]
    %v464 = vld [vmem:[#allocation2 + $0x48] sm:$0xff]
    %v465 = vld [vmem:[#allocation2 + $0x50] sm:$0xff]
    %v466 = vld [vmem:[#allocation2 + $0x58] sm:$0xff]
    %v467 = vld [vmem:[#allocation2 + $0x60] sm:$0xff]
    %v468 = vld [vmem:[#allocation2 + $0x68] sm:$0xff]
    %v469 = vld [vmem:[#allocation2 + $0x70] sm:$0xff]
    %v470 = vld [vmem:[#allocation2 + $0x78] sm:$0xff]
    %v471 = vld [vmem:[#allocation2 + $0x80] sm:$0xff]
    %v472 = vld [vmem:[#allocation2 + $0x88] sm:$0xff]
    %v473 = vld [vmem:[#allocation2 + $0x90] sm:$0xff]
    %v474 = vld [vmem:[#allocation2 + $0x98] sm:$0xff]
    %v475 = vld [vmem:[#allocation2 + $0xa0] sm:$0xff]
    %v476 = vld [vmem:[#allocation2 + $0xa8] sm:$0xff]
    %v477 = vld [vmem:[#allocation2 + $0xb0] sm:$0xff]
    %v478 = vld [vmem:[#allocation2 + $0xb8] sm:$0xff]
    %v479 = vld [vmem:[#allocation2 + $0xc0] sm:$0xff]
    %v480 = vld [vmem:[#allocation2 + $0xc8] sm:$0xff]
    %v481 = vld [vmem:[%s0 + $0x8] sm:$0xff]
    %v482 = vld [vmem:[%s0 + $0x10] sm:$0xff]
    %v483 = vld [vmem:[%s0 + $0x18] sm:$0xff]
    %v484 = vld [vmem:[%s0 + $0x20] sm:$0xff]
    %v485 = vld [vmem:[%s0 + $0x28] sm:$0xff]
    %v486 = vld [vmem:[%s0 + $0x30] sm:$0xff]
    %v487 = vld [vmem:[%s0 + $0x38] sm:$0xff]
    %v488 = vld [vmem:[%s0 + $0x40] sm:$0xff]
    %v489 = vld [vmem:[%s0 + $0x48] sm:$0xff]
    %v490 = vld [vmem:[%s0 + $0x50] sm:$0xff]
    %v491 = vld [vmem:[%s0 + $0x58] sm:$0xff]
    %v492 = vld [vmem:[%s0 + $0x60] sm:$0xff]
    %v493 = vld [vmem:[%s0 + $0x68] sm:$0xff]
    %v494 = vld [vmem:[%s0 + $0x70] sm:$0xff]
    %v495 = vld [vmem:[%s0 + $0x78] sm:$0xff]
    %v496 = vld [vmem:[%s0 + $0x80] sm:$0xff]
    %v497 = vld [vmem:[%s0 + $0x88] sm:$0xff]
    %v498 = vld [vmem:[%s0 + $0x90] sm:$0xff]
    %v499 = vld [vmem:[%s0 + $0x98] sm:$0xff]
    %v500 = vld [vmem:[%s0 + $0xa0] sm:$0xff]
    %v501 = vld [vmem:[%s0 + $0xa8] sm:$0xff]
    %v502 = vld [vmem:[%s0 + $0xb0] sm:$0xff]
    %v503 = vld [vmem:[%s0 + $0xb8] sm:$0xff]
    %v504 = vld [vmem:[%s0 + $0xc0] sm:$0xff]
    %v505 = vld [vmem:[%s0 + $0xc8] sm:$0xff]
    %v506 = vld [vmem:[%s0 + $0xd0] sm:$0xff]
    %s507 = scalar_lea.vmem [#allocation4], 32
    %v508 = vld [vmem:[%s507] sm:$0xff]
    %v509 = vld [vmem:[%s507 + $0x8] sm:$0xff]
    %v510 = vld [vmem:[%s507 + $0x10] sm:$0xff]
    %v511 = vld [vmem:[%s507 + $0x18] sm:$0xf]
    %v513 = vsel %vm150, %v481, 0
    %v516 = vsel %vm150, %v482, 0
    %v519 = vsel %vm150, %v483, 0
    %v522 = vsel %vm150, %v484, 0
    %v525 = vsel %vm150, %v485, 0
    %v528 = vsel %vm150, %v486, 0
    %v531 = vsel %vm150, %v487, 0
    %v534 = vsel %vm150, %v488, 0
    %v537 = vsel %vm150, %v489, 0
    %v540 = vsel %vm150, %v490, 0
    %v543 = vsel %vm150, %v491, 0
    %v546 = vsel %vm150, %v492, 0
    %v549 = vsel %vm150, %v493, 0
    %v552 = vsel %vm150, %v494, 0
    %v555 = vsel %vm150, %v495, 0
    %v558 = vsel %vm150, %v496, 0
    %v561 = vsel %vm150, %v497, 0
    %v564 = vsel %vm150, %v498, 0
    %v567 = vsel %vm150, %v499, 0
    %v570 = vsel %vm150, %v500, 0
    %v573 = vsel %vm150, %v501, 0
    %v576 = vsel %vm150, %v502, 0
    %v579 = vsel %vm150, %v503, 0
    %v582 = vsel %vm150, %v504, 0
    %v585 = vsel %vm150, %v505, 0
    %v588 = vsel %vm150, %v506, 0
    %v591 = vsel %vm229, %v511, 0
    %593 = vmatprep.subr.mxu0 0.0
    %594 = vmatpush1.msra.mxu0 0.0
    %595 = vmatprep.subr.mxu0 0.0
    %596 = vmatpush1.msra.mxu0 0.0
    %597 = vmatprep.subr.mxu0 0.0
    %598 = vmatpush1.msra.mxu0 0.0
    %599 = vmatprep.subr.mxu0 0.0
    %600 = vmatpush1.msra.mxu0 0.0
    %601 = vmatprep.subr.mxu0 0.0
    %602 = vmatpush1.msra.mxu0 0.0
    %603 = vmatprep.subr.mxu0 0.0
    %604 = vmatpush1.msra.mxu0 0.0
    %605 = vmatprep.subr.mxu0 0.0
    %606 = vmatpush1.msra.mxu0 0.0
    %607 = vmatprep.subr.mxu0 0.0
    %608 = vmatpush1.msra.mxu0 0.0
    %609 = vmatprep.subr.mxu0 0.0
    %610 = vmatpush1.msra.mxu0 0.0
    %611 = vmatprep.subr.mxu0 0.0
    %612 = vmatpush1.msra.mxu0 0.0
    %613 = vmatprep.subr.mxu0 0.0
    %614 = vmatpush1.msra.mxu0 0.0
    %615 = vmatprep.subr.mxu0 0.0
    %616 = vmatpush1.msra.mxu0 0.0
    %617 = vmatprep.subr.mxu0 0.0
    %618 = vmatpush1.msra.mxu0 %v591
    %619 = vmatprep.subr.mxu0 0.0
    %620 = vmatpush1.msra.mxu0 %v510
    %621 = vmatprep.subr.mxu0 0.0
    %622 = vmatpush1.msra.mxu0 %v509
    %623 = vmatprep.subr.mxu0 0.0
    %624 = vmatpush1.msra.mxu0 %v508
    %625 = vmatprep.subr.mxu0 0.0
    %626 = vmatpush2.msra.mxu0 0.0
    %627 = vmatprep.subr.mxu0 0.0
    %628 = vmatpush2.msra.mxu0 0.0
    %629 = vmatprep.subr.mxu0 0.0
    %630 = vmatpush2.msra.mxu0 0.0
    %631 = vmatprep.subr.mxu0 0.0
    %632 = vmatpush2.msra.mxu0 0.0
    %633 = vmatprep.subr.mxu0 0.0
    %634 = vmatpush2.msra.mxu0 0.0
    %635 = vmatprep.subr.mxu0 0.0
    %636 = vmatpush2.msra.mxu0 0.0
    %637 = vmatprep.subr.mxu0 0.0
    %638 = vmatpush2.msra.mxu0 0.0
    %639 = vmatprep.subr.mxu0 0.0
    %640 = vmatpush2.msra.mxu0 0.0
    %641 = vmatprep.subr.mxu0 0.0
    %642 = vmatpush2.msra.mxu0 0.0
    %643 = vmatprep.subr.mxu0 0.0
    %644 = vmatpush2.msra.mxu0 0.0
    %645 = vmatprep.subr.mxu0 0.0
    %646 = vmatpush2.msra.mxu0 0.0
    %647 = vmatprep.subr.mxu0 0.0
    %648 = vmatpush2.msra.mxu0 0.0
    %649 = vmatprep.subr.mxu0 0.0
    %650 = vmatpush2.msra.mxu0 0.0
    %651 = vmatprep.subr.mxu0 0.0
    %652 = vmatpush2.msra.mxu0 0.0
    %653 = vmatprep.subr.mxu0 0.0
    %654 = vmatpush2.msra.mxu0 0.0
    %655 = vmatprep.subr.mxu0 0.0
    %656 = vmatpush2.msra.mxu0 0.0
    %657 = vmatprep.mubr.f32.mxu0 0.0
    %658 = vmatmul.mubr.f32.gmra.mxu0 %v513
    %v659 = vpop.f32.mrf.mxu0
    %v660 = vadd.f32 0.0, %v659
    %v661 = vpop.f32.mrf.mxu0
    %662 = vmatprep.mubr.f32.mxu0 0.0
    %663 = vmatmul.mubr.f32.gmra.mxu0 %v516
    %v664 = vpop.f32.mrf.mxu0
    %v665 = vadd.f32 0.0, %v664
    %v666 = vpop.f32.mrf.mxu0
    %667 = vmatprep.mubr.f32.mxu0 0.0
    %668 = vmatmul.mubr.f32.gmra.mxu0 %v519
    %v669 = vpop.f32.mrf.mxu0
    %v670 = vadd.f32 0.0, %v669
    %v671 = vpop.f32.mrf.mxu0
    %672 = vmatprep.mubr.f32.mxu0 0.0
    %673 = vmatmul.mubr.f32.gmra.mxu0 %v522
    %v674 = vpop.f32.mrf.mxu0
    %v675 = vadd.f32 0.0, %v674
    %v676 = vpop.f32.mrf.mxu0
    %677 = vmatprep.mubr.f32.mxu0 0.0
    %678 = vmatmul.mubr.f32.gmra.mxu0 %v525
    %v679 = vpop.f32.mrf.mxu0
    %v680 = vadd.f32 0.0, %v679
    %v681 = vpop.f32.mrf.mxu0
    %682 = vmatprep.mubr.f32.mxu0 0.0
    %683 = vmatmul.mubr.f32.gmra.mxu0 %v528
    %v684 = vpop.f32.mrf.mxu0
    %v685 = vadd.f32 0.0, %v684
    %v686 = vpop.f32.mrf.mxu0
    %687 = vmatprep.mubr.f32.mxu0 0.0
    %688 = vmatmul.mubr.f32.gmra.mxu0 %v531
    %v689 = vpop.f32.mrf.mxu0
    %v690 = vadd.f32 0.0, %v689
    %v691 = vpop.f32.mrf.mxu0
    %692 = vmatprep.mubr.f32.mxu0 0.0
    %693 = vmatmul.mubr.f32.gmra.mxu0 %v534
    %v694 = vpop.f32.mrf.mxu0
    %v695 = vadd.f32 0.0, %v694
    %v696 = vpop.f32.mrf.mxu0
    %697 = vmatprep.mubr.f32.mxu0 0.0
    %698 = vmatmul.mubr.f32.gmra.mxu0 %v537
    %v699 = vpop.f32.mrf.mxu0
    %v700 = vadd.f32 0.0, %v699
    %v701 = vpop.f32.mrf.mxu0
    %702 = vmatprep.mubr.f32.mxu0 0.0
    %703 = vmatmul.mubr.f32.gmra.mxu0 %v540
    %v704 = vpop.f32.mrf.mxu0
    %v705 = vadd.f32 0.0, %v704
    %v706 = vpop.f32.mrf.mxu0
    %707 = vmatprep.mubr.f32.mxu0 0.0
    %708 = vmatmul.mubr.f32.gmra.mxu0 %v543
    %v709 = vpop.f32.mrf.mxu0
    %v710 = vadd.f32 0.0, %v709
    %v711 = vpop.f32.mrf.mxu0
    %712 = vmatprep.mubr.f32.mxu0 0.0
    %713 = vmatmul.mubr.f32.gmra.mxu0 %v546
    %v714 = vpop.f32.mrf.mxu0
    %v715 = vadd.f32 0.0, %v714
    %v716 = vpop.f32.mrf.mxu0
    %717 = vmatprep.mubr.f32.mxu0 0.0
    %718 = vmatmul.mubr.f32.gmra.mxu0 %v549
    %v719 = vpop.f32.mrf.mxu0
    %v720 = vadd.f32 0.0, %v719
    %v721 = vpop.f32.mrf.mxu0
    %722 = vmatprep.mubr.f32.mxu0 0.0
    %723 = vmatmul.mubr.f32.gmra.mxu0 %v552
    %v724 = vpop.f32.mrf.mxu0
    %v725 = vadd.f32 0.0, %v724
    %v726 = vpop.f32.mrf.mxu0
    %727 = vmatprep.mubr.f32.mxu0 0.0
    %728 = vmatmul.mubr.f32.gmra.mxu0 %v555
    %v729 = vpop.f32.mrf.mxu0
    %v730 = vadd.f32 0.0, %v729
    %v731 = vpop.f32.mrf.mxu0
    %732 = vmatprep.mubr.f32.mxu0 0.0
    %733 = vmatmul.mubr.f32.gmra.mxu0 %v558
    %v734 = vpop.f32.mrf.mxu0
    %v735 = vadd.f32 0.0, %v734
    %v736 = vpop.f32.mrf.mxu0
    %737 = vmatprep.mubr.f32.mxu0 0.0
    %738 = vmatmul.mubr.f32.gmra.mxu0 %v561
    %v739 = vpop.f32.mrf.mxu0
    %v740 = vadd.f32 0.0, %v739
    %v741 = vpop.f32.mrf.mxu0
    %742 = vmatprep.mubr.f32.mxu0 0.0
    %743 = vmatmul.mubr.f32.gmra.mxu0 %v564
    %v744 = vpop.f32.mrf.mxu0
    %v745 = vadd.f32 0.0, %v744
    %v746 = vpop.f32.mrf.mxu0
    %747 = vmatprep.mubr.f32.mxu0 0.0
    %748 = vmatmul.mubr.f32.gmra.mxu0 %v567
    %v749 = vpop.f32.mrf.mxu0
    %v750 = vadd.f32 0.0, %v749
    %v751 = vpop.f32.mrf.mxu0
    %752 = vmatprep.mubr.f32.mxu0 0.0
    %753 = vmatmul.mubr.f32.gmra.mxu0 %v570
    %v754 = vpop.f32.mrf.mxu0
    %v755 = vadd.f32 0.0, %v754
    %v756 = vpop.f32.mrf.mxu0
    %757 = vmatprep.mubr.f32.mxu0 0.0
    %758 = vmatmul.mubr.f32.gmra.mxu0 %v573
    %v759 = vpop.f32.mrf.mxu0
    %v760 = vadd.f32 0.0, %v759
    %v761 = vpop.f32.mrf.mxu0
    %762 = vmatprep.mubr.f32.mxu0 0.0
    %763 = vmatmul.mubr.f32.gmra.mxu0 %v576
    %v764 = vpop.f32.mrf.mxu0
    %v765 = vadd.f32 0.0, %v764
    %v766 = vpop.f32.mrf.mxu0
    %767 = vmatprep.mubr.f32.mxu0 0.0
    %768 = vmatmul.mubr.f32.gmra.mxu0 %v579
    %v769 = vpop.f32.mrf.mxu0
    %v770 = vadd.f32 0.0, %v769
    %v771 = vpop.f32.mrf.mxu0
    %772 = vmatprep.mubr.f32.mxu0 0.0
    %773 = vmatmul.mubr.f32.gmra.mxu0 %v582
    %v774 = vpop.f32.mrf.mxu0
    %v775 = vadd.f32 0.0, %v774
    %v776 = vpop.f32.mrf.mxu0
    %777 = vmatprep.mubr.f32.mxu0 0.0
    %778 = vmatmul.mubr.f32.gmra.mxu0 %v585
    %v779 = vpop.f32.mrf.mxu0
    %v780 = vadd.f32 0.0, %v779
    %v781 = vpop.f32.mrf.mxu0
    %782 = vmatprep.mubr.f32.mxu0 0.0
    %783 = vmatmul.mubr.f32.gmra.mxu0 %v588
    %v784 = vpop.f32.mrf.mxu0
    %v785 = vadd.f32 0.0, %v784
    %v786 = vpop.f32.mrf.mxu0
    %787 = vdwg.mxu0
    %v788 = vadd.f32 %v455, %v660
    %v789 = vadd.f32 %v456, %v665
    %v790 = vadd.f32 %v457, %v670
    %v791 = vadd.f32 %v458, %v675
    %v792 = vadd.f32 %v459, %v680
    %v793 = vadd.f32 %v460, %v685
    %v794 = vadd.f32 %v461, %v690
    %v795 = vadd.f32 %v462, %v695
    %v796 = vadd.f32 %v463, %v700
    %v797 = vadd.f32 %v464, %v705
    %v798 = vadd.f32 %v465, %v710
    %v799 = vadd.f32 %v466, %v715
    %v800 = vadd.f32 %v467, %v720
    %v801 = vadd.f32 %v468, %v725
    %v802 = vadd.f32 %v469, %v730
    %v803 = vadd.f32 %v470, %v735
    %v804 = vadd.f32 %v471, %v740
    %v805 = vadd.f32 %v472, %v745
    %v806 = vadd.f32 %v473, %v750
    %v807 = vadd.f32 %v474, %v755
    %v808 = vadd.f32 %v475, %v760
    %v809 = vadd.f32 %v476, %v765
    %v810 = vadd.f32 %v477, %v770
    %v811 = vadd.f32 %v478, %v775
    %v812 = vadd.f32 %v479, %v780
    %v813 = vadd.f32 %v480, %v785
    %814 = vst.msk [vmem:[#allocation2] sm:$0xff] %vm428, %v788
    %815 = vst.msk [vmem:[#allocation2 + $0x8] sm:$0xff] %vm428, %v789
    %816 = vst.msk [vmem:[#allocation2 + $0x10] sm:$0xff] %vm428, %v790
    %817 = vst.msk [vmem:[#allocation2 + $0x18] sm:$0xff] %vm428, %v791
    %818 = vst.msk [vmem:[#allocation2 + $0x20] sm:$0xff] %vm428, %v792
    %819 = vst.msk [vmem:[#allocation2 + $0x28] sm:$0xff] %vm428, %v793
    %820 = vst.msk [vmem:[#allocation2 + $0x30] sm:$0xff] %vm428, %v794
    %821 = vst.msk [vmem:[#allocation2 + $0x38] sm:$0xff] %vm428, %v795
    %822 = vst.msk [vmem:[#allocation2 + $0x40] sm:$0xff] %vm428, %v796
    %823 = vst.msk [vmem:[#allocation2 + $0x48] sm:$0xff] %vm428, %v797
    %824 = vst.msk [vmem:[#allocation2 + $0x50] sm:$0xff] %vm428, %v798
    %825 = vst.msk [vmem:[#allocation2 + $0x58] sm:$0xff] %vm428, %v799
    %826 = vst.msk [vmem:[#allocation2 + $0x60] sm:$0xff] %vm428, %v800
    %827 = vst.msk [vmem:[#allocation2 + $0x68] sm:$0xff] %vm428, %v801
    %828 = vst.msk [vmem:[#allocation2 + $0x70] sm:$0xff] %vm428, %v802
    %829 = vst.msk [vmem:[#allocation2 + $0x78] sm:$0xff] %vm428, %v803
    %830 = vst.msk [vmem:[#allocation2 + $0x80] sm:$0xff] %vm428, %v804
    %831 = vst.msk [vmem:[#allocation2 + $0x88] sm:$0xff] %vm428, %v805
    %832 = vst.msk [vmem:[#allocation2 + $0x90] sm:$0xff] %vm428, %v806
    %833 = vst.msk [vmem:[#allocation2 + $0x98] sm:$0xff] %vm428, %v807
    %834 = vst.msk [vmem:[#allocation2 + $0xa0] sm:$0xff] %vm428, %v808
    %835 = vst.msk [vmem:[#allocation2 + $0xa8] sm:$0xff] %vm428, %v809
    %836 = vst.msk [vmem:[#allocation2 + $0xb0] sm:$0xff] %vm428, %v810
    %837 = vst.msk [vmem:[#allocation2 + $0xb8] sm:$0xff] %vm428, %v811
    %838 = vst.msk [vmem:[#allocation2 + $0xc0] sm:$0xff] %vm428, %v812
    %839 = vst.msk [vmem:[#allocation2 + $0xc8] sm:$0xff] %vm428, %v813
    %v840 = vld [vmem:[#allocation2] sm:$0xff]
    %v841 = vld [vmem:[#allocation2 + $0x8] sm:$0xff]
    %v842 = vld [vmem:[#allocation2 + $0x10] sm:$0xff]
    %v843 = vld [vmem:[#allocation2 + $0x18] sm:$0xff]
    %v844 = vld [vmem:[#allocation2 + $0x20] sm:$0xff]
    %v845 = vld [vmem:[#allocation2 + $0x28] sm:$0xff]
    %v846 = vld [vmem:[#allocation2 + $0x30] sm:$0xff]
    %v847 = vld [vmem:[#allocation2 + $0x38] sm:$0xff]
    %v848 = vld [vmem:[#allocation2 + $0x40] sm:$0xff]
    %v849 = vld [vmem:[#allocation2 + $0x48] sm:$0xff]
    %v850 = vld [vmem:[#allocation2 + $0x50] sm:$0xff]
    %v851 = vld [vmem:[#allocation2 + $0x58] sm:$0xff]
    %v852 = vld [vmem:[#allocation2 + $0x60] sm:$0xff]
    %v853 = vld [vmem:[#allocation2 + $0x68] sm:$0xff]
    %v854 = vld [vmem:[#allocation2 + $0x70] sm:$0xff]
    %v855 = vld [vmem:[#allocation2 + $0x78] sm:$0xff]
    %v856 = vld [vmem:[#allocation2 + $0x80] sm:$0xff]
    %v857 = vld [vmem:[#allocation2 + $0x88] sm:$0xff]
    %v858 = vld [vmem:[#allocation2 + $0x90] sm:$0xff]
    %v859 = vld [vmem:[#allocation2 + $0x98] sm:$0xff]
    %v860 = vld [vmem:[#allocation2 + $0xa0] sm:$0xff]
    %v861 = vld [vmem:[#allocation2 + $0xa8] sm:$0xff]
    %v862 = vld [vmem:[#allocation2 + $0xb0] sm:$0xff]
    %v863 = vld [vmem:[#allocation2 + $0xb8] sm:$0xff]
    %v864 = vld [vmem:[#allocation2 + $0xc0] sm:$0xff]
    %v865 = vld [vmem:[#allocation2 + $0xc8] sm:$0xff]
    %v866 = vld [vmem:[%s0 + $0x10] sm:$0xff]
    %v867 = vld [vmem:[%s0 + $0x18] sm:$0xff]
    %v868 = vld [vmem:[%s0 + $0x20] sm:$0xff]
    %v869 = vld [vmem:[%s0 + $0x28] sm:$0xff]
    %v870 = vld [vmem:[%s0 + $0x30] sm:$0xff]
    %v871 = vld [vmem:[%s0 + $0x38] sm:$0xff]
    %v872 = vld [vmem:[%s0 + $0x40] sm:$0xff]
    %v873 = vld [vmem:[%s0 + $0x48] sm:$0xff]
    %v874 = vld [vmem:[%s0 + $0x50] sm:$0xff]
    %v875 = vld [vmem:[%s0 + $0x58] sm:$0xff]
    %v876 = vld [vmem:[%s0 + $0x60] sm:$0xff]
    %v877 = vld [vmem:[%s0 + $0x68] sm:$0xff]
    %v878 = vld [vmem:[%s0 + $0x70] sm:$0xff]
    %v879 = vld [vmem:[%s0 + $0x78] sm:$0xff]
    %v880 = vld [vmem:[%s0 + $0x80] sm:$0xff]
    %v881 = vld [vmem:[%s0 + $0x88] sm:$0xff]
    %v882 = vld [vmem:[%s0 + $0x90] sm:$0xff]
    %v883 = vld [vmem:[%s0 + $0x98] sm:$0xff]
    %v884 = vld [vmem:[%s0 + $0xa0] sm:$0xff]
    %v885 = vld [vmem:[%s0 + $0xa8] sm:$0xff]
    %v886 = vld [vmem:[%s0 + $0xb0] sm:$0xff]
    %v887 = vld [vmem:[%s0 + $0xb8] sm:$0xff]
    %v888 = vld [vmem:[%s0 + $0xc0] sm:$0xff]
    %v889 = vld [vmem:[%s0 + $0xc8] sm:$0xff]
    %v890 = vld [vmem:[%s0 + $0xd0] sm:$0xff]
    %v891 = vld [vmem:[%s0 + $0xd8] sm:$0xff]
    %s892 = scalar_lea.vmem [#allocation4], 64
    %v893 = vld [vmem:[%s892] sm:$0xff]
    %v894 = vld [vmem:[%s892 + $0x8] sm:$0xff]
    %v895 = vld [vmem:[%s892 + $0x10] sm:$0xff]
    %v896 = vld [vmem:[%s892 + $0x18] sm:$0xf]
    %v898 = vsel %vm150, %v866, 0
    %v901 = vsel %vm150, %v867, 0
    %v904 = vsel %vm150, %v868, 0
    %v907 = vsel %vm150, %v869, 0
    %v910 = vsel %vm150, %v870, 0
    %v913 = vsel %vm150, %v871, 0
    %v916 = vsel %vm150, %v872, 0
    %v919 = vsel %vm150, %v873, 0
    %v922 = vsel %vm150, %v874, 0
    %v925 = vsel %vm150, %v875, 0
    %v928 = vsel %vm150, %v876, 0
    %v931 = vsel %vm150, %v877, 0
    %v934 = vsel %vm150, %v878, 0
    %v937 = vsel %vm150, %v879, 0
    %v940 = vsel %vm150, %v880, 0
    %v943 = vsel %vm150, %v881, 0
    %v946 = vsel %vm150, %v882, 0
    %v949 = vsel %vm150, %v883, 0
    %v952 = vsel %vm150, %v884, 0
    %v955 = vsel %vm150, %v885, 0
    %v958 = vsel %vm150, %v886, 0
    %v961 = vsel %vm150, %v887, 0
    %v964 = vsel %vm150, %v888, 0
    %v967 = vsel %vm150, %v889, 0
    %v970 = vsel %vm150, %v890, 0
    %v973 = vsel %vm150, %v891, 0
    %v976 = vsel %vm229, %v896, 0
    %978 = vmatprep.subr.mxu0 0.0
    %979 = vmatpush1.msra.mxu0 0.0
    %980 = vmatprep.subr.mxu0 0.0
    %981 = vmatpush1.msra.mxu0 0.0
    %982 = vmatprep.subr.mxu0 0.0
    %983 = vmatpush1.msra.mxu0 0.0
    %984 = vmatprep.subr.mxu0 0.0
    %985 = vmatpush1.msra.mxu0 0.0
    %986 = vmatprep.subr.mxu0 0.0
    %987 = vmatpush1.msra.mxu0 0.0
    %988 = vmatprep.subr.mxu0 0.0
    %989 = vmatpush1.msra.mxu0 0.0
    %990 = vmatprep.subr.mxu0 0.0
    %991 = vmatpush1.msra.mxu0 0.0
    %992 = vmatprep.subr.mxu0 0.0
    %993 = vmatpush1.msra.mxu0 0.0
    %994 = vmatprep.subr.mxu0 0.0
    %995 = vmatpush1.msra.mxu0 0.0
    %996 = vmatprep.subr.mxu0 0.0
    %997 = vmatpush1.msra.mxu0 0.0
    %998 = vmatprep.subr.mxu0 0.0
    %999 = vmatpush1.msra.mxu0 0.0
    %1000 = vmatprep.subr.mxu0 0.0
    %1001 = vmatpush1.msra.mxu0 0.0
    %1002 = vmatprep.subr.mxu0 0.0
    %1003 = vmatpush1.msra.mxu0 %v976
    %1004 = vmatprep.subr.mxu0 0.0
    %1005 = vmatpush1.msra.mxu0 %v895
    %1006 = vmatprep.subr.mxu0 0.0
    %1007 = vmatpush1.msra.mxu0 %v894
    %1008 = vmatprep.subr.mxu0 0.0
    %1009 = vmatpush1.msra.mxu0 %v893
    %1010 = vmatprep.subr.mxu0 0.0
    %1011 = vmatpush2.msra.mxu0 0.0
    %1012 = vmatprep.subr.mxu0 0.0
    %1013 = vmatpush2.msra.mxu0 0.0
    %1014 = vmatprep.subr.mxu0 0.0
    %1015 = vmatpush2.msra.mxu0 0.0
    %1016 = vmatprep.subr.mxu0 0.0
    %1017 = vmatpush2.msra.mxu0 0.0
    %1018 = vmatprep.subr.mxu0 0.0
    %1019 = vmatpush2.msra.mxu0 0.0
    %1020 = vmatprep.subr.mxu0 0.0
    %1021 = vmatpush2.msra.mxu0 0.0
    %1022 = vmatprep.subr.mxu0 0.0
    %1023 = vmatpush2.msra.mxu0 0.0
    %1024 = vmatprep.subr.mxu0 0.0
    %1025 = vmatpush2.msra.mxu0 0.0
    %1026 = vmatprep.subr.mxu0 0.0
    %1027 = vmatpush2.msra.mxu0 0.0
    %1028 = vmatprep.subr.mxu0 0.0
    %1029 = vmatpush2.msra.mxu0 0.0
    %1030 = vmatprep.subr.mxu0 0.0
    %1031 = vmatpush2.msra.mxu0 0.0
    %1032 = vmatprep.subr.mxu0 0.0
    %1033 = vmatpush2.msra.mxu0 0.0
    %1034 = vmatprep.subr.mxu0 0.0
    %1035 = vmatpush2.msra.mxu0 0.0
    %1036 = vmatprep.subr.mxu0 0.0
    %1037 = vmatpush2.msra.mxu0 0.0
    %1038 = vmatprep.subr.mxu0 0.0
    %1039 = vmatpush2.msra.mxu0 0.0
    %1040 = vmatprep.subr.mxu0 0.0
    %1041 = vmatpush2.msra.mxu0 0.0
    %1042 = vmatprep.mubr.f32.mxu0 0.0
    %1043 = vmatmul.mubr.f32.gmra.mxu0 %v898
    %v1044 = vpop.f32.mrf.mxu0
    %v1045 = vadd.f32 0.0, %v1044
    %v1046 = vpop.f32.mrf.mxu0
    %1047 = vmatprep.mubr.f32.mxu0 0.0
    %1048 = vmatmul.mubr.f32.gmra.mxu0 %v901
    %v1049 = vpop.f32.mrf.mxu0
    %v1050 = vadd.f32 0.0, %v1049
    %v1051 = vpop.f32.mrf.mxu0
    %1052 = vmatprep.mubr.f32.mxu0 0.0
    %1053 = vmatmul.mubr.f32.gmra.mxu0 %v904
    %v1054 = vpop.f32.mrf.mxu0
    %v1055 = vadd.f32 0.0, %v1054
    %v1056 = vpop.f32.mrf.mxu0
    %1057 = vmatprep.mubr.f32.mxu0 0.0
    %1058 = vmatmul.mubr.f32.gmra.mxu0 %v907
    %v1059 = vpop.f32.mrf.mxu0
    %v1060 = vadd.f32 0.0, %v1059
    %v1061 = vpop.f32.mrf.mxu0
    %1062 = vmatprep.mubr.f32.mxu0 0.0
    %1063 = vmatmul.mubr.f32.gmra.mxu0 %v910
    %v1064 = vpop.f32.mrf.mxu0
    %v1065 = vadd.f32 0.0, %v1064
    %v1066 = vpop.f32.mrf.mxu0
    %1067 = vmatprep.mubr.f32.mxu0 0.0
    %1068 = vmatmul.mubr.f32.gmra.mxu0 %v913
    %v1069 = vpop.f32.mrf.mxu0
    %v1070 = vadd.f32 0.0, %v1069
    %v1071 = vpop.f32.mrf.mxu0
    %1072 = vmatprep.mubr.f32.mxu0 0.0
    %1073 = vmatmul.mubr.f32.gmra.mxu0 %v916
    %v1074 = vpop.f32.mrf.mxu0
    %v1075 = vadd.f32 0.0, %v1074
    %v1076 = vpop.f32.mrf.mxu0
    %1077 = vmatprep.mubr.f32.mxu0 0.0
    %1078 = vmatmul.mubr.f32.gmra.mxu0 %v919
    %v1079 = vpop.f32.mrf.mxu0
    %v1080 = vadd.f32 0.0, %v1079
    %v1081 = vpop.f32.mrf.mxu0
    %1082 = vmatprep.mubr.f32.mxu0 0.0
    %1083 = vmatmul.mubr.f32.gmra.mxu0 %v922
    %v1084 = vpop.f32.mrf.mxu0
    %v1085 = vadd.f32 0.0, %v1084
    %v1086 = vpop.f32.mrf.mxu0
    %1087 = vmatprep.mubr.f32.mxu0 0.0
    %1088 = vmatmul.mubr.f32.gmra.mxu0 %v925
    %v1089 = vpop.f32.mrf.mxu0
    %v1090 = vadd.f32 0.0, %v1089
    %v1091 = vpop.f32.mrf.mxu0
    %1092 = vmatprep.mubr.f32.mxu0 0.0
    %1093 = vmatmul.mubr.f32.gmra.mxu0 %v928
    %v1094 = vpop.f32.mrf.mxu0
    %v1095 = vadd.f32 0.0, %v1094
    %v1096 = vpop.f32.mrf.mxu0
    %1097 = vmatprep.mubr.f32.mxu0 0.0
    %1098 = vmatmul.mubr.f32.gmra.mxu0 %v931
    %v1099 = vpop.f32.mrf.mxu0
    %v1100 = vadd.f32 0.0, %v1099
    %v1101 = vpop.f32.mrf.mxu0
    %1102 = vmatprep.mubr.f32.mxu0 0.0
    %1103 = vmatmul.mubr.f32.gmra.mxu0 %v934
    %v1104 = vpop.f32.mrf.mxu0
    %v1105 = vadd.f32 0.0, %v1104
    %v1106 = vpop.f32.mrf.mxu0
    %1107 = vmatprep.mubr.f32.mxu0 0.0
    %1108 = vmatmul.mubr.f32.gmra.mxu0 %v937
    %v1109 = vpop.f32.mrf.mxu0
    %v1110 = vadd.f32 0.0, %v1109
    %v1111 = vpop.f32.mrf.mxu0
    %1112 = vmatprep.mubr.f32.mxu0 0.0
    %1113 = vmatmul.mubr.f32.gmra.mxu0 %v940
    %v1114 = vpop.f32.mrf.mxu0
    %v1115 = vadd.f32 0.0, %v1114
    %v1116 = vpop.f32.mrf.mxu0
    %1117 = vmatprep.mubr.f32.mxu0 0.0
    %1118 = vmatmul.mubr.f32.gmra.mxu0 %v943
    %v1119 = vpop.f32.mrf.mxu0
    %v1120 = vadd.f32 0.0, %v1119
    %v1121 = vpop.f32.mrf.mxu0
    %1122 = vmatprep.mubr.f32.mxu0 0.0
    %1123 = vmatmul.mubr.f32.gmra.mxu0 %v946
    %v1124 = vpop.f32.mrf.mxu0
    %v1125 = vadd.f32 0.0, %v1124
    %v1126 = vpop.f32.mrf.mxu0
    %1127 = vmatprep.mubr.f32.mxu0 0.0
    %1128 = vmatmul.mubr.f32.gmra.mxu0 %v949
    %v1129 = vpop.f32.mrf.mxu0
    %v1130 = vadd.f32 0.0, %v1129
    %v1131 = vpop.f32.mrf.mxu0
    %1132 = vmatprep.mubr.f32.mxu0 0.0
    %1133 = vmatmul.mubr.f32.gmra.mxu0 %v952
    %v1134 = vpop.f32.mrf.mxu0
    %v1135 = vadd.f32 0.0, %v1134
    %v1136 = vpop.f32.mrf.mxu0
    %1137 = vmatprep.mubr.f32.mxu0 0.0
    %1138 = vmatmul.mubr.f32.gmra.mxu0 %v955
    %v1139 = vpop.f32.mrf.mxu0
    %v1140 = vadd.f32 0.0, %v1139
    %v1141 = vpop.f32.mrf.mxu0
    %1142 = vmatprep.mubr.f32.mxu0 0.0
    %1143 = vmatmul.mubr.f32.gmra.mxu0 %v958
    %v1144 = vpop.f32.mrf.mxu0
    %v1145 = vadd.f32 0.0, %v1144
    %v1146 = vpop.f32.mrf.mxu0
    %1147 = vmatprep.mubr.f32.mxu0 0.0
    %1148 = vmatmul.mubr.f32.gmra.mxu0 %v961
    %v1149 = vpop.f32.mrf.mxu0
    %v1150 = vadd.f32 0.0, %v1149
    %v1151 = vpop.f32.mrf.mxu0
    %1152 = vmatprep.mubr.f32.mxu0 0.0
    %1153 = vmatmul.mubr.f32.gmra.mxu0 %v964
    %v1154 = vpop.f32.mrf.mxu0
    %v1155 = vadd.f32 0.0, %v1154
    %v1156 = vpop.f32.mrf.mxu0
    %1157 = vmatprep.mubr.f32.mxu0 0.0
    %1158 = vmatmul.mubr.f32.gmra.mxu0 %v967
    %v1159 = vpop.f32.mrf.mxu0
    %v1160 = vadd.f32 0.0, %v1159
    %v1161 = vpop.f32.mrf.mxu0
    %1162 = vmatprep.mubr.f32.mxu0 0.0
    %1163 = vmatmul.mubr.f32.gmra.mxu0 %v970
    %v1164 = vpop.f32.mrf.mxu0
    %v1165 = vadd.f32 0.0, %v1164
    %v1166 = vpop.f32.mrf.mxu0
    %1167 = vmatprep.mubr.f32.mxu0 0.0
    %1168 = vmatmul.mubr.f32.gmra.mxu0 %v973
    %v1169 = vpop.f32.mrf.mxu0
    %v1170 = vadd.f32 0.0, %v1169
    %v1171 = vpop.f32.mrf.mxu0
    %1172 = vdwg.mxu0
    %v1173 = vadd.f32 %v840, %v1045
    %v1174 = vadd.f32 %v841, %v1050
    %v1175 = vadd.f32 %v842, %v1055
    %v1176 = vadd.f32 %v843, %v1060
    %v1177 = vadd.f32 %v844, %v1065
    %v1178 = vadd.f32 %v845, %v1070
    %v1179 = vadd.f32 %v846, %v1075
    %v1180 = vadd.f32 %v847, %v1080
    %v1181 = vadd.f32 %v848, %v1085
    %v1182 = vadd.f32 %v849, %v1090
    %v1183 = vadd.f32 %v850, %v1095
    %v1184 = vadd.f32 %v851, %v1100
    %v1185 = vadd.f32 %v852, %v1105
    %v1186 = vadd.f32 %v853, %v1110
    %v1187 = vadd.f32 %v854, %v1115
    %v1188 = vadd.f32 %v855, %v1120
    %v1189 = vadd.f32 %v856, %v1125
    %v1190 = vadd.f32 %v857, %v1130
    %v1191 = vadd.f32 %v858, %v1135
    %v1192 = vadd.f32 %v859, %v1140
    %v1193 = vadd.f32 %v860, %v1145
    %v1194 = vadd.f32 %v861, %v1150
    %v1195 = vadd.f32 %v862, %v1155
    %v1196 = vadd.f32 %v863, %v1160
    %v1197 = vadd.f32 %v864, %v1165
    %v1198 = vadd.f32 %v865, %v1170
    %1199 = vst.msk [vmem:[#allocation2] sm:$0xff] %vm428, %v1173
    %1200 = vst.msk [vmem:[#allocation2 + $0x8] sm:$0xff] %vm428, %v1174
    %1201 = vst.msk [vmem:[#allocation2 + $0x10] sm:$0xff] %vm428, %v1175
    %1202 = vst.msk [vmem:[#allocation2 + $0x18] sm:$0xff] %vm428, %v1176
    %1203 = vst.msk [vmem:[#allocation2 + $0x20] sm:$0xff] %vm428, %v1177
    %1204 = vst.msk [vmem:[#allocation2 + $0x28] sm:$0xff] %vm428, %v1178
    %1205 = vst.msk [vmem:[#allocation2 + $0x30] sm:$0xff] %vm428, %v1179
    %1206 = vst.msk [vmem:[#allocation2 + $0x38] sm:$0xff] %vm428, %v1180
    %1207 = vst.msk [vmem:[#allocation2 + $0x40] sm:$0xff] %vm428, %v1181
    %1208 = vst.msk [vmem:[#allocation2 + $0x48] sm:$0xff] %vm428, %v1182
    %1209 = vst.msk [vmem:[#allocation2 + $0x50] sm:$0xff] %vm428, %v1183
    %1210 = vst.msk [vmem:[#allocation2 + $0x58] sm:$0xff] %vm428, %v1184
    %1211 = vst.msk [vmem:[#allocation2 + $0x60] sm:$0xff] %vm428, %v1185
    %1212 = vst.msk [vmem:[#allocation2 + $0x68] sm:$0xff] %vm428, %v1186
    %1213 = vst.msk [vmem:[#allocation2 + $0x70] sm:$0xff] %vm428, %v1187
    %1214 = vst.msk [vmem:[#allocation2 + $0x78] sm:$0xff] %vm428, %v1188
    %1215 = vst.msk [vmem:[#allocation2 + $0x80] sm:$0xff] %vm428, %v1189
    %1216 = vst.msk [vmem:[#allocation2 + $0x88] sm:$0xff] %vm428, %v1190
    %1217 = vst.msk [vmem:[#allocation2 + $0x90] sm:$0xff] %vm428, %v1191
    %1218 = vst.msk [vmem:[#allocation2 + $0x98] sm:$0xff] %vm428, %v1192
    %1219 = vst.msk [vmem:[#allocation2 + $0xa0] sm:$0xff] %vm428, %v1193
    %1220 = vst.msk [vmem:[#allocation2 + $0xa8] sm:$0xff] %vm428, %v1194
    %1221 = vst.msk [vmem:[#allocation2 + $0xb0] sm:$0xff] %vm428, %v1195
    %1222 = vst.msk [vmem:[#allocation2 + $0xb8] sm:$0xff] %vm428, %v1196
    %1223 = vst.msk [vmem:[#allocation2 + $0xc0] sm:$0xff] %vm428, %v1197
    %1224 = vst.msk [vmem:[#allocation2 + $0xc8] sm:$0xff] %vm428, %v1198
    %v1225 = vld [vmem:[#allocation2] sm:$0xff]
    %v1226 = vld [vmem:[#allocation2 + $0x8] sm:$0xff]
    %v1227 = vld [vmem:[#allocation2 + $0x10] sm:$0xff]
    %v1228 = vld [vmem:[#allocation2 + $0x18] sm:$0xff]
    %v1229 = vld [vmem:[#allocation2 + $0x20] sm:$0xff]
    %v1230 = vld [vmem:[#allocation2 + $0x28] sm:$0xff]
    %v1231 = vld [vmem:[#allocation2 + $0x30] sm:$0xff]
    %v1232 = vld [vmem:[#allocation2 + $0x38] sm:$0xff]
    %v1233 = vld [vmem:[#allocation2 + $0x40] sm:$0xff]
    %v1234 = vld [vmem:[#allocation2 + $0x48] sm:$0xff]
    %v1235 = vld [vmem:[#allocation2 + $0x50] sm:$0xff]
    %v1236 = vld [vmem:[#allocation2 + $0x58] sm:$0xff]
    %v1237 = vld [vmem:[#allocation2 + $0x60] sm:$0xff]
    %v1238 = vld [vmem:[#allocation2 + $0x68] sm:$0xff]
    %v1239 = vld [vmem:[#allocation2 + $0x70] sm:$0xff]
    %v1240 = vld [vmem:[#allocation2 + $0x78] sm:$0xff]
    %v1241 = vld [vmem:[#allocation2 + $0x80] sm:$0xff]
    %v1242 = vld [vmem:[#allocation2 + $0x88] sm:$0xff]
    %v1243 = vld [vmem:[#allocation2 + $0x90] sm:$0xff]
    %v1244 = vld [vmem:[#allocation2 + $0x98] sm:$0xff]
    %v1245 = vld [vmem:[#allocation2 + $0xa0] sm:$0xff]
    %v1246 = vld [vmem:[#allocation2 + $0xa8] sm:$0xff]
    %v1247 = vld [vmem:[#allocation2 + $0xb0] sm:$0xff]
    %v1248 = vld [vmem:[#allocation2 + $0xb8] sm:$0xff]
    %v1249 = vld [vmem:[#allocation2 + $0xc0] sm:$0xff]
    %v1250 = vld [vmem:[#allocation2 + $0xc8] sm:$0xff]
    %v1251 = vld [vmem:[#allocation7] sm:$0x1]
    %v1253 = vlaneseq
    %v1254 = vshrl.u32 %v1253, 7
    %v1255 = vsub.s32 0, %v1254
    %v1256 = vrot.slane %v1251, %v1255
    %v1258 = vadd.f32 %v1225, %v1256
    %v1259 = vadd.f32 %v1226, %v1256
    %v1260 = vadd.f32 %v1227, %v1256
    %v1261 = vadd.f32 %v1228, %v1256
    %v1262 = vadd.f32 %v1229, %v1256
    %v1263 = vadd.f32 %v1230, %v1256
    %v1264 = vadd.f32 %v1231, %v1256
    %v1265 = vadd.f32 %v1232, %v1256
    %v1266 = vadd.f32 %v1233, %v1256
    %v1267 = vadd.f32 %v1234, %v1256
    %v1268 = vadd.f32 %v1235, %v1256
    %v1269 = vadd.f32 %v1236, %v1256
    %v1270 = vadd.f32 %v1237, %v1256
    %v1271 = vadd.f32 %v1238, %v1256
    %v1272 = vadd.f32 %v1239, %v1256
    %v1273 = vadd.f32 %v1240, %v1256
    %v1274 = vadd.f32 %v1241, %v1256
    %v1275 = vadd.f32 %v1242, %v1256
    %v1276 = vadd.f32 %v1243, %v1256
    %v1277 = vadd.f32 %v1244, %v1256
    %v1278 = vadd.f32 %v1245, %v1256
    %v1279 = vadd.f32 %v1246, %v1256
    %v1280 = vadd.f32 %v1247, %v1256
    %v1281 = vadd.f32 %v1248, %v1256
    %v1282 = vadd.f32 %v1249, %v1256
    %v1283 = vadd.f32 %v1250, %v1256
    %v1284 = vmax.f32 %v1258, 0.0
    %v1285 = vmax.f32 %v1259, 0.0
    %v1286 = vmax.f32 %v1260, 0.0
    %v1287 = vmax.f32 %v1261, 0.0
    %v1288 = vmax.f32 %v1262, 0.0
    %v1289 = vmax.f32 %v1263, 0.0
    %v1290 = vmax.f32 %v1264, 0.0
    %v1291 = vmax.f32 %v1265, 0.0
    %v1292 = vmax.f32 %v1266, 0.0
    %v1293 = vmax.f32 %v1267, 0.0
    %v1294 = vmax.f32 %v1268, 0.0
    %v1295 = vmax.f32 %v1269, 0.0
    %v1296 = vmax.f32 %v1270, 0.0
    %v1297 = vmax.f32 %v1271, 0.0
    %v1298 = vmax.f32 %v1272, 0.0
    %v1299 = vmax.f32 %v1273, 0.0
    %v1300 = vmax.f32 %v1274, 0.0
    %v1301 = vmax.f32 %v1275, 0.0
    %v1302 = vmax.f32 %v1276, 0.0
    %v1303 = vmax.f32 %v1277, 0.0
    %v1304 = vmax.f32 %v1278, 0.0
    %v1305 = vmax.f32 %v1279, 0.0
    %v1306 = vmax.f32 %v1280, 0.0
    %v1307 = vmax.f32 %v1281, 0.0
    %v1308 = vmax.f32 %v1282, 0.0
    %v1309 = vmax.f32 %v1283, 0.0
    %1310 = vst.msk [vmem:[#allocation2] sm:$0xff] %vm428, %v1284
    %1311 = vst.msk [vmem:[#allocation2 + $0x8] sm:$0xff] %vm428, %v1285
    %1312 = vst.msk [vmem:[#allocation2 + $0x10] sm:$0xff] %vm428, %v1286
    %1313 = vst.msk [vmem:[#allocation2 + $0x18] sm:$0xff] %vm428, %v1287
    %1314 = vst.msk [vmem:[#allocation2 + $0x20] sm:$0xff] %vm428, %v1288
    %1315 = vst.msk [vmem:[#allocation2 + $0x28] sm:$0xff] %vm428, %v1289
    %1316 = vst.msk [vmem:[#allocation2 + $0x30] sm:$0xff] %vm428, %v1290
    %1317 = vst.msk [vmem:[#allocation2 + $0x38] sm:$0xff] %vm428, %v1291
    %1318 = vst.msk [vmem:[#allocation2 + $0x40] sm:$0xff] %vm428, %v1292
    %1319 = vst.msk [vmem:[#allocation2 + $0x48] sm:$0xff] %vm428, %v1293
    %1320 = vst.msk [vmem:[#allocation2 + $0x50] sm:$0xff] %vm428, %v1294
    %1321 = vst.msk [vmem:[#allocation2 + $0x58] sm:$0xff] %vm428, %v1295
    %1322 = vst.msk [vmem:[#allocation2 + $0x60] sm:$0xff] %vm428, %v1296
    %1323 = vst.msk [vmem:[#allocation2 + $0x68] sm:$0xff] %vm428, %v1297
    %1324 = vst.msk [vmem:[#allocation2 + $0x70] sm:$0xff] %vm428, %v1298
    %1325 = vst.msk [vmem:[#allocation2 + $0x78] sm:$0xff] %vm428, %v1299
    %1326 = vst.msk [vmem:[#allocation2 + $0x80] sm:$0xff] %vm428, %v1300
    %1327 = vst.msk [vmem:[#allocation2 + $0x88] sm:$0xff] %vm428, %v1301
    %1328 = vst.msk [vmem:[#allocation2 + $0x90] sm:$0xff] %vm428, %v1302
    %1329 = vst.msk [vmem:[#allocation2 + $0x98] sm:$0xff] %vm428, %v1303
    %1330 = vst.msk [vmem:[#allocation2 + $0xa0] sm:$0xff] %vm428, %v1304
    %1331 = vst.msk [vmem:[#allocation2 + $0xa8] sm:$0xff] %vm428, %v1305
    %1332 = vst.msk [vmem:[#allocation2 + $0xb0] sm:$0xff] %vm428, %v1306
    %1333 = vst.msk [vmem:[#allocation2 + $0xb8] sm:$0xff] %vm428, %v1307
    %1334 = vst.msk [vmem:[#allocation2 + $0xc0] sm:$0xff] %vm428, %v1308
    %1335 = vst.msk [vmem:[#allocation2 + $0xc8] sm:$0xff] %vm428, %v1309
    %v1336 = vld [vmem:[#allocation2] sm:$0xff]
    %v1337 = vld [vmem:[#allocation2 + $0x8] sm:$0xff]
    %v1338 = vld [vmem:[#allocation2 + $0x10] sm:$0xff]
    %v1339 = vld [vmem:[#allocation2 + $0x18] sm:$0xff]
    %v1340 = vld [vmem:[#allocation2 + $0x20] sm:$0xff]
    %v1341 = vld [vmem:[#allocation2 + $0x28] sm:$0xff]
    %v1342 = vld [vmem:[#allocation2 + $0x30] sm:$0xff]
    %v1343 = vld [vmem:[#allocation2 + $0x38] sm:$0xff]
    %v1344 = vld [vmem:[#allocation2 + $0x40] sm:$0xff]
    %v1345 = vld [vmem:[#allocation2 + $0x48] sm:$0xff]
    %v1346 = vld [vmem:[#allocation2 + $0x50] sm:$0xff]
    %v1347 = vld [vmem:[#allocation2 + $0x58] sm:$0xff]
    %v1348 = vld [vmem:[#allocation2 + $0x60] sm:$0xff]
    %v1349 = vld [vmem:[#allocation2 + $0x68] sm:$0xff]
    %v1350 = vld [vmem:[#allocation2 + $0x70] sm:$0xff]
    %v1351 = vld [vmem:[#allocation2 + $0x78] sm:$0xff]
    %v1352 = vld [vmem:[#allocation2 + $0x80] sm:$0xff]
    %v1353 = vld [vmem:[#allocation2 + $0x88] sm:$0xff]
    %v1354 = vld [vmem:[#allocation2 + $0x90] sm:$0xff]
    %v1355 = vld [vmem:[#allocation2 + $0x98] sm:$0xff]
    %v1356 = vld [vmem:[#allocation2 + $0xa0] sm:$0xff]
    %v1357 = vld [vmem:[#allocation2 + $0xa8] sm:$0xff]
    %v1358 = vld [vmem:[#allocation2 + $0xb0] sm:$0xff]
    %v1359 = vld [vmem:[#allocation2 + $0xb8] sm:$0xff]
    %v1360 = vld [vmem:[%s3] sm:$0xff]
    %v1361 = vld [vmem:[%s3 + $0x8] sm:$0xff]
    %v1362 = vld [vmem:[%s3 + $0x10] sm:$0xff]
    %v1363 = vld [vmem:[%s3 + $0x18] sm:$0xff]
    %v1364 = vld [vmem:[%s3 + $0x20] sm:$0xff]
    %v1365 = vld [vmem:[%s3 + $0x28] sm:$0xff]
    %v1366 = vld [vmem:[%s3 + $0x30] sm:$0xff]
    %v1367 = vld [vmem:[%s3 + $0x38] sm:$0xff]
    %v1368 = vld [vmem:[%s3 + $0x40] sm:$0xff]
    %v1369 = vld [vmem:[%s3 + $0x48] sm:$0xff]
    %v1370 = vld [vmem:[%s3 + $0x50] sm:$0xff]
    %v1371 = vld [vmem:[%s3 + $0x58] sm:$0xff]
    %v1372 = vld [vmem:[%s3 + $0x60] sm:$0xff]
    %v1373 = vld [vmem:[%s3 + $0x68] sm:$0xff]
    %v1374 = vld [vmem:[%s3 + $0x70] sm:$0xff]
    %v1375 = vld [vmem:[%s3 + $0x78] sm:$0xff]
    %v1376 = vld [vmem:[%s3 + $0x80] sm:$0xff]
    %v1377 = vld [vmem:[%s3 + $0x88] sm:$0xff]
    %v1378 = vld [vmem:[%s3 + $0x90] sm:$0xff]
    %v1379 = vld [vmem:[%s3 + $0x98] sm:$0xff]
    %v1380 = vld [vmem:[%s3 + $0xa0] sm:$0xff]
    %v1381 = vld [vmem:[%s3 + $0xa8] sm:$0xff]
    %v1382 = vld [vmem:[%s3 + $0xb0] sm:$0xff]
    %v1383 = vld [vmem:[%s3 + $0xb8] sm:$0xff]
    %v1384 = vld [vmem:[%s3 + $0xc0] sm:$0xff]
    %v1385 = vld [vmem:[%s3 + $0xc8] sm:$0xff]
    %v1387 = vsel %vm428, %v1336, 0
    %v1390 = vsel %vm428, %v1337, 0
    %v1393 = vsel %vm428, %v1338, 0
    %v1396 = vsel %vm428, %v1339, 0
    %v1399 = vsel %vm428, %v1340, 0
    %v1402 = vsel %vm428, %v1341, 0
    %v1405 = vsel %vm428, %v1342, 0
    %v1408 = vsel %vm428, %v1343, 0
    %v1411 = vsel %vm428, %v1344, 0
    %v1414 = vsel %vm428, %v1345, 0
    %v1417 = vsel %vm428, %v1346, 0
    %v1420 = vsel %vm428, %v1347, 0
    %v1423 = vsel %vm428, %v1348, 0
    %v1426 = vsel %vm428, %v1349, 0
    %v1429 = vsel %vm428, %v1350, 0
    %v1432 = vsel %vm428, %v1351, 0
    %v1435 = vsel %vm428, %v1352, 0
    %v1438 = vsel %vm428, %v1353, 0
    %v1441 = vsel %vm428, %v1354, 0
    %v1444 = vsel %vm428, %v1355, 0
    %v1447 = vsel %vm428, %v1356, 0
    %v1450 = vsel %vm428, %v1357, 0
    %v1453 = vsel %vm428, %v1358, 0
    %v1456 = vsel %vm428, %v1359, 0
    %1458 = vmatprep.subr.mxu0 0.0
    %1459 = vmatpush1.msra.mxu0 0.0
    %1460 = vmatprep.subr.mxu0 0.0
    %1461 = vmatpush1.msra.mxu0 0.0
    %1462 = vmatprep.subr.mxu0 0.0
    %1463 = vmatpush1.msra.mxu0 0.0
    %1464 = vmatprep.subr.mxu0 %v1385
    %1465 = vmatpush1.msra.mxu0 %v1384
    %1466 = vmatprep.subr.mxu0 %v1383
    %1467 = vmatpush1.msra.mxu0 %v1382
    %1468 = vmatprep.subr.mxu0 %v1381
    %1469 = vmatpush1.msra.mxu0 %v1380
    %1470 = vmatprep.subr.mxu0 %v1379
    %1471 = vmatpush1.msra.mxu0 %v1378
    %1472 = vmatprep.subr.mxu0 %v1377
    %1473 = vmatpush1.msra.mxu0 %v1376
    %1474 = vmatprep.subr.mxu0 %v1375
    %1475 = vmatpush1.msra.mxu0 %v1374
    %1476 = vmatprep.subr.mxu0 %v1373
    %1477 = vmatpush1.msra.mxu0 %v1372
    %1478 = vmatprep.subr.mxu0 %v1371
    %1479 = vmatpush1.msra.mxu0 %v1370
    %1480 = vmatprep.subr.mxu0 %v1369
    %1481 = vmatpush1.msra.mxu0 %v1368
    %1482 = vmatprep.subr.mxu0 %v1367
    %1483 = vmatpush1.msra.mxu0 %v1366
    %1484 = vmatprep.subr.mxu0 %v1365
    %1485 = vmatpush1.msra.mxu0 %v1364
    %1486 = vmatprep.subr.mxu0 %v1363
    %1487 = vmatpush1.msra.mxu0 %v1362
    %1488 = vmatprep.subr.mxu0 %v1361
    %1489 = vmatpush1.msra.mxu0 %v1360
    %1490 = vmatprep.subr.mxu0 0.0
    %1491 = vmatpush2.msra.mxu0 0.0
    %1492 = vmatprep.subr.mxu0 0.0
    %1493 = vmatpush2.msra.mxu0 0.0
    %1494 = vmatprep.subr.mxu0 0.0
    %1495 = vmatpush2.msra.mxu0 0.0
    %1496 = vmatprep.subr.mxu0 0.0
    %1497 = vmatpush2.msra.mxu0 0.0
    %1498 = vmatprep.subr.mxu0 0.0
    %1499 = vmatpush2.msra.mxu0 0.0
    %1500 = vmatprep.subr.mxu0 0.0
    %1501 = vmatpush2.msra.mxu0 0.0
    %1502 = vmatprep.subr.mxu0 0.0
    %1503 = vmatpush2.msra.mxu0 0.0
    %1504 = vmatprep.subr.mxu0 0.0
    %1505 = vmatpush2.msra.mxu0 0.0
    %1506 = vmatprep.subr.mxu0 0.0
    %1507 = vmatpush2.msra.mxu0 0.0
    %1508 = vmatprep.subr.mxu0 0.0
    %1509 = vmatpush2.msra.mxu0 0.0
    %1510 = vmatprep.subr.mxu0 0.0
    %1511 = vmatpush2.msra.mxu0 0.0
    %1512 = vmatprep.subr.mxu0 0.0
    %1513 = vmatpush2.msra.mxu0 0.0
    %1514 = vmatprep.subr.mxu0 0.0
    %1515 = vmatpush2.msra.mxu0 0.0
    %1516 = vmatprep.subr.mxu0 0.0
    %1517 = vmatpush2.msra.mxu0 0.0
    %1518 = vmatprep.subr.mxu0 0.0
    %1519 = vmatpush2.msra.mxu0 0.0
    %1520 = vmatprep.subr.mxu0 0.0
    %1521 = vmatpush2.msra.mxu0 0.0
    %1522 = vmatprep.mubr.f32.mxu0 0.0
    %1523 = vmatmul.mubr.f32.gmra.mxu0 %v1387
    %v1524 = vpop.f32.mrf.mxu0
    %v1525 = vadd.f32 0.0, %v1524
    %v1526 = vpop.f32.mrf.mxu0
    %v1527 = vadd.f32 0.0, %v1526
    %1528 = vmatprep.mubr.f32.mxu0 0.0
    %1529 = vmatmul.mubr.f32.gmra.mxu0 %v1390
    %v1530 = vpop.f32.mrf.mxu0
    %v1531 = vadd.f32 0.0, %v1530
    %v1532 = vpop.f32.mrf.mxu0
    %v1533 = vadd.f32 0.0, %v1532
    %1534 = vmatprep.mubr.f32.mxu0 0.0
    %1535 = vmatmul.mubr.f32.gmra.mxu0 %v1393
    %v1536 = vpop.f32.mrf.mxu0
    %v1537 = vadd.f32 0.0, %v1536
    %v1538 = vpop.f32.mrf.mxu0
    %v1539 = vadd.f32 0.0, %v1538
    %1540 = vmatprep.mubr.f32.mxu0 0.0
    %1541 = vmatmul.mubr.f32.gmra.mxu0 %v1396
    %v1542 = vpop.f32.mrf.mxu0
    %v1543 = vadd.f32 0.0, %v1542
    %v1544 = vpop.f32.mrf.mxu0
    %v1545 = vadd.f32 0.0, %v1544
    %1546 = vmatprep.mubr.f32.mxu0 0.0
    %1547 = vmatmul.mubr.f32.gmra.mxu0 %v1399
    %v1548 = vpop.f32.mrf.mxu0
    %v1549 = vadd.f32 0.0, %v1548
    %v1550 = vpop.f32.mrf.mxu0
    %v1551 = vadd.f32 0.0, %v1550
    %1552 = vmatprep.mubr.f32.mxu0 0.0
    %1553 = vmatmul.mubr.f32.gmra.mxu0 %v1402
    %v1554 = vpop.f32.mrf.mxu0
    %v1555 = vadd.f32 0.0, %v1554
    %v1556 = vpop.f32.mrf.mxu0
    %v1557 = vadd.f32 0.0, %v1556
    %1558 = vmatprep.mubr.f32.mxu0 0.0
    %1559 = vmatmul.mubr.f32.gmra.mxu0 %v1405
    %v1560 = vpop.f32.mrf.mxu0
    %v1561 = vadd.f32 0.0, %v1560
    %v1562 = vpop.f32.mrf.mxu0
    %v1563 = vadd.f32 0.0, %v1562
    %1564 = vmatprep.mubr.f32.mxu0 0.0
    %1565 = vmatmul.mubr.f32.gmra.mxu0 %v1408
    %v1566 = vpop.f32.mrf.mxu0
    %v1567 = vadd.f32 0.0, %v1566
    %v1568 = vpop.f32.mrf.mxu0
    %v1569 = vadd.f32 0.0, %v1568
    %1570 = vmatprep.mubr.f32.mxu0 0.0
    %1571 = vmatmul.mubr.f32.gmra.mxu0 %v1411
    %v1572 = vpop.f32.mrf.mxu0
    %v1573 = vadd.f32 0.0, %v1572
    %v1574 = vpop.f32.mrf.mxu0
    %v1575 = vadd.f32 0.0, %v1574
    %1576 = vmatprep.mubr.f32.mxu0 0.0
    %1577 = vmatmul.mubr.f32.gmra.mxu0 %v1414
    %v1578 = vpop.f32.mrf.mxu0
    %v1579 = vadd.f32 0.0, %v1578
    %v1580 = vpop.f32.mrf.mxu0
    %v1581 = vadd.f32 0.0, %v1580
    %1582 = vmatprep.mubr.f32.mxu0 0.0
    %1583 = vmatmul.mubr.f32.gmra.mxu0 %v1417
    %v1584 = vpop.f32.mrf.mxu0
    %v1585 = vadd.f32 0.0, %v1584
    %v1586 = vpop.f32.mrf.mxu0
    %v1587 = vadd.f32 0.0, %v1586
    %1588 = vmatprep.mubr.f32.mxu0 0.0
    %1589 = vmatmul.mubr.f32.gmra.mxu0 %v1420
    %v1590 = vpop.f32.mrf.mxu0
    %v1591 = vadd.f32 0.0, %v1590
    %v1592 = vpop.f32.mrf.mxu0
    %v1593 = vadd.f32 0.0, %v1592
    %1594 = vmatprep.mubr.f32.mxu0 0.0
    %1595 = vmatmul.mubr.f32.gmra.mxu0 %v1423
    %v1596 = vpop.f32.mrf.mxu0
    %v1597 = vadd.f32 0.0, %v1596
    %v1598 = vpop.f32.mrf.mxu0
    %v1599 = vadd.f32 0.0, %v1598
    %1600 = vmatprep.mubr.f32.mxu0 0.0
    %1601 = vmatmul.mubr.f32.gmra.mxu0 %v1426
    %v1602 = vpop.f32.mrf.mxu0
    %v1603 = vadd.f32 0.0, %v1602
    %v1604 = vpop.f32.mrf.mxu0
    %v1605 = vadd.f32 0.0, %v1604
    %1606 = vmatprep.mubr.f32.mxu0 0.0
    %1607 = vmatmul.mubr.f32.gmra.mxu0 %v1429
    %v1608 = vpop.f32.mrf.mxu0
    %v1609 = vadd.f32 0.0, %v1608
    %v1610 = vpop.f32.mrf.mxu0
    %v1611 = vadd.f32 0.0, %v1610
    %1612 = vmatprep.mubr.f32.mxu0 0.0
    %1613 = vmatmul.mubr.f32.gmra.mxu0 %v1432
    %v1614 = vpop.f32.mrf.mxu0
    %v1615 = vadd.f32 0.0, %v1614
    %v1616 = vpop.f32.mrf.mxu0
    %v1617 = vadd.f32 0.0, %v1616
    %1618 = vmatprep.mubr.f32.mxu0 0.0
    %1619 = vmatmul.mubr.f32.gmra.mxu0 %v1435
    %v1620 = vpop.f32.mrf.mxu0
    %v1621 = vadd.f32 0.0, %v1620
    %v1622 = vpop.f32.mrf.mxu0
    %v1623 = vadd.f32 0.0, %v1622
    %1624 = vmatprep.mubr.f32.mxu0 0.0
    %1625 = vmatmul.mubr.f32.gmra.mxu0 %v1438
    %v1626 = vpop.f32.mrf.mxu0
    %v1627 = vadd.f32 0.0, %v1626
    %v1628 = vpop.f32.mrf.mxu0
    %v1629 = vadd.f32 0.0, %v1628
    %1630 = vmatprep.mubr.f32.mxu0 0.0
    %1631 = vmatmul.mubr.f32.gmra.mxu0 %v1441
    %v1632 = vpop.f32.mrf.mxu0
    %v1633 = vadd.f32 0.0, %v1632
    %v1634 = vpop.f32.mrf.mxu0
    %v1635 = vadd.f32 0.0, %v1634
    %1636 = vmatprep.mubr.f32.mxu0 0.0
    %1637 = vmatmul.mubr.f32.gmra.mxu0 %v1444
    %v1638 = vpop.f32.mrf.mxu0
    %v1639 = vadd.f32 0.0, %v1638
    %v1640 = vpop.f32.mrf.mxu0
    %v1641 = vadd.f32 0.0, %v1640
    %1642 = vmatprep.mubr.f32.mxu0 0.0
    %1643 = vmatmul.mubr.f32.gmra.mxu0 %v1447
    %v1644 = vpop.f32.mrf.mxu0
    %v1645 = vadd.f32 0.0, %v1644
    %v1646 = vpop.f32.mrf.mxu0
    %v1647 = vadd.f32 0.0, %v1646
    %1648 = vmatprep.mubr.f32.mxu0 0.0
    %1649 = vmatmul.mubr.f32.gmra.mxu0 %v1450
    %v1650 = vpop.f32.mrf.mxu0
    %v1651 = vadd.f32 0.0, %v1650
    %v1652 = vpop.f32.mrf.mxu0
    %v1653 = vadd.f32 0.0, %v1652
    %1654 = vmatprep.mubr.f32.mxu0 0.0
    %1655 = vmatmul.mubr.f32.gmra.mxu0 %v1453
    %v1656 = vpop.f32.mrf.mxu0
    %v1657 = vadd.f32 0.0, %v1656
    %v1658 = vpop.f32.mrf.mxu0
    %v1659 = vadd.f32 0.0, %v1658
    %1660 = vmatprep.mubr.f32.mxu0 0.0
    %1661 = vmatmul.mubr.f32.gmra.mxu0 %v1456
    %v1662 = vpop.f32.mrf.mxu0
    %v1663 = vadd.f32 0.0, %v1662
    %v1664 = vpop.f32.mrf.mxu0
    %v1665 = vadd.f32 0.0, %v1664
    %1666 = vdwg.mxu0
    %1667 = vst [vmem:[#allocation3] sm:$0xff] %v1525
    %vm1668 = vcmask 523264
    %1669 = vst.msk [vmem:[#allocation3 + $0x8] sm:$0xff] %vm1668, %v1527
    %1670 = vst [vmem:[#allocation3 + $0x10] sm:$0xff] %v1531
    %1671 = vst.msk [vmem:[#allocation3 + $0x18] sm:$0xff] %vm1668, %v1533
    %1672 = vst [vmem:[#allocation3 + $0x20] sm:$0xff] %v1537
    %1673 = vst.msk [vmem:[#allocation3 + $0x28] sm:$0xff] %vm1668, %v1539
    %1674 = vst [vmem:[#allocation3 + $0x30] sm:$0xff] %v1543
    %1675 = vst.msk [vmem:[#allocation3 + $0x38] sm:$0xff] %vm1668, %v1545
    %1676 = vst [vmem:[#allocation3 + $0x40] sm:$0xff] %v1549
    %1677 = vst.msk [vmem:[#allocation3 + $0x48] sm:$0xff] %vm1668, %v1551
    %1678 = vst [vmem:[#allocation3 + $0x50] sm:$0xff] %v1555
    %1679 = vst.msk [vmem:[#allocation3 + $0x58] sm:$0xff] %vm1668, %v1557
    %1680 = vst [vmem:[#allocation3 + $0x60] sm:$0xff] %v1561
    %1681 = vst.msk [vmem:[#allocation3 + $0x68] sm:$0xff] %vm1668, %v1563
    %1682 = vst [vmem:[#allocation3 + $0x70] sm:$0xff] %v1567
    %1683 = vst.msk [vmem:[#allocation3 + $0x78] sm:$0xff] %vm1668, %v1569
    %1684 = vst [vmem:[#allocation3 + $0x80] sm:$0xff] %v1573
    %1685 = vst.msk [vmem:[#allocation3 + $0x88] sm:$0xff] %vm1668, %v1575
    %1686 = vst [vmem:[#allocation3 + $0x90] sm:$0xff] %v1579
    %1687 = vst.msk [vmem:[#allocation3 + $0x98] sm:$0xff] %vm1668, %v1581
    %1688 = vst [vmem:[#allocation3 + $0xa0] sm:$0xff] %v1585
    %1689 = vst.msk [vmem:[#allocation3 + $0xa8] sm:$0xff] %vm1668, %v1587
    %1690 = vst [vmem:[#allocation3 + $0xb0] sm:$0xff] %v1591
    %1691 = vst.msk [vmem:[#allocation3 + $0xb8] sm:$0xff] %vm1668, %v1593
    %1692 = vst [vmem:[#allocation3 + $0xc0] sm:$0xff] %v1597
    %1693 = vst.msk [vmem:[#allocation3 + $0xc8] sm:$0xff] %vm1668, %v1599
    %1694 = vst [vmem:[#allocation3 + $0xd0] sm:$0xff] %v1603
    %1695 = vst.msk [vmem:[#allocation3 + $0xd8] sm:$0xff] %vm1668, %v1605
    %1696 = vst [vmem:[#allocation3 + $0xe0] sm:$0xff] %v1609
    %1697 = vst.msk [vmem:[#allocation3 + $0xe8] sm:$0xff] %vm1668, %v1611
    %1698 = vst [vmem:[#allocation3 + $0xf0] sm:$0xff] %v1615
    %1699 = vst.msk [vmem:[#allocation3 + $0xf8] sm:$0xff] %vm1668, %v1617
    %1700 = vst [vmem:[#allocation3 + $0x100] sm:$0xff] %v1621
    %1701 = vst.msk [vmem:[#allocation3 + $0x108] sm:$0xff] %vm1668, %v1623
    %1702 = vst [vmem:[#allocation3 + $0x110] sm:$0xff] %v1627
    %1703 = vst.msk [vmem:[#allocation3 + $0x118] sm:$0xff] %vm1668, %v1629
    %1704 = vst [vmem:[#allocation3 + $0x120] sm:$0xff] %v1633
    %1705 = vst.msk [vmem:[#allocation3 + $0x128] sm:$0xff] %vm1668, %v1635
    %1706 = vst [vmem:[#allocation3 + $0x130] sm:$0xff] %v1639
    %1707 = vst.msk [vmem:[#allocation3 + $0x138] sm:$0xff] %vm1668, %v1641
    %1708 = vst [vmem:[#allocation3 + $0x140] sm:$0xff] %v1645
    %1709 = vst.msk [vmem:[#allocation3 + $0x148] sm:$0xff] %vm1668, %v1647
    %1710 = vst [vmem:[#allocation3 + $0x150] sm:$0xff] %v1651
    %1711 = vst.msk [vmem:[#allocation3 + $0x158] sm:$0xff] %vm1668, %v1653
    %1712 = vst [vmem:[#allocation3 + $0x160] sm:$0xff] %v1657
    %1713 = vst.msk [vmem:[#allocation3 + $0x168] sm:$0xff] %vm1668, %v1659
    %1714 = vst [vmem:[#allocation3 + $0x170] sm:$0xff] %v1663
    %1715 = vst.msk [vmem:[#allocation3 + $0x178] sm:$0xff] %vm1668, %v1665
    %v1716 = vld [vmem:[#allocation3] sm:$0xff]
    %v1717 = vld [vmem:[#allocation3 + $0x8] sm:$0xff]
    %v1718 = vld [vmem:[#allocation3 + $0x10] sm:$0xff]
    %v1719 = vld [vmem:[#allocation3 + $0x18] sm:$0xff]
    %v1720 = vld [vmem:[#allocation3 + $0x20] sm:$0xff]
    %v1721 = vld [vmem:[#allocation3 + $0x28] sm:$0xff]
    %v1722 = vld [vmem:[#allocation3 + $0x30] sm:$0xff]
    %v1723 = vld [vmem:[#allocation3 + $0x38] sm:$0xff]
    %v1724 = vld [vmem:[#allocation3 + $0x40] sm:$0xff]
    %v1725 = vld [vmem:[#allocation3 + $0x48] sm:$0xff]
    %v1726 = vld [vmem:[#allocation3 + $0x50] sm:$0xff]
    %v1727 = vld [vmem:[#allocation3 + $0x58] sm:$0xff]
    %v1728 = vld [vmem:[#allocation3 + $0x60] sm:$0xff]
    %v1729 = vld [vmem:[#allocation3 + $0x68] sm:$0xff]
    %v1730 = vld [vmem:[#allocation3 + $0x70] sm:$0xff]
    %v1731 = vld [vmem:[#allocation3 + $0x78] sm:$0xff]
    %v1732 = vld [vmem:[#allocation3 + $0x80] sm:$0xff]
    %v1733 = vld [vmem:[#allocation3 + $0x88] sm:$0xff]
    %v1734 = vld [vmem:[#allocation3 + $0x90] sm:$0xff]
    %v1735 = vld [vmem:[#allocation3 + $0x98] sm:$0xff]
    %v1736 = vld [vmem:[#allocation3 + $0xa0] sm:$0xff]
    %v1737 = vld [vmem:[#allocation3 + $0xa8] sm:$0xff]
    %v1738 = vld [vmem:[#allocation3 + $0xb0] sm:$0xff]
    %v1739 = vld [vmem:[#allocation3 + $0xb8] sm:$0xff]
    %v1740 = vld [vmem:[#allocation3 + $0xc0] sm:$0xff]
    %v1741 = vld [vmem:[#allocation3 + $0xc8] sm:$0xff]
    %v1742 = vld [vmem:[#allocation3 + $0xd0] sm:$0xff]
    %v1743 = vld [vmem:[#allocation3 + $0xd8] sm:$0xff]
    %v1744 = vld [vmem:[#allocation3 + $0xe0] sm:$0xff]
    %v1745 = vld [vmem:[#allocation3 + $0xe8] sm:$0xff]
    %v1746 = vld [vmem:[#allocation3 + $0xf0] sm:$0xff]
    %v1747 = vld [vmem:[#allocation3 + $0xf8] sm:$0xff]
    %v1748 = vld [vmem:[#allocation3 + $0x100] sm:$0xff]
    %v1749 = vld [vmem:[#allocation3 + $0x108] sm:$0xff]
    %v1750 = vld [vmem:[#allocation3 + $0x110] sm:$0xff]
    %v1751 = vld [vmem:[#allocation3 + $0x118] sm:$0xff]
    %v1752 = vld [vmem:[#allocation3 + $0x120] sm:$0xff]
    %v1753 = vld [vmem:[#allocation3 + $0x128] sm:$0xff]
    %v1754 = vld [vmem:[#allocation3 + $0x130] sm:$0xff]
    %v1755 = vld [vmem:[#allocation3 + $0x138] sm:$0xff]
    %v1756 = vld [vmem:[#allocation3 + $0x140] sm:$0xff]
    %v1757 = vld [vmem:[#allocation3 + $0x148] sm:$0xff]
    %v1758 = vld [vmem:[#allocation3 + $0x150] sm:$0xff]
    %v1759 = vld [vmem:[#allocation3 + $0x158] sm:$0xff]
    %v1760 = vld [vmem:[#allocation3 + $0x160] sm:$0xff]
    %v1761 = vld [vmem:[#allocation3 + $0x168] sm:$0xff]
    %v1762 = vld [vmem:[#allocation3 + $0x170] sm:$0xff]
    %v1763 = vld [vmem:[#allocation3 + $0x178] sm:$0xff]
    %v1764 = vld [vmem:[#allocation2 + $0x8] sm:$0xff]
    %v1765 = vld [vmem:[#allocation2 + $0x10] sm:$0xff]
    %v1766 = vld [vmem:[#allocation2 + $0x18] sm:$0xff]
    %v1767 = vld [vmem:[#allocation2 + $0x20] sm:$0xff]
    %v1768 = vld [vmem:[#allocation2 + $0x28] sm:$0xff]
    %v1769 = vld [vmem:[#allocation2 + $0x30] sm:$0xff]
    %v1770 = vld [vmem:[#allocation2 + $0x38] sm:$0xff]
    %v1771 = vld [vmem:[#allocation2 + $0x40] sm:$0xff]
    %v1772 = vld [vmem:[#allocation2 + $0x48] sm:$0xff]
    %v1773 = vld [vmem:[#allocation2 + $0x50] sm:$0xff]
    %v1774 = vld [vmem:[#allocation2 + $0x58] sm:$0xff]
    %v1775 = vld [vmem:[#allocation2 + $0x60] sm:$0xff]
    %v1776 = vld [vmem:[#allocation2 + $0x68] sm:$0xff]
    %v1777 = vld [vmem:[#allocation2 + $0x70] sm:$0xff]
    %v1778 = vld [vmem:[#allocation2 + $0x78] sm:$0xff]
    %v1779 = vld [vmem:[#allocation2 + $0x80] sm:$0xff]
    %v1780 = vld [vmem:[#allocation2 + $0x88] sm:$0xff]
    %v1781 = vld [vmem:[#allocation2 + $0x90] sm:$0xff]
    %v1782 = vld [vmem:[#allocation2 + $0x98] sm:$0xff]
    %v1783 = vld [vmem:[#allocation2 + $0xa0] sm:$0xff]
    %v1784 = vld [vmem:[#allocation2 + $0xa8] sm:$0xff]
    %v1785 = vld [vmem:[#allocation2 + $0xb0] sm:$0xff]
    %v1786 = vld [vmem:[#allocation2 + $0xb8] sm:$0xff]
    %v1787 = vld [vmem:[#allocation2 + $0xc0] sm:$0xff]
    %s1788 = scalar_lea.vmem %s3, 208
    %v1789 = vld [vmem:[%s1788] sm:$0xff]
    %v1790 = vld [vmem:[%s1788 + $0x8] sm:$0xff]
    %v1791 = vld [vmem:[%s1788 + $0x10] sm:$0xff]
    %v1792 = vld [vmem:[%s1788 + $0x18] sm:$0xff]
    %v1793 = vld [vmem:[%s1788 + $0x20] sm:$0xff]
    %v1794 = vld [vmem:[%s1788 + $0x28] sm:$0xff]
    %v1795 = vld [vmem:[%s1788 + $0x30] sm:$0xff]
    %v1796 = vld [vmem:[%s1788 + $0x38] sm:$0xff]
    %v1797 = vld [vmem:[%s1788 + $0x40] sm:$0xff]
    %v1798 = vld [vmem:[%s1788 + $0x48] sm:$0xff]
    %v1799 = vld [vmem:[%s1788 + $0x50] sm:$0xff]
    %v1800 = vld [vmem:[%s1788 + $0x58] sm:$0xff]
    %v1801 = vld [vmem:[%s1788 + $0x60] sm:$0xff]
    %v1802 = vld [vmem:[%s1788 + $0x68] sm:$0xff]
    %v1803 = vld [vmem:[%s1788 + $0x70] sm:$0xff]
    %v1804 = vld [vmem:[%s1788 + $0x78] sm:$0xff]
    %v1805 = vld [vmem:[%s1788 + $0x80] sm:$0xff]
    %v1806 = vld [vmem:[%s1788 + $0x88] sm:$0xff]
    %v1807 = vld [vmem:[%s1788 + $0x90] sm:$0xff]
    %v1808 = vld [vmem:[%s1788 + $0x98] sm:$0xff]
    %v1809 = vld [vmem:[%s1788 + $0xa0] sm:$0xff]
    %v1810 = vld [vmem:[%s1788 + $0xa8] sm:$0xff]
    %v1811 = vld [vmem:[%s1788 + $0xb0] sm:$0xff]
    %v1812 = vld [vmem:[%s1788 + $0xb8] sm:$0xff]
    %v1813 = vld [vmem:[%s1788 + $0xc0] sm:$0xff]
    %v1814 = vld [vmem:[%s1788 + $0xc8] sm:$0xff]
    %v1816 = vsel %vm428, %v1764, 0
    %v1819 = vsel %vm428, %v1765, 0
    %v1822 = vsel %vm428, %v1766, 0
    %v1825 = vsel %vm428, %v1767, 0
    %v1828 = vsel %vm428, %v1768, 0
    %v1831 = vsel %vm428, %v1769, 0
    %v1834 = vsel %vm428, %v1770, 0
    %v1837 = vsel %vm428, %v1771, 0
    %v1840 = vsel %vm428, %v1772, 0
    %v1843 = vsel %vm428, %v1773, 0
    %v1846 = vsel %vm428, %v1774, 0
    %v1849 = vsel %vm428, %v1775, 0
    %v1852 = vsel %vm428, %v1776, 0
    %v1855 = vsel %vm428, %v1777, 0
    %v1858 = vsel %vm428, %v1778, 0
    %v1861 = vsel %vm428, %v1779, 0
    %v1864 = vsel %vm428, %v1780, 0
    %v1867 = vsel %vm428, %v1781, 0
    %v1870 = vsel %vm428, %v1782, 0
    %v1873 = vsel %vm428, %v1783, 0
    %v1876 = vsel %vm428, %v1784, 0
    %v1879 = vsel %vm428, %v1785, 0
    %v1882 = vsel %vm428, %v1786, 0
    %v1885 = vsel %vm428, %v1787, 0
    %1887 = vmatprep.subr.mxu0 0.0
    %1888 = vmatpush1.msra.mxu0 0.0
    %1889 = vmatprep.subr.mxu0 0.0
    %1890 = vmatpush1.msra.mxu0 0.0
    %1891 = vmatprep.subr.mxu0 0.0
    %1892 = vmatpush1.msra.mxu0 0.0
    %1893 = vmatprep.subr.mxu0 %v1814
    %1894 = vmatpush1.msra.mxu0 %v1813
    %1895 = vmatprep.subr.mxu0 %v1812
    %1896 = vmatpush1.msra.mxu0 %v1811
    %1897 = vmatprep.subr.mxu0 %v1810
    %1898 = vmatpush1.msra.mxu0 %v1809
    %1899 = vmatprep.subr.mxu0 %v1808
    %1900 = vmatpush1.msra.mxu0 %v1807
    %1901 = vmatprep.subr.mxu0 %v1806
    %1902 = vmatpush1.msra.mxu0 %v1805
    %1903 = vmatprep.subr.mxu0 %v1804
    %1904 = vmatpush1.msra.mxu0 %v1803
    %1905 = vmatprep.subr.mxu0 %v1802
    %1906 = vmatpush1.msra.mxu0 %v1801
    %1907 = vmatprep.subr.mxu0 %v1800
    %1908 = vmatpush1.msra.mxu0 %v1799
    %1909 = vmatprep.subr.mxu0 %v1798
    %1910 = vmatpush1.msra.mxu0 %v1797
    %1911 = vmatprep.subr.mxu0 %v1796
    %1912 = vmatpush1.msra.mxu0 %v1795
    %1913 = vmatprep.subr.mxu0 %v1794
    %1914 = vmatpush1.msra.mxu0 %v1793
    %1915 = vmatprep.subr.mxu0 %v1792
    %1916 = vmatpush1.msra.mxu0 %v1791
    %1917 = vmatprep.subr.mxu0 %v1790
    %1918 = vmatpush1.msra.mxu0 %v1789
    %1919 = vmatprep.subr.mxu0 0.0
    %1920 = vmatpush2.msra.mxu0 0.0
    %1921 = vmatprep.subr.mxu0 0.0
    %1922 = vmatpush2.msra.mxu0 0.0
    %1923 = vmatprep.subr.mxu0 0.0
    %1924 = vmatpush2.msra.mxu0 0.0
    %1925 = vmatprep.subr.mxu0 0.0
    %1926 = vmatpush2.msra.mxu0 0.0
    %1927 = vmatprep.subr.mxu0 0.0
    %1928 = vmatpush2.msra.mxu0 0.0
    %1929 = vmatprep.subr.mxu0 0.0
    %1930 = vmatpush2.msra.mxu0 0.0
    %1931 = vmatprep.subr.mxu0 0.0
    %1932 = vmatpush2.msra.mxu0 0.0
    %1933 = vmatprep.subr.mxu0 0.0
    %1934 = vmatpush2.msra.mxu0 0.0
    %1935 = vmatprep.subr.mxu0 0.0
    %1936 = vmatpush2.msra.mxu0 0.0
    %1937 = vmatprep.subr.mxu0 0.0
    %1938 = vmatpush2.msra.mxu0 0.0
    %1939 = vmatprep.subr.mxu0 0.0
    %1940 = vmatpush2.msra.mxu0 0.0
    %1941 = vmatprep.subr.mxu0 0.0
    %1942 = vmatpush2.msra.mxu0 0.0
    %1943 = vmatprep.subr.mxu0 0.0
    %1944 = vmatpush2.msra.mxu0 0.0
    %1945 = vmatprep.subr.mxu0 0.0
    %1946 = vmatpush2.msra.mxu0 0.0
    %1947 = vmatprep.subr.mxu0 0.0
    %1948 = vmatpush2.msra.mxu0 0.0
    %1949 = vmatprep.subr.mxu0 0.0
    %1950 = vmatpush2.msra.mxu0 0.0
    %1951 = vmatprep.mubr.f32.mxu0 0.0
    %1952 = vmatmul.mubr.f32.gmra.mxu0 %v1816
    %v1953 = vpop.f32.mrf.mxu0
    %v1954 = vadd.f32 0.0, %v1953
    %v1955 = vpop.f32.mrf.mxu0
    %v1956 = vadd.f32 0.0, %v1955
    %1957 = vmatprep.mubr.f32.mxu0 0.0
    %1958 = vmatmul.mubr.f32.gmra.mxu0 %v1819
    %v1959 = vpop.f32.mrf.mxu0
    %v1960 = vadd.f32 0.0, %v1959
    %v1961 = vpop.f32.mrf.mxu0
    %v1962 = vadd.f32 0.0, %v1961
    %1963 = vmatprep.mubr.f32.mxu0 0.0
    %1964 = vmatmul.mubr.f32.gmra.mxu0 %v1822
    %v1965 = vpop.f32.mrf.mxu0
    %v1966 = vadd.f32 0.0, %v1965
    %v1967 = vpop.f32.mrf.mxu0
    %v1968 = vadd.f32 0.0, %v1967
    %1969 = vmatprep.mubr.f32.mxu0 0.0
    %1970 = vmatmul.mubr.f32.gmra.mxu0 %v1825
    %v1971 = vpop.f32.mrf.mxu0
    %v1972 = vadd.f32 0.0, %v1971
    %v1973 = vpop.f32.mrf.mxu0
    %v1974 = vadd.f32 0.0, %v1973
    %1975 = vmatprep.mubr.f32.mxu0 0.0
    %1976 = vmatmul.mubr.f32.gmra.mxu0 %v1828
    %v1977 = vpop.f32.mrf.mxu0
    %v1978 = vadd.f32 0.0, %v1977
    %v1979 = vpop.f32.mrf.mxu0
    %v1980 = vadd.f32 0.0, %v1979
    %1981 = vmatprep.mubr.f32.mxu0 0.0
    %1982 = vmatmul.mubr.f32.gmra.mxu0 %v1831
    %v1983 = vpop.f32.mrf.mxu0
    %v1984 = vadd.f32 0.0, %v1983
    %v1985 = vpop.f32.mrf.mxu0
    %v1986 = vadd.f32 0.0, %v1985
    %1987 = vmatprep.mubr.f32.mxu0 0.0
    %1988 = vmatmul.mubr.f32.gmra.mxu0 %v1834
    %v1989 = vpop.f32.mrf.mxu0
    %v1990 = vadd.f32 0.0, %v1989
    %v1991 = vpop.f32.mrf.mxu0
    %v1992 = vadd.f32 0.0, %v1991
    %1993 = vmatprep.mubr.f32.mxu0 0.0
    %1994 = vmatmul.mubr.f32.gmra.mxu0 %v1837
    %v1995 = vpop.f32.mrf.mxu0
    %v1996 = vadd.f32 0.0, %v1995
    %v1997 = vpop.f32.mrf.mxu0
    %v1998 = vadd.f32 0.0, %v1997
    %1999 = vmatprep.mubr.f32.mxu0 0.0
    %2000 = vmatmul.mubr.f32.gmra.mxu0 %v1840
    %v2001 = vpop.f32.mrf.mxu0
    %v2002 = vadd.f32 0.0, %v2001
    %v2003 = vpop.f32.mrf.mxu0
    %v2004 = vadd.f32 0.0, %v2003
    %2005 = vmatprep.mubr.f32.mxu0 0.0
    %2006 = vmatmul.mubr.f32.gmra.mxu0 %v1843
    %v2007 = vpop.f32.mrf.mxu0
    %v2008 = vadd.f32 0.0, %v2007
    %v2009 = vpop.f32.mrf.mxu0
    %v2010 = vadd.f32 0.0, %v2009
    %2011 = vmatprep.mubr.f32.mxu0 0.0
    %2012 = vmatmul.mubr.f32.gmra.mxu0 %v1846
    %v2013 = vpop.f32.mrf.mxu0
    %v2014 = vadd.f32 0.0, %v2013
    %v2015 = vpop.f32.mrf.mxu0
    %v2016 = vadd.f32 0.0, %v2015
    %2017 = vmatprep.mubr.f32.mxu0 0.0
    %2018 = vmatmul.mubr.f32.gmra.mxu0 %v1849
    %v2019 = vpop.f32.mrf.mxu0
    %v2020 = vadd.f32 0.0, %v2019
    %v2021 = vpop.f32.mrf.mxu0
    %v2022 = vadd.f32 0.0, %v2021
    %2023 = vmatprep.mubr.f32.mxu0 0.0
    %2024 = vmatmul.mubr.f32.gmra.mxu0 %v1852
    %v2025 = vpop.f32.mrf.mxu0
    %v2026 = vadd.f32 0.0, %v2025
    %v2027 = vpop.f32.mrf.mxu0
    %v2028 = vadd.f32 0.0, %v2027
    %2029 = vmatprep.mubr.f32.mxu0 0.0
    %2030 = vmatmul.mubr.f32.gmra.mxu0 %v1855
    %v2031 = vpop.f32.mrf.mxu0
    %v2032 = vadd.f32 0.0, %v2031
    %v2033 = vpop.f32.mrf.mxu0
    %v2034 = vadd.f32 0.0, %v2033
    %2035 = vmatprep.mubr.f32.mxu0 0.0
    %2036 = vmatmul.mubr.f32.gmra.mxu0 %v1858
    %v2037 = vpop.f32.mrf.mxu0
    %v2038 = vadd.f32 0.0, %v2037
    %v2039 = vpop.f32.mrf.mxu0
    %v2040 = vadd.f32 0.0, %v2039
    %2041 = vmatprep.mubr.f32.mxu0 0.0
    %2042 = vmatmul.mubr.f32.gmra.mxu0 %v1861
    %v2043 = vpop.f32.mrf.mxu0
    %v2044 = vadd.f32 0.0, %v2043
    %v2045 = vpop.f32.mrf.mxu0
    %v2046 = vadd.f32 0.0, %v2045
    %2047 = vmatprep.mubr.f32.mxu0 0.0
    %2048 = vmatmul.mubr.f32.gmra.mxu0 %v1864
    %v2049 = vpop.f32.mrf.mxu0
    %v2050 = vadd.f32 0.0, %v2049
    %v2051 = vpop.f32.mrf.mxu0
    %v2052 = vadd.f32 0.0, %v2051
    %2053 = vmatprep.mubr.f32.mxu0 0.0
    %2054 = vmatmul.mubr.f32.gmra.mxu0 %v1867
    %v2055 = vpop.f32.mrf.mxu0
    %v2056 = vadd.f32 0.0, %v2055
    %v2057 = vpop.f32.mrf.mxu0
    %v2058 = vadd.f32 0.0, %v2057
    %2059 = vmatprep.mubr.f32.mxu0 0.0
    %2060 = vmatmul.mubr.f32.gmra.mxu0 %v1870
    %v2061 = vpop.f32.mrf.mxu0
    %v2062 = vadd.f32 0.0, %v2061
    %v2063 = vpop.f32.mrf.mxu0
    %v2064 = vadd.f32 0.0, %v2063
    %2065 = vmatprep.mubr.f32.mxu0 0.0
    %2066 = vmatmul.mubr.f32.gmra.mxu0 %v1873
    %v2067 = vpop.f32.mrf.mxu0
    %v2068 = vadd.f32 0.0, %v2067
    %v2069 = vpop.f32.mrf.mxu0
    %v2070 = vadd.f32 0.0, %v2069
    %2071 = vmatprep.mubr.f32.mxu0 0.0
    %2072 = vmatmul.mubr.f32.gmra.mxu0 %v1876
    %v2073 = vpop.f32.mrf.mxu0
    %v2074 = vadd.f32 0.0, %v2073
    %v2075 = vpop.f32.mrf.mxu0
    %v2076 = vadd.f32 0.0, %v2075
    %2077 = vmatprep.mubr.f32.mxu0 0.0
    %2078 = vmatmul.mubr.f32.gmra.mxu0 %v1879
    %v2079 = vpop.f32.mrf.mxu0
    %v2080 = vadd.f32 0.0, %v2079
    %v2081 = vpop.f32.mrf.mxu0
    %v2082 = vadd.f32 0.0, %v2081
    %2083 = vmatprep.mubr.f32.mxu0 0.0
    %2084 = vmatmul.mubr.f32.gmra.mxu0 %v1882
    %v2085 = vpop.f32.mrf.mxu0
    %v2086 = vadd.f32 0.0, %v2085
    %v2087 = vpop.f32.mrf.mxu0
    %v2088 = vadd.f32 0.0, %v2087
    %2089 = vmatprep.mubr.f32.mxu0 0.0
    %2090 = vmatmul.mubr.f32.gmra.mxu0 %v1885
    %v2091 = vpop.f32.mrf.mxu0
    %v2092 = vadd.f32 0.0, %v2091
    %v2093 = vpop.f32.mrf.mxu0
    %v2094 = vadd.f32 0.0, %v2093
    %2095 = vdwg.mxu0
    %v2096 = vadd.f32 %v1716, %v1954
    %v2097 = vadd.f32 %v1717, %v1956
    %v2098 = vadd.f32 %v1718, %v1960
    %v2099 = vadd.f32 %v1719, %v1962
    %v2100 = vadd.f32 %v1720, %v1966
    %v2101 = vadd.f32 %v1721, %v1968
    %v2102 = vadd.f32 %v1722, %v1972
    %v2103 = vadd.f32 %v1723, %v1974
    %v2104 = vadd.f32 %v1724, %v1978
    %v2105 = vadd.f32 %v1725, %v1980
    %v2106 = vadd.f32 %v1726, %v1984
    %v2107 = vadd.f32 %v1727, %v1986
    %v2108 = vadd.f32 %v1728, %v1990
    %v2109 = vadd.f32 %v1729, %v1992
    %v2110 = vadd.f32 %v1730, %v1996
    %v2111 = vadd.f32 %v1731, %v1998
    %v2112 = vadd.f32 %v1732, %v2002
    %v2113 = vadd.f32 %v1733, %v2004
    %v2114 = vadd.f32 %v1734, %v2008
    %v2115 = vadd.f32 %v1735, %v2010
    %v2116 = vadd.f32 %v1736, %v2014
    %v2117 = vadd.f32 %v1737, %v2016
    %v2118 = vadd.f32 %v1738, %v2020
    %v2119 = vadd.f32 %v1739, %v2022
    %v2120 = vadd.f32 %v1740, %v2026
    %v2121 = vadd.f32 %v1741, %v2028
    %v2122 = vadd.f32 %v1742, %v2032
    %v2123 = vadd.f32 %v1743, %v2034
    %v2124 = vadd.f32 %v1744, %v2038
    %v2125 = vadd.f32 %v1745, %v2040
    %v2126 = vadd.f32 %v1746, %v2044
    %v2127 = vadd.f32 %v1747, %v2046
    %v2128 = vadd.f32 %v1748, %v2050
    %v2129 = vadd.f32 %v1749, %v2052
    %v2130 = vadd.f32 %v1750, %v2056
    %v2131 = vadd.f32 %v1751, %v2058
    %v2132 = vadd.f32 %v1752, %v2062
    %v2133 = vadd.f32 %v1753, %v2064
    %v2134 = vadd.f32 %v1754, %v2068
    %v2135 = vadd.f32 %v1755, %v2070
    %v2136 = vadd.f32 %v1756, %v2074
    %v2137 = vadd.f32 %v1757, %v2076
    %v2138 = vadd.f32 %v1758, %v2080
    %v2139 = vadd.f32 %v1759, %v2082
    %v2140 = vadd.f32 %v1760, %v2086
    %v2141 = vadd.f32 %v1761, %v2088
    %v2142 = vadd.f32 %v1762, %v2092
    %v2143 = vadd.f32 %v1763, %v2094
    %2144 = vst [vmem:[#allocation3] sm:$0xff] %v2096
    %2145 = vst.msk [vmem:[#allocation3 + $0x8] sm:$0xff] %vm1668, %v2097
    %2146 = vst [vmem:[#allocation3 + $0x10] sm:$0xff] %v2098
    %2147 = vst.msk [vmem:[#allocation3 + $0x18] sm:$0xff] %vm1668, %v2099
    %2148 = vst [vmem:[#allocation3 + $0x20] sm:$0xff] %v2100
    %2149 = vst.msk [vmem:[#allocation3 + $0x28] sm:$0xff] %vm1668, %v2101
    %2150 = vst [vmem:[#allocation3 + $0x30] sm:$0xff] %v2102
    %2151 = vst.msk [vmem:[#allocation3 + $0x38] sm:$0xff] %vm1668, %v2103
    %2152 = vst [vmem:[#allocation3 + $0x40] sm:$0xff] %v2104
    %2153 = vst.msk [vmem:[#allocation3 + $0x48] sm:$0xff] %vm1668, %v2105
    %2154 = vst [vmem:[#allocation3 + $0x50] sm:$0xff] %v2106
    %2155 = vst.msk [vmem:[#allocation3 + $0x58] sm:$0xff] %vm1668, %v2107
    %2156 = vst [vmem:[#allocation3 + $0x60] sm:$0xff] %v2108
    %2157 = vst.msk [vmem:[#allocation3 + $0x68] sm:$0xff] %vm1668, %v2109
    %2158 = vst [vmem:[#allocation3 + $0x70] sm:$0xff] %v2110
    %2159 = vst.msk [vmem:[#allocation3 + $0x78] sm:$0xff] %vm1668, %v2111
    %2160 = vst [vmem:[#allocation3 + $0x80] sm:$0xff] %v2112
    %2161 = vst.msk [vmem:[#allocation3 + $0x88] sm:$0xff] %vm1668, %v2113
    %2162 = vst [vmem:[#allocation3 + $0x90] sm:$0xff] %v2114
    %2163 = vst.msk [vmem:[#allocation3 + $0x98] sm:$0xff] %vm1668, %v2115
    %2164 = vst [vmem:[#allocation3 + $0xa0] sm:$0xff] %v2116
    %2165 = vst.msk [vmem:[#allocation3 + $0xa8] sm:$0xff] %vm1668, %v2117
    %2166 = vst [vmem:[#allocation3 + $0xb0] sm:$0xff] %v2118
    %2167 = vst.msk [vmem:[#allocation3 + $0xb8] sm:$0xff] %vm1668, %v2119
    %2168 = vst [vmem:[#allocation3 + $0xc0] sm:$0xff] %v2120
    %2169 = vst.msk [vmem:[#allocation3 + $0xc8] sm:$0xff] %vm1668, %v2121
    %2170 = vst [vmem:[#allocation3 + $0xd0] sm:$0xff] %v2122
    %2171 = vst.msk [vmem:[#allocation3 + $0xd8] sm:$0xff] %vm1668, %v2123
    %2172 = vst [vmem:[#allocation3 + $0xe0] sm:$0xff] %v2124
    %2173 = vst.msk [vmem:[#allocation3 + $0xe8] sm:$0xff] %vm1668, %v2125
    %2174 = vst [vmem:[#allocation3 + $0xf0] sm:$0xff] %v2126
    %2175 = vst.msk [vmem:[#allocation3 + $0xf8] sm:$0xff] %vm1668, %v2127
    %2176 = vst [vmem:[#allocation3 + $0x100] sm:$0xff] %v2128
    %2177 = vst.msk [vmem:[#allocation3 + $0x108] sm:$0xff] %vm1668, %v2129
    %2178 = vst [vmem:[#allocation3 + $0x110] sm:$0xff] %v2130
    %2179 = vst.msk [vmem:[#allocation3 + $0x118] sm:$0xff] %vm1668, %v2131
    %2180 = vst [vmem:[#allocation3 + $0x120] sm:$0xff] %v2132
    %2181 = vst.msk [vmem:[#allocation3 + $0x128] sm:$0xff] %vm1668, %v2133
    %2182 = vst [vmem:[#allocation3 + $0x130] sm:$0xff] %v2134
    %2183 = vst.msk [vmem:[#allocation3 + $0x138] sm:$0xff] %vm1668, %v2135
    %2184 = vst [vmem:[#allocation3 + $0x140] sm:$0xff] %v2136
    %2185 = vst.msk [vmem:[#allocation3 + $0x148] sm:$0xff] %vm1668, %v2137
    %2186 = vst [vmem:[#allocation3 + $0x150] sm:$0xff] %v2138
    %2187 = vst.msk [vmem:[#allocation3 + $0x158] sm:$0xff] %vm1668, %v2139
    %2188 = vst [vmem:[#allocation3 + $0x160] sm:$0xff] %v2140
    %2189 = vst.msk [vmem:[#allocation3 + $0x168] sm:$0xff] %vm1668, %v2141
    %2190 = vst [vmem:[#allocation3 + $0x170] sm:$0xff] %v2142
    %2191 = vst.msk [vmem:[#allocation3 + $0x178] sm:$0xff] %vm1668, %v2143
    %v2192 = vld [vmem:[#allocation3] sm:$0xff]
    %v2193 = vld [vmem:[#allocation3 + $0x8] sm:$0xff]
    %v2194 = vld [vmem:[#allocation3 + $0x10] sm:$0xff]
    %v2195 = vld [vmem:[#allocation3 + $0x18] sm:$0xff]
    %v2196 = vld [vmem:[#allocation3 + $0x20] sm:$0xff]
    %v2197 = vld [vmem:[#allocation3 + $0x28] sm:$0xff]
    %v2198 = vld [vmem:[#allocation3 + $0x30] sm:$0xff]
    %v2199 = vld [vmem:[#allocation3 + $0x38] sm:$0xff]
    %v2200 = vld [vmem:[#allocation3 + $0x40] sm:$0xff]
    %v2201 = vld [vmem:[#allocation3 + $0x48] sm:$0xff]
    %v2202 = vld [vmem:[#allocation3 + $0x50] sm:$0xff]
    %v2203 = vld [vmem:[#allocation3 + $0x58] sm:$0xff]
    %v2204 = vld [vmem:[#allocation3 + $0x60] sm:$0xff]
    %v2205 = vld [vmem:[#allocation3 + $0x68] sm:$0xff]
    %v2206 = vld [vmem:[#allocation3 + $0x70] sm:$0xff]
    %v2207 = vld [vmem:[#allocation3 + $0x78] sm:$0xff]
    %v2208 = vld [vmem:[#allocation3 + $0x80] sm:$0xff]
    %v2209 = vld [vmem:[#allocation3 + $0x88] sm:$0xff]
    %v2210 = vld [vmem:[#allocation3 + $0x90] sm:$0xff]
    %v2211 = vld [vmem:[#allocation3 + $0x98] sm:$0xff]
    %v2212 = vld [vmem:[#allocation3 + $0xa0] sm:$0xff]
    %v2213 = vld [vmem:[#allocation3 + $0xa8] sm:$0xff]
    %v2214 = vld [vmem:[#allocation3 + $0xb0] sm:$0xff]
    %v2215 = vld [vmem:[#allocation3 + $0xb8] sm:$0xff]
    %v2216 = vld [vmem:[#allocation3 + $0xc0] sm:$0xff]
    %v2217 = vld [vmem:[#allocation3 + $0xc8] sm:$0xff]
    %v2218 = vld [vmem:[#allocation3 + $0xd0] sm:$0xff]
    %v2219 = vld [vmem:[#allocation3 + $0xd8] sm:$0xff]
    %v2220 = vld [vmem:[#allocation3 + $0xe0] sm:$0xff]
    %v2221 = vld [vmem:[#allocation3 + $0xe8] sm:$0xff]
    %v2222 = vld [vmem:[#allocation3 + $0xf0] sm:$0xff]
    %v2223 = vld [vmem:[#allocation3 + $0xf8] sm:$0xff]
    %v2224 = vld [vmem:[#allocation3 + $0x100] sm:$0xff]
    %v2225 = vld [vmem:[#allocation3 + $0x108] sm:$0xff]
    %v2226 = vld [vmem:[#allocation3 + $0x110] sm:$0xff]
    %v2227 = vld [vmem:[#allocation3 + $0x118] sm:$0xff]
    %v2228 = vld [vmem:[#allocation3 + $0x120] sm:$0xff]
    %v2229 = vld [vmem:[#allocation3 + $0x128] sm:$0xff]
    %v2230 = vld [vmem:[#allocation3 + $0x130] sm:$0xff]
    %v2231 = vld [vmem:[#allocation3 + $0x138] sm:$0xff]
    %v2232 = vld [vmem:[#allocation3 + $0x140] sm:$0xff]
    %v2233 = vld [vmem:[#allocation3 + $0x148] sm:$0xff]
    %v2234 = vld [vmem:[#allocation3 + $0x150] sm:$0xff]
    %v2235 = vld [vmem:[#allocation3 + $0x158] sm:$0xff]
    %v2236 = vld [vmem:[#allocation3 + $0x160] sm:$0xff]
    %v2237 = vld [vmem:[#allocation3 + $0x168] sm:$0xff]
    %v2238 = vld [vmem:[#allocation3 + $0x170] sm:$0xff]
    %v2239 = vld [vmem:[#allocation3 + $0x178] sm:$0xff]
    %v2240 = vld [vmem:[#allocation2 + $0x10] sm:$0xff]
    %v2241 = vld [vmem:[#allocation2 + $0x18] sm:$0xff]
    %v2242 = vld [vmem:[#allocation2 + $0x20] sm:$0xff]
    %v2243 = vld [vmem:[#allocation2 + $0x28] sm:$0xff]
    %v2244 = vld [vmem:[#allocation2 + $0x30] sm:$0xff]
    %v2245 = vld [vmem:[#allocation2 + $0x38] sm:$0xff]
    %v2246 = vld [vmem:[#allocation2 + $0x40] sm:$0xff]
    %v2247 = vld [vmem:[#allocation2 + $0x48] sm:$0xff]
    %v2248 = vld [vmem:[#allocation2 + $0x50] sm:$0xff]
    %v2249 = vld [vmem:[#allocation2 + $0x58] sm:$0xff]
    %v2250 = vld [vmem:[#allocation2 + $0x60] sm:$0xff]
    %v2251 = vld [vmem:[#allocation2 + $0x68] sm:$0xff]
    %v2252 = vld [vmem:[#allocation2 + $0x70] sm:$0xff]
    %v2253 = vld [vmem:[#allocation2 + $0x78] sm:$0xff]
    %v2254 = vld [vmem:[#allocation2 + $0x80] sm:$0xff]
    %v2255 = vld [vmem:[#allocation2 + $0x88] sm:$0xff]
    %v2256 = vld [vmem:[#allocation2 + $0x90] sm:$0xff]
    %v2257 = vld [vmem:[#allocation2 + $0x98] sm:$0xff]
    %v2258 = vld [vmem:[#allocation2 + $0xa0] sm:$0xff]
    %v2259 = vld [vmem:[#allocation2 + $0xa8] sm:$0xff]
    %v2260 = vld [vmem:[#allocation2 + $0xb0] sm:$0xff]
    %v2261 = vld [vmem:[#allocation2 + $0xb8] sm:$0xff]
    %v2262 = vld [vmem:[#allocation2 + $0xc0] sm:$0xff]
    %v2263 = vld [vmem:[#allocation2 + $0xc8] sm:$0xff]
    %s2264 = scalar_lea.vmem %s3, 416
    %v2265 = vld [vmem:[%s2264] sm:$0xff]
    %v2266 = vld [vmem:[%s2264 + $0x8] sm:$0xff]
    %v2267 = vld [vmem:[%s2264 + $0x10] sm:$0xff]
    %v2268 = vld [vmem:[%s2264 + $0x18] sm:$0xff]
    %v2269 = vld [vmem:[%s2264 + $0x20] sm:$0xff]
    %v2270 = vld [vmem:[%s2264 + $0x28] sm:$0xff]
    %v2271 = vld [vmem:[%s2264 + $0x30] sm:$0xff]
    %v2272 = vld [vmem:[%s2264 + $0x38] sm:$0xff]
    %v2273 = vld [vmem:[%s2264 + $0x40] sm:$0xff]
    %v2274 = vld [vmem:[%s2264 + $0x48] sm:$0xff]
    %v2275 = vld [vmem:[%s2264 + $0x50] sm:$0xff]
    %v2276 = vld [vmem:[%s2264 + $0x58] sm:$0xff]
    %v2277 = vld [vmem:[%s2264 + $0x60] sm:$0xff]
    %v2278 = vld [vmem:[%s2264 + $0x68] sm:$0xff]
    %v2279 = vld [vmem:[%s2264 + $0x70] sm:$0xff]
    %v2280 = vld [vmem:[%s2264 + $0x78] sm:$0xff]
    %v2281 = vld [vmem:[%s2264 + $0x80] sm:$0xff]
    %v2282 = vld [vmem:[%s2264 + $0x88] sm:$0xff]
    %v2283 = vld [vmem:[%s2264 + $0x90] sm:$0xff]
    %v2284 = vld [vmem:[%s2264 + $0x98] sm:$0xff]
    %v2285 = vld [vmem:[%s2264 + $0xa0] sm:$0xff]
    %v2286 = vld [vmem:[%s2264 + $0xa8] sm:$0xff]
    %v2287 = vld [vmem:[%s2264 + $0xb0] sm:$0xff]
    %v2288 = vld [vmem:[%s2264 + $0xb8] sm:$0xff]
    %v2289 = vld [vmem:[%s2264 + $0xc0] sm:$0xff]
    %v2290 = vld [vmem:[%s2264 + $0xc8] sm:$0xff]
    %v2292 = vsel %vm428, %v2240, 0
    %v2295 = vsel %vm428, %v2241, 0
    %v2298 = vsel %vm428, %v2242, 0
    %v2301 = vsel %vm428, %v2243, 0
    %v2304 = vsel %vm428, %v2244, 0
    %v2307 = vsel %vm428, %v2245, 0
    %v2310 = vsel %vm428, %v2246, 0
    %v2313 = vsel %vm428, %v2247, 0
    %v2316 = vsel %vm428, %v2248, 0
    %v2319 = vsel %vm428, %v2249, 0
    %v2322 = vsel %vm428, %v2250, 0
    %v2325 = vsel %vm428, %v2251, 0
    %v2328 = vsel %vm428, %v2252, 0
    %v2331 = vsel %vm428, %v2253, 0
    %v2334 = vsel %vm428, %v2254, 0
    %v2337 = vsel %vm428, %v2255, 0
    %v2340 = vsel %vm428, %v2256, 0
    %v2343 = vsel %vm428, %v2257, 0
    %v2346 = vsel %vm428, %v2258, 0
    %v2349 = vsel %vm428, %v2259, 0
    %v2352 = vsel %vm428, %v2260, 0
    %v2355 = vsel %vm428, %v2261, 0
    %v2358 = vsel %vm428, %v2262, 0
    %v2361 = vsel %vm428, %v2263, 0
    %2363 = vmatprep.subr.mxu0 0.0
    %2364 = vmatpush1.msra.mxu0 0.0
    %2365 = vmatprep.subr.mxu0 0.0
    %2366 = vmatpush1.msra.mxu0 0.0
    %2367 = vmatprep.subr.mxu0 0.0
    %2368 = vmatpush1.msra.mxu0 0.0
    %2369 = vmatprep.subr.mxu0 %v2290
    %2370 = vmatpush1.msra.mxu0 %v2289
    %2371 = vmatprep.subr.mxu0 %v2288
    %2372 = vmatpush1.msra.mxu0 %v2287
    %2373 = vmatprep.subr.mxu0 %v2286
    %2374 = vmatpush1.msra.mxu0 %v2285
    %2375 = vmatprep.subr.mxu0 %v2284
    %2376 = vmatpush1.msra.mxu0 %v2283
    %2377 = vmatprep.subr.mxu0 %v2282
    %2378 = vmatpush1.msra.mxu0 %v2281
    %2379 = vmatprep.subr.mxu0 %v2280
    %2380 = vmatpush1.msra.mxu0 %v2279
    %2381 = vmatprep.subr.mxu0 %v2278
    %2382 = vmatpush1.msra.mxu0 %v2277
    %2383 = vmatprep.subr.mxu0 %v2276
    %2384 = vmatpush1.msra.mxu0 %v2275
    %2385 = vmatprep.subr.mxu0 %v2274
    %2386 = vmatpush1.msra.mxu0 %v2273
    %2387 = vmatprep.subr.mxu0 %v2272
    %2388 = vmatpush1.msra.mxu0 %v2271
    %2389 = vmatprep.subr.mxu0 %v2270
    %2390 = vmatpush1.msra.mxu0 %v2269
    %2391 = vmatprep.subr.mxu0 %v2268
    %2392 = vmatpush1.msra.mxu0 %v2267
    %2393 = vmatprep.subr.mxu0 %v2266
    %2394 = vmatpush1.msra.mxu0 %v2265
    %2395 = vmatprep.subr.mxu0 0.0
    %2396 = vmatpush2.msra.mxu0 0.0
    %2397 = vmatprep.subr.mxu0 0.0
    %2398 = vmatpush2.msra.mxu0 0.0
    %2399 = vmatprep.subr.mxu0 0.0
    %2400 = vmatpush2.msra.mxu0 0.0
    %2401 = vmatprep.subr.mxu0 0.0
    %2402 = vmatpush2.msra.mxu0 0.0
    %2403 = vmatprep.subr.mxu0 0.0
    %2404 = vmatpush2.msra.mxu0 0.0
    %2405 = vmatprep.subr.mxu0 0.0
    %2406 = vmatpush2.msra.mxu0 0.0
    %2407 = vmatprep.subr.mxu0 0.0
    %2408 = vmatpush2.msra.mxu0 0.0
    %2409 = vmatprep.subr.mxu0 0.0
    %2410 = vmatpush2.msra.mxu0 0.0
    %2411 = vmatprep.subr.mxu0 0.0
    %2412 = vmatpush2.msra.mxu0 0.0
    %2413 = vmatprep.subr.mxu0 0.0
    %2414 = vmatpush2.msra.mxu0 0.0
    %2415 = vmatprep.subr.mxu0 0.0
    %2416 = vmatpush2.msra.mxu0 0.0
    %2417 = vmatprep.subr.mxu0 0.0
    %2418 = vmatpush2.msra.mxu0 0.0
    %2419 = vmatprep.subr.mxu0 0.0
    %2420 = vmatpush2.msra.mxu0 0.0
    %2421 = vmatprep.subr.mxu0 0.0
    %2422 = vmatpush2.msra.mxu0 0.0
    %2423 = vmatprep.subr.mxu0 0.0
    %2424 = vmatpush2.msra.mxu0 0.0
    %2425 = vmatprep.subr.mxu0 0.0
    %2426 = vmatpush2.msra.mxu0 0.0
    %2427 = vmatprep.mubr.f32.mxu0 0.0
    %2428 = vmatmul.mubr.f32.gmra.mxu0 %v2292
    %v2429 = vpop.f32.mrf.mxu0
    %v2430 = vadd.f32 0.0, %v2429
    %v2431 = vpop.f32.mrf.mxu0
    %v2432 = vadd.f32 0.0, %v2431
    %2433 = vmatprep.mubr.f32.mxu0 0.0
    %2434 = vmatmul.mubr.f32.gmra.mxu0 %v2295
    %v2435 = vpop.f32.mrf.mxu0
    %v2436 = vadd.f32 0.0, %v2435
    %v2437 = vpop.f32.mrf.mxu0
    %v2438 = vadd.f32 0.0, %v2437
    %2439 = vmatprep.mubr.f32.mxu0 0.0
    %2440 = vmatmul.mubr.f32.gmra.mxu0 %v2298
    %v2441 = vpop.f32.mrf.mxu0
    %v2442 = vadd.f32 0.0, %v2441
    %v2443 = vpop.f32.mrf.mxu0
    %v2444 = vadd.f32 0.0, %v2443
    %2445 = vmatprep.mubr.f32.mxu0 0.0
    %2446 = vmatmul.mubr.f32.gmra.mxu0 %v2301
    %v2447 = vpop.f32.mrf.mxu0
    %v2448 = vadd.f32 0.0, %v2447
    %v2449 = vpop.f32.mrf.mxu0
    %v2450 = vadd.f32 0.0, %v2449
    %2451 = vmatprep.mubr.f32.mxu0 0.0
    %2452 = vmatmul.mubr.f32.gmra.mxu0 %v2304
    %v2453 = vpop.f32.mrf.mxu0
    %v2454 = vadd.f32 0.0, %v2453
    %v2455 = vpop.f32.mrf.mxu0
    %v2456 = vadd.f32 0.0, %v2455
    %2457 = vmatprep.mubr.f32.mxu0 0.0
    %2458 = vmatmul.mubr.f32.gmra.mxu0 %v2307
    %v2459 = vpop.f32.mrf.mxu0
    %v2460 = vadd.f32 0.0, %v2459
    %v2461 = vpop.f32.mrf.mxu0
    %v2462 = vadd.f32 0.0, %v2461
    %2463 = vmatprep.mubr.f32.mxu0 0.0
    %2464 = vmatmul.mubr.f32.gmra.mxu0 %v2310
    %v2465 = vpop.f32.mrf.mxu0
    %v2466 = vadd.f32 0.0, %v2465
    %v2467 = vpop.f32.mrf.mxu0
    %v2468 = vadd.f32 0.0, %v2467
    %2469 = vmatprep.mubr.f32.mxu0 0.0
    %2470 = vmatmul.mubr.f32.gmra.mxu0 %v2313
    %v2471 = vpop.f32.mrf.mxu0
    %v2472 = vadd.f32 0.0, %v2471
    %v2473 = vpop.f32.mrf.mxu0
    %v2474 = vadd.f32 0.0, %v2473
    %2475 = vmatprep.mubr.f32.mxu0 0.0
    %2476 = vmatmul.mubr.f32.gmra.mxu0 %v2316
    %v2477 = vpop.f32.mrf.mxu0
    %v2478 = vadd.f32 0.0, %v2477
    %v2479 = vpop.f32.mrf.mxu0
    %v2480 = vadd.f32 0.0, %v2479
    %2481 = vmatprep.mubr.f32.mxu0 0.0
    %2482 = vmatmul.mubr.f32.gmra.mxu0 %v2319
    %v2483 = vpop.f32.mrf.mxu0
    %v2484 = vadd.f32 0.0, %v2483
    %v2485 = vpop.f32.mrf.mxu0
    %v2486 = vadd.f32 0.0, %v2485
    %2487 = vmatprep.mubr.f32.mxu0 0.0
    %2488 = vmatmul.mubr.f32.gmra.mxu0 %v2322
    %v2489 = vpop.f32.mrf.mxu0
    %v2490 = vadd.f32 0.0, %v2489
    %v2491 = vpop.f32.mrf.mxu0
    %v2492 = vadd.f32 0.0, %v2491
    %2493 = vmatprep.mubr.f32.mxu0 0.0
    %2494 = vmatmul.mubr.f32.gmra.mxu0 %v2325
    %v2495 = vpop.f32.mrf.mxu0
    %v2496 = vadd.f32 0.0, %v2495
    %v2497 = vpop.f32.mrf.mxu0
    %v2498 = vadd.f32 0.0, %v2497
    %2499 = vmatprep.mubr.f32.mxu0 0.0
    %2500 = vmatmul.mubr.f32.gmra.mxu0 %v2328
    %v2501 = vpop.f32.mrf.mxu0
    %v2502 = vadd.f32 0.0, %v2501
    %v2503 = vpop.f32.mrf.mxu0
    %v2504 = vadd.f32 0.0, %v2503
    %2505 = vmatprep.mubr.f32.mxu0 0.0
    %2506 = vmatmul.mubr.f32.gmra.mxu0 %v2331
    %v2507 = vpop.f32.mrf.mxu0
    %v2508 = vadd.f32 0.0, %v2507
    %v2509 = vpop.f32.mrf.mxu0
    %v2510 = vadd.f32 0.0, %v2509
    %2511 = vmatprep.mubr.f32.mxu0 0.0
    %2512 = vmatmul.mubr.f32.gmra.mxu0 %v2334
    %v2513 = vpop.f32.mrf.mxu0
    %v2514 = vadd.f32 0.0, %v2513
    %v2515 = vpop.f32.mrf.mxu0
    %v2516 = vadd.f32 0.0, %v2515
    %2517 = vmatprep.mubr.f32.mxu0 0.0
    %2518 = vmatmul.mubr.f32.gmra.mxu0 %v2337
    %v2519 = vpop.f32.mrf.mxu0
    %v2520 = vadd.f32 0.0, %v2519
    %v2521 = vpop.f32.mrf.mxu0
    %v2522 = vadd.f32 0.0, %v2521
    %2523 = vmatprep.mubr.f32.mxu0 0.0
    %2524 = vmatmul.mubr.f32.gmra.mxu0 %v2340
    %v2525 = vpop.f32.mrf.mxu0
    %v2526 = vadd.f32 0.0, %v2525
    %v2527 = vpop.f32.mrf.mxu0
    %v2528 = vadd.f32 0.0, %v2527
    %2529 = vmatprep.mubr.f32.mxu0 0.0
    %2530 = vmatmul.mubr.f32.gmra.mxu0 %v2343
    %v2531 = vpop.f32.mrf.mxu0
    %v2532 = vadd.f32 0.0, %v2531
    %v2533 = vpop.f32.mrf.mxu0
    %v2534 = vadd.f32 0.0, %v2533
    %2535 = vmatprep.mubr.f32.mxu0 0.0
    %2536 = vmatmul.mubr.f32.gmra.mxu0 %v2346
    %v2537 = vpop.f32.mrf.mxu0
    %v2538 = vadd.f32 0.0, %v2537
    %v2539 = vpop.f32.mrf.mxu0
    %v2540 = vadd.f32 0.0, %v2539
    %2541 = vmatprep.mubr.f32.mxu0 0.0
    %2542 = vmatmul.mubr.f32.gmra.mxu0 %v2349
    %v2543 = vpop.f32.mrf.mxu0
    %v2544 = vadd.f32 0.0, %v2543
    %v2545 = vpop.f32.mrf.mxu0
    %v2546 = vadd.f32 0.0, %v2545
    %2547 = vmatprep.mubr.f32.mxu0 0.0
    %2548 = vmatmul.mubr.f32.gmra.mxu0 %v2352
    %v2549 = vpop.f32.mrf.mxu0
    %v2550 = vadd.f32 0.0, %v2549
    %v2551 = vpop.f32.mrf.mxu0
    %v2552 = vadd.f32 0.0, %v2551
    %2553 = vmatprep.mubr.f32.mxu0 0.0
    %2554 = vmatmul.mubr.f32.gmra.mxu0 %v2355
    %v2555 = vpop.f32.mrf.mxu0
    %v2556 = vadd.f32 0.0, %v2555
    %v2557 = vpop.f32.mrf.mxu0
    %v2558 = vadd.f32 0.0, %v2557
    %2559 = vmatprep.mubr.f32.mxu0 0.0
    %2560 = vmatmul.mubr.f32.gmra.mxu0 %v2358
    %v2561 = vpop.f32.mrf.mxu0
    %v2562 = vadd.f32 0.0, %v2561
    %v2563 = vpop.f32.mrf.mxu0
    %v2564 = vadd.f32 0.0, %v2563
    %2565 = vmatprep.mubr.f32.mxu0 0.0
    %2566 = vmatmul.mubr.f32.gmra.mxu0 %v2361
    %v2567 = vpop.f32.mrf.mxu0
    %v2568 = vadd.f32 0.0, %v2567
    %v2569 = vpop.f32.mrf.mxu0
    %v2570 = vadd.f32 0.0, %v2569
    %2571 = vdwg.mxu0
    %v2572 = vadd.f32 %v2192, %v2430
    %v2573 = vadd.f32 %v2193, %v2432
    %v2574 = vadd.f32 %v2194, %v2436
    %v2575 = vadd.f32 %v2195, %v2438
    %v2576 = vadd.f32 %v2196, %v2442
    %v2577 = vadd.f32 %v2197, %v2444
    %v2578 = vadd.f32 %v2198, %v2448
    %v2579 = vadd.f32 %v2199, %v2450
    %v2580 = vadd.f32 %v2200, %v2454
    %v2581 = vadd.f32 %v2201, %v2456
    %v2582 = vadd.f32 %v2202, %v2460
    %v2583 = vadd.f32 %v2203, %v2462
    %v2584 = vadd.f32 %v2204, %v2466
    %v2585 = vadd.f32 %v2205, %v2468
    %v2586 = vadd.f32 %v2206, %v2472
    %v2587 = vadd.f32 %v2207, %v2474
    %v2588 = vadd.f32 %v2208, %v2478
    %v2589 = vadd.f32 %v2209, %v2480
    %v2590 = vadd.f32 %v2210, %v2484
    %v2591 = vadd.f32 %v2211, %v2486
    %v2592 = vadd.f32 %v2212, %v2490
    %v2593 = vadd.f32 %v2213, %v2492
    %v2594 = vadd.f32 %v2214, %v2496
    %v2595 = vadd.f32 %v2215, %v2498
    %v2596 = vadd.f32 %v2216, %v2502
    %v2597 = vadd.f32 %v2217, %v2504
    %v2598 = vadd.f32 %v2218, %v2508
    %v2599 = vadd.f32 %v2219, %v2510
    %v2600 = vadd.f32 %v2220, %v2514
    %v2601 = vadd.f32 %v2221, %v2516
    %v2602 = vadd.f32 %v2222, %v2520
    %v2603 = vadd.f32 %v2223, %v2522
    %v2604 = vadd.f32 %v2224, %v2526
    %v2605 = vadd.f32 %v2225, %v2528
    %v2606 = vadd.f32 %v2226, %v2532
    %v2607 = vadd.f32 %v2227, %v2534
    %v2608 = vadd.f32 %v2228, %v2538
    %v2609 = vadd.f32 %v2229, %v2540
    %v2610 = vadd.f32 %v2230, %v2544
    %v2611 = vadd.f32 %v2231, %v2546
    %v2612 = vadd.f32 %v2232, %v2550
    %v2613 = vadd.f32 %v2233, %v2552
    %v2614 = vadd.f32 %v2234, %v2556
    %v2615 = vadd.f32 %v2235, %v2558
    %v2616 = vadd.f32 %v2236, %v2562
    %v2617 = vadd.f32 %v2237, %v2564
    %v2618 = vadd.f32 %v2238, %v2568
    %v2619 = vadd.f32 %v2239, %v2570
    %2620 = vst [vmem:[#allocation3] sm:$0xff] %v2572
    %2621 = vst.msk [vmem:[#allocation3 + $0x8] sm:$0xff] %vm1668, %v2573
    %2622 = vst [vmem:[#allocation3 + $0x10] sm:$0xff] %v2574
    %2623 = vst.msk [vmem:[#allocation3 + $0x18] sm:$0xff] %vm1668, %v2575
    %2624 = vst [vmem:[#allocation3 + $0x20] sm:$0xff] %v2576
    %2625 = vst.msk [vmem:[#allocation3 + $0x28] sm:$0xff] %vm1668, %v2577
    %2626 = vst [vmem:[#allocation3 + $0x30] sm:$0xff] %v2578
    %2627 = vst.msk [vmem:[#allocation3 + $0x38] sm:$0xff] %vm1668, %v2579
    %2628 = vst [vmem:[#allocation3 + $0x40] sm:$0xff] %v2580
    %2629 = vst.msk [vmem:[#allocation3 + $0x48] sm:$0xff] %vm1668, %v2581
    %2630 = vst [vmem:[#allocation3 + $0x50] sm:$0xff] %v2582
    %2631 = vst.msk [vmem:[#allocation3 + $0x58] sm:$0xff] %vm1668, %v2583
    %2632 = vst [vmem:[#allocation3 + $0x60] sm:$0xff] %v2584
    %2633 = vst.msk [vmem:[#allocation3 + $0x68] sm:$0xff] %vm1668, %v2585
    %2634 = vst [vmem:[#allocation3 + $0x70] sm:$0xff] %v2586
    %2635 = vst.msk [vmem:[#allocation3 + $0x78] sm:$0xff] %vm1668, %v2587
    %2636 = vst [vmem:[#allocation3 + $0x80] sm:$0xff] %v2588
    %2637 = vst.msk [vmem:[#allocation3 + $0x88] sm:$0xff] %vm1668, %v2589
    %2638 = vst [vmem:[#allocation3 + $0x90] sm:$0xff] %v2590
    %2639 = vst.msk [vmem:[#allocation3 + $0x98] sm:$0xff] %vm1668, %v2591
    %2640 = vst [vmem:[#allocation3 + $0xa0] sm:$0xff] %v2592
    %2641 = vst.msk [vmem:[#allocation3 + $0xa8] sm:$0xff] %vm1668, %v2593
    %2642 = vst [vmem:[#allocation3 + $0xb0] sm:$0xff] %v2594
    %2643 = vst.msk [vmem:[#allocation3 + $0xb8] sm:$0xff] %vm1668, %v2595
    %2644 = vst [vmem:[#allocation3 + $0xc0] sm:$0xff] %v2596
    %2645 = vst.msk [vmem:[#allocation3 + $0xc8] sm:$0xff] %vm1668, %v2597
    %2646 = vst [vmem:[#allocation3 + $0xd0] sm:$0xff] %v2598
    %2647 = vst.msk [vmem:[#allocation3 + $0xd8] sm:$0xff] %vm1668, %v2599
    %2648 = vst [vmem:[#allocation3 + $0xe0] sm:$0xff] %v2600
    %2649 = vst.msk [vmem:[#allocation3 + $0xe8] sm:$0xff] %vm1668, %v2601
    %2650 = vst [vmem:[#allocation3 + $0xf0] sm:$0xff] %v2602
    %2651 = vst.msk [vmem:[#allocation3 + $0xf8] sm:$0xff] %vm1668, %v2603
    %2652 = vst [vmem:[#allocation3 + $0x100] sm:$0xff] %v2604
    %2653 = vst.msk [vmem:[#allocation3 + $0x108] sm:$0xff] %vm1668, %v2605
    %2654 = vst [vmem:[#allocation3 + $0x110] sm:$0xff] %v2606
    %2655 = vst.msk [vmem:[#allocation3 + $0x118] sm:$0xff] %vm1668, %v2607
    %2656 = vst [vmem:[#allocation3 + $0x120] sm:$0xff] %v2608
    %2657 = vst.msk [vmem:[#allocation3 + $0x128] sm:$0xff] %vm1668, %v2609
    %2658 = vst [vmem:[#allocation3 + $0x130] sm:$0xff] %v2610
    %2659 = vst.msk [vmem:[#allocation3 + $0x138] sm:$0xff] %vm1668, %v2611
    %2660 = vst [vmem:[#allocation3 + $0x140] sm:$0xff] %v2612
    %2661 = vst.msk [vmem:[#allocation3 + $0x148] sm:$0xff] %vm1668, %v2613
    %2662 = vst [vmem:[#allocation3 + $0x150] sm:$0xff] %v2614
    %2663 = vst.msk [vmem:[#allocation3 + $0x158] sm:$0xff] %vm1668, %v2615
    %2664 = vst [vmem:[#allocation3 + $0x160] sm:$0xff] %v2616
    %2665 = vst.msk [vmem:[#allocation3 + $0x168] sm:$0xff] %vm1668, %v2617
    %2666 = vst [vmem:[#allocation3 + $0x170] sm:$0xff] %v2618
    %2667 = vst.msk [vmem:[#allocation3 + $0x178] sm:$0xff] %vm1668, %v2619
    %v2668 = vld [vmem:[#allocation3] sm:$0xff]
    %v2669 = vld [vmem:[#allocation3 + $0x8] sm:$0xff]
    %v2670 = vld [vmem:[#allocation3 + $0x10] sm:$0xff]
    %v2671 = vld [vmem:[#allocation3 + $0x18] sm:$0xff]
    %v2672 = vld [vmem:[#allocation3 + $0x20] sm:$0xff]
    %v2673 = vld [vmem:[#allocation3 + $0x28] sm:$0xff]
    %v2674 = vld [vmem:[#allocation3 + $0x30] sm:$0xff]
    %v2675 = vld [vmem:[#allocation3 + $0x38] sm:$0xff]
    %v2676 = vld [vmem:[#allocation3 + $0x40] sm:$0xff]
    %v2677 = vld [vmem:[#allocation3 + $0x48] sm:$0xff]
    %v2678 = vld [vmem:[#allocation3 + $0x50] sm:$0xff]
    %v2679 = vld [vmem:[#allocation3 + $0x58] sm:$0xff]
    %v2680 = vld [vmem:[#allocation3 + $0x60] sm:$0xff]
    %v2681 = vld [vmem:[#allocation3 + $0x68] sm:$0xff]
    %v2682 = vld [vmem:[#allocation3 + $0x70] sm:$0xff]
    %v2683 = vld [vmem:[#allocation3 + $0x78] sm:$0xff]
    %v2684 = vld [vmem:[#allocation3 + $0x80] sm:$0xff]
    %v2685 = vld [vmem:[#allocation3 + $0x88] sm:$0xff]
    %v2686 = vld [vmem:[#allocation3 + $0x90] sm:$0xff]
    %v2687 = vld [vmem:[#allocation3 + $0x98] sm:$0xff]
    %v2688 = vld [vmem:[#allocation3 + $0xa0] sm:$0xff]
    %v2689 = vld [vmem:[#allocation3 + $0xa8] sm:$0xff]
    %v2690 = vld [vmem:[#allocation3 + $0xb0] sm:$0xff]
    %v2691 = vld [vmem:[#allocation3 + $0xb8] sm:$0xff]
    %v2692 = vld [vmem:[#allocation3 + $0xc0] sm:$0xff]
    %v2693 = vld [vmem:[#allocation3 + $0xc8] sm:$0xff]
    %v2694 = vld [vmem:[#allocation3 + $0xd0] sm:$0xff]
    %v2695 = vld [vmem:[#allocation3 + $0xd8] sm:$0xff]
    %v2696 = vld [vmem:[#allocation3 + $0xe0] sm:$0xff]
    %v2697 = vld [vmem:[#allocation3 + $0xe8] sm:$0xff]
    %v2698 = vld [vmem:[#allocation3 + $0xf0] sm:$0xff]
    %v2699 = vld [vmem:[#allocation3 + $0xf8] sm:$0xff]
    %v2700 = vld [vmem:[#allocation3 + $0x100] sm:$0xff]
    %v2701 = vld [vmem:[#allocation3 + $0x108] sm:$0xff]
    %v2702 = vld [vmem:[#allocation3 + $0x110] sm:$0xff]
    %v2703 = vld [vmem:[#allocation3 + $0x118] sm:$0xff]
    %v2704 = vld [vmem:[#allocation3 + $0x120] sm:$0xff]
    %v2705 = vld [vmem:[#allocation3 + $0x128] sm:$0xff]
    %v2706 = vld [vmem:[#allocation3 + $0x130] sm:$0xff]
    %v2707 = vld [vmem:[#allocation3 + $0x138] sm:$0xff]
    %v2708 = vld [vmem:[#allocation3 + $0x140] sm:$0xff]
    %v2709 = vld [vmem:[#allocation3 + $0x148] sm:$0xff]
    %v2710 = vld [vmem:[#allocation3 + $0x150] sm:$0xff]
    %v2711 = vld [vmem:[#allocation3 + $0x158] sm:$0xff]
    %v2712 = vld [vmem:[#allocation3 + $0x160] sm:$0xff]
    %v2713 = vld [vmem:[#allocation3 + $0x168] sm:$0xff]
    %v2714 = vld [vmem:[#allocation3 + $0x170] sm:$0xff]
    %v2715 = vld [vmem:[#allocation3 + $0x178] sm:$0xff]
    %v2716 = vld [vmem:[#allocation9] sm:$0x3]
    %v2718 = vlaneseq
    %v2719 = vshrl.u32 %v2718, 7
    %v2720 = vsub.s32 0, %v2719
    %v2721 = vrot.slane %v2716, %v2720
    %v2722 = vlaneseq
    %v2723 = vshrl.u32 %v2722, 7
    %v2724 = vsub.s32 1, %v2723
    %v2725 = vrot.slane %v2716, %v2724
    %v2728 = vadd.f32 %v2668, %v2721
    %v2729 = vadd.f32 %v2669, %v2725
    %v2730 = vadd.f32 %v2670, %v2721
    %v2731 = vadd.f32 %v2671, %v2725
    %v2732 = vadd.f32 %v2672, %v2721
    %v2733 = vadd.f32 %v2673, %v2725
    %v2734 = vadd.f32 %v2674, %v2721
    %v2735 = vadd.f32 %v2675, %v2725
    %v2736 = vadd.f32 %v2676, %v2721
    %v2737 = vadd.f32 %v2677, %v2725
    %v2738 = vadd.f32 %v2678, %v2721
    %v2739 = vadd.f32 %v2679, %v2725
    %v2740 = vadd.f32 %v2680, %v2721
    %v2741 = vadd.f32 %v2681, %v2725
    %v2742 = vadd.f32 %v2682, %v2721
    %v2743 = vadd.f32 %v2683, %v2725
    %v2744 = vadd.f32 %v2684, %v2721
    %v2745 = vadd.f32 %v2685, %v2725
    %v2746 = vadd.f32 %v2686, %v2721
    %v2747 = vadd.f32 %v2687, %v2725
    %v2748 = vadd.f32 %v2688, %v2721
    %v2749 = vadd.f32 %v2689, %v2725
    %v2750 = vadd.f32 %v2690, %v2721
    %v2751 = vadd.f32 %v2691, %v2725
    %v2752 = vadd.f32 %v2692, %v2721
    %v2753 = vadd.f32 %v2693, %v2725
    %v2754 = vadd.f32 %v2694, %v2721
    %v2755 = vadd.f32 %v2695, %v2725
    %v2756 = vadd.f32 %v2696, %v2721
    %v2757 = vadd.f32 %v2697, %v2725
    %v2758 = vadd.f32 %v2698, %v2721
    %v2759 = vadd.f32 %v2699, %v2725
    %v2760 = vadd.f32 %v2700, %v2721
    %v2761 = vadd.f32 %v2701, %v2725
    %v2762 = vadd.f32 %v2702, %v2721
    %v2763 = vadd.f32 %v2703, %v2725
    %v2764 = vadd.f32 %v2704, %v2721
    %v2765 = vadd.f32 %v2705, %v2725
    %v2766 = vadd.f32 %v2706, %v2721
    %v2767 = vadd.f32 %v2707, %v2725
    %v2768 = vadd.f32 %v2708, %v2721
    %v2769 = vadd.f32 %v2709, %v2725
    %v2770 = vadd.f32 %v2710, %v2721
    %v2771 = vadd.f32 %v2711, %v2725
    %v2772 = vadd.f32 %v2712, %v2721
    %v2773 = vadd.f32 %v2713, %v2725
    %v2774 = vadd.f32 %v2714, %v2721
    %v2775 = vadd.f32 %v2715, %v2725
    %v2776 = vmax.f32 %v2728, 0.0
    %v2777 = vmax.f32 %v2729, 0.0
    %v2778 = vmax.f32 %v2730, 0.0
    %v2779 = vmax.f32 %v2731, 0.0
    %v2780 = vmax.f32 %v2732, 0.0
    %v2781 = vmax.f32 %v2733, 0.0
    %v2782 = vmax.f32 %v2734, 0.0
    %v2783 = vmax.f32 %v2735, 0.0
    %v2784 = vmax.f32 %v2736, 0.0
    %v2785 = vmax.f32 %v2737, 0.0
    %v2786 = vmax.f32 %v2738, 0.0
    %v2787 = vmax.f32 %v2739, 0.0
    %v2788 = vmax.f32 %v2740, 0.0
    %v2789 = vmax.f32 %v2741, 0.0
    %v2790 = vmax.f32 %v2742, 0.0
    %v2791 = vmax.f32 %v2743, 0.0
    %v2792 = vmax.f32 %v2744, 0.0
    %v2793 = vmax.f32 %v2745, 0.0
    %v2794 = vmax.f32 %v2746, 0.0
    %v2795 = vmax.f32 %v2747, 0.0
    %v2796 = vmax.f32 %v2748, 0.0
    %v2797 = vmax.f32 %v2749, 0.0
    %v2798 = vmax.f32 %v2750, 0.0
    %v2799 = vmax.f32 %v2751, 0.0
    %v2800 = vmax.f32 %v2752, 0.0
    %v2801 = vmax.f32 %v2753, 0.0
    %v2802 = vmax.f32 %v2754, 0.0
    %v2803 = vmax.f32 %v2755, 0.0
    %v2804 = vmax.f32 %v2756, 0.0
    %v2805 = vmax.f32 %v2757, 0.0
    %v2806 = vmax.f32 %v2758, 0.0
    %v2807 = vmax.f32 %v2759, 0.0
    %v2808 = vmax.f32 %v2760, 0.0
    %v2809 = vmax.f32 %v2761, 0.0
    %v2810 = vmax.f32 %v2762, 0.0
    %v2811 = vmax.f32 %v2763, 0.0
    %v2812 = vmax.f32 %v2764, 0.0
    %v2813 = vmax.f32 %v2765, 0.0
    %v2814 = vmax.f32 %v2766, 0.0
    %v2815 = vmax.f32 %v2767, 0.0
    %v2816 = vmax.f32 %v2768, 0.0
    %v2817 = vmax.f32 %v2769, 0.0
    %v2818 = vmax.f32 %v2770, 0.0
    %v2819 = vmax.f32 %v2771, 0.0
    %v2820 = vmax.f32 %v2772, 0.0
    %v2821 = vmax.f32 %v2773, 0.0
    %v2822 = vmax.f32 %v2774, 0.0
    %v2823 = vmax.f32 %v2775, 0.0
    %2824 = vst [vmem:[#allocation3] sm:$0xff] %v2776
    %2825 = vst.msk [vmem:[#allocation3 + $0x8] sm:$0xff] %vm1668, %v2777
    %2826 = vst [vmem:[#allocation3 + $0x10] sm:$0xff] %v2778
    %2827 = vst.msk [vmem:[#allocation3 + $0x18] sm:$0xff] %vm1668, %v2779
    %2828 = vst [vmem:[#allocation3 + $0x20] sm:$0xff] %v2780
    %2829 = vst.msk [vmem:[#allocation3 + $0x28] sm:$0xff] %vm1668, %v2781
    %2830 = vst [vmem:[#allocation3 + $0x30] sm:$0xff] %v2782
    %2831 = vst.msk [vmem:[#allocation3 + $0x38] sm:$0xff] %vm1668, %v2783
    %2832 = vst [vmem:[#allocation3 + $0x40] sm:$0xff] %v2784
    %2833 = vst.msk [vmem:[#allocation3 + $0x48] sm:$0xff] %vm1668, %v2785
    %2834 = vst [vmem:[#allocation3 + $0x50] sm:$0xff] %v2786
    %2835 = vst.msk [vmem:[#allocation3 + $0x58] sm:$0xff] %vm1668, %v2787
    %2836 = vst [vmem:[#allocation3 + $0x60] sm:$0xff] %v2788
    %2837 = vst.msk [vmem:[#allocation3 + $0x68] sm:$0xff] %vm1668, %v2789
    %2838 = vst [vmem:[#allocation3 + $0x70] sm:$0xff] %v2790
    %2839 = vst.msk [vmem:[#allocation3 + $0x78] sm:$0xff] %vm1668, %v2791
    %2840 = vst [vmem:[#allocation3 + $0x80] sm:$0xff] %v2792
    %2841 = vst.msk [vmem:[#allocation3 + $0x88] sm:$0xff] %vm1668, %v2793
    %2842 = vst [vmem:[#allocation3 + $0x90] sm:$0xff] %v2794
    %2843 = vst.msk [vmem:[#allocation3 + $0x98] sm:$0xff] %vm1668, %v2795
    %2844 = vst [vmem:[#allocation3 + $0xa0] sm:$0xff] %v2796
    %2845 = vst.msk [vmem:[#allocation3 + $0xa8] sm:$0xff] %vm1668, %v2797
    %2846 = vst [vmem:[#allocation3 + $0xb0] sm:$0xff] %v2798
    %2847 = vst.msk [vmem:[#allocation3 + $0xb8] sm:$0xff] %vm1668, %v2799
    %2848 = vst [vmem:[#allocation3 + $0xc0] sm:$0xff] %v2800
    %2849 = vst.msk [vmem:[#allocation3 + $0xc8] sm:$0xff] %vm1668, %v2801
    %2850 = vst [vmem:[#allocation3 + $0xd0] sm:$0xff] %v2802
    %2851 = vst.msk [vmem:[#allocation3 + $0xd8] sm:$0xff] %vm1668, %v2803
    %2852 = vst [vmem:[#allocation3 + $0xe0] sm:$0xff] %v2804
    %2853 = vst.msk [vmem:[#allocation3 + $0xe8] sm:$0xff] %vm1668, %v2805
    %2854 = vst [vmem:[#allocation3 + $0xf0] sm:$0xff] %v2806
    %2855 = vst.msk [vmem:[#allocation3 + $0xf8] sm:$0xff] %vm1668, %v2807
    %2856 = vst [vmem:[#allocation3 + $0x100] sm:$0xff] %v2808
    %2857 = vst.msk [vmem:[#allocation3 + $0x108] sm:$0xff] %vm1668, %v2809
    %2858 = vst [vmem:[#allocation3 + $0x110] sm:$0xff] %v2810
    %2859 = vst.msk [vmem:[#allocation3 + $0x118] sm:$0xff] %vm1668, %v2811
    %2860 = vst [vmem:[#allocation3 + $0x120] sm:$0xff] %v2812
    %2861 = vst.msk [vmem:[#allocation3 + $0x128] sm:$0xff] %vm1668, %v2813
    %2862 = vst [vmem:[#allocation3 + $0x130] sm:$0xff] %v2814
    %2863 = vst.msk [vmem:[#allocation3 + $0x138] sm:$0xff] %vm1668, %v2815
    %2864 = vst [vmem:[#allocation3 + $0x140] sm:$0xff] %v2816
    %2865 = vst.msk [vmem:[#allocation3 + $0x148] sm:$0xff] %vm1668, %v2817
    %2866 = vst [vmem:[#allocation3 + $0x150] sm:$0xff] %v2818
    %2867 = vst.msk [vmem:[#allocation3 + $0x158] sm:$0xff] %vm1668, %v2819
    %2868 = vst [vmem:[#allocation3 + $0x160] sm:$0xff] %v2820
    %2869 = vst.msk [vmem:[#allocation3 + $0x168] sm:$0xff] %vm1668, %v2821
    %2870 = vst [vmem:[#allocation3 + $0x170] sm:$0xff] %v2822
    %2871 = vst.msk [vmem:[#allocation3 + $0x178] sm:$0xff] %vm1668, %v2823
    %v2872 = vld [vmem:[#allocation3] sm:$0xff]
    %v2873 = vld [vmem:[#allocation3 + $0x8] sm:$0xff]
    %v2874 = vld [vmem:[#allocation3 + $0x10] sm:$0xff]
    %v2875 = vld [vmem:[#allocation3 + $0x18] sm:$0xff]
    %v2876 = vmax.f32 %v2872, %v2874
    %v2877 = vmax.f32 %v2873, %v2875
    %2880 = vrot.lane.b32.xlu0 %v2876, 120
    %v2881 = vpop.permute.xlu0 %2880
    %2882 = vrot.lane.b32.xlu0 %v2877, 120
    %v2883 = vpop.permute.xlu0 %2882
    %vm2884 = vcmask 982016
    %v2885 = vsel %vm2884, %v2881, %v2883
    %v2888 = vmax.f32 %v2876, %v2885
    %v2889 = vmax.f32 %v2877, %v2883
    %v2890 = vld [vmem:[#allocation10] sm:$0xff]
    %v2891 = vld [vmem:[#allocation10 + $0x8] sm:$0xff]
    %v2892 = vld [vmem:[#allocation10 + $0x10] sm:$0xff]
    %v2893 = vld [vmem:[#allocation10 + $0x18] sm:$0xff]
    %v2894 = vld [vmem:[#allocation10 + $0x20] sm:$0xff]
    %v2895 = vld [vmem:[#allocation10 + $0x28] sm:$0xff]
    %v2896 = vld [vmem:[#allocation10 + $0x30] sm:$0xff]
    %v2897 = vld [vmem:[#allocation10 + $0x38] sm:$0xff]
    %v2898 = vld [vmem:[#allocation10 + $0x40] sm:$0xff]
    %v2899 = vld [vmem:[#allocation10 + $0x48] sm:$0xff]
    %v2900 = vld [vmem:[#allocation10 + $0x50] sm:$0xff]
    %v2901 = vld [vmem:[#allocation10 + $0x58] sm:$0xff]
    %v2902 = vld [vmem:[#allocation10 + $0x60] sm:$0xff]
    %v2903 = vld [vmem:[#allocation10 + $0x68] sm:$0xff]
    %v2904 = vld [vmem:[#allocation10 + $0x70] sm:$0xff]
    %v2905 = vld [vmem:[#allocation10 + $0x78] sm:$0xff]
    %v2906 = vld [vmem:[#allocation10 + $0x80] sm:$0xff]
    %v2907 = vld [vmem:[#allocation10 + $0x88] sm:$0xff]
    %v2908 = vld [vmem:[#allocation10 + $0x90] sm:$0xff]
    %v2909 = vld [vmem:[#allocation10 + $0x98] sm:$0xff]
    %v2910 = vld [vmem:[#allocation10 + $0xa0] sm:$0xff]
    %v2911 = vld [vmem:[#allocation10 + $0xa8] sm:$0xff]
    %v2912 = vld [vmem:[#allocation10 + $0xb0] sm:$0xff]
    %v2913 = vld [vmem:[#allocation3 + $0x20] sm:$0xff]
    %v2914 = vld [vmem:[#allocation3 + $0x28] sm:$0xff]
    %v2915 = vld [vmem:[#allocation3 + $0x30] sm:$0xff]
    %v2916 = vld [vmem:[#allocation3 + $0x38] sm:$0xff]
    %v2917 = vmax.f32 %v2913, %v2915
    %v2918 = vmax.f32 %v2914, %v2916
    %2921 = vrot.lane.b32.xlu0 %v2917, 120
    %v2922 = vpop.permute.xlu0 %2921
    %2923 = vrot.lane.b32.xlu0 %v2918, 120
    %v2924 = vpop.permute.xlu0 %2923
    %v2925 = vsel %vm2884, %v2922, %v2924
    %v2928 = vmax.f32 %v2917, %v2925
    %v2929 = vmax.f32 %v2918, %v2924
    %s2930 = scalar_lea.vmem [#allocation10], 184
    %v2931 = vld [vmem:[%s2930] sm:$0xff]
    %v2932 = vld [vmem:[%s2930 + $0x8] sm:$0xff]
    %v2933 = vld [vmem:[%s2930 + $0x10] sm:$0xff]
    %v2934 = vld [vmem:[%s2930 + $0x18] sm:$0xff]
    %v2935 = vld [vmem:[%s2930 + $0x20] sm:$0xff]
    %v2936 = vld [vmem:[%s2930 + $0x28] sm:$0xff]
    %v2937 = vld [vmem:[%s2930 + $0x30] sm:$0xff]
    %v2938 = vld [vmem:[%s2930 + $0x38] sm:$0xff]
    %v2939 = vld [vmem:[%s2930 + $0x40] sm:$0xff]
    %v2940 = vld [vmem:[%s2930 + $0x48] sm:$0xff]
    %v2941 = vld [vmem:[%s2930 + $0x50] sm:$0xff]
    %v2942 = vld [vmem:[%s2930 + $0x58] sm:$0xff]
    %v2943 = vld [vmem:[%s2930 + $0x60] sm:$0xff]
    %v2944 = vld [vmem:[%s2930 + $0x68] sm:$0xff]
    %v2945 = vld [vmem:[%s2930 + $0x70] sm:$0xff]
    %v2946 = vld [vmem:[%s2930 + $0x78] sm:$0xff]
    %v2947 = vld [vmem:[%s2930 + $0x80] sm:$0xff]
    %v2948 = vld [vmem:[%s2930 + $0x88] sm:$0xff]
    %v2949 = vld [vmem:[%s2930 + $0x90] sm:$0xff]
    %v2950 = vld [vmem:[%s2930 + $0x98] sm:$0xff]
    %v2951 = vld [vmem:[%s2930 + $0xa0] sm:$0xff]
    %v2952 = vld [vmem:[%s2930 + $0xa8] sm:$0xff]
    %v2953 = vld [vmem:[%s2930 + $0xb0] sm:$0xff]
    %vm2954 = vcmask 457728
    %v2956 = vsel %vm2954, %v2929, 0
    %2958 = vmatprep.subr.mxu0 0.0
    %2959 = vmatpush1.msra.mxu0 %v2946
    %2960 = vmatprep.subr.mxu0 0.0
    %2961 = vmatpush1.msra.mxu0 %v2945
    %2962 = vmatprep.subr.mxu0 0.0
    %2963 = vmatpush1.msra.mxu0 %v2944
    %2964 = vmatprep.subr.mxu0 0.0
    %2965 = vmatpush1.msra.mxu0 %v2943
    %2966 = vmatprep.subr.mxu0 0.0
    %2967 = vmatpush1.msra.mxu0 %v2942
    %2968 = vmatprep.subr.mxu0 0.0
    %2969 = vmatpush1.msra.mxu0 %v2941
    %2970 = vmatprep.subr.mxu0 0.0
    %2971 = vmatpush1.msra.mxu0 %v2940
    %2972 = vmatprep.subr.mxu0 0.0
    %2973 = vmatpush1.msra.mxu0 %v2939
    %2974 = vmatprep.subr.mxu0 0.0
    %2975 = vmatpush1.msra.mxu0 %v2938
    %2976 = vmatprep.subr.mxu0 0.0
    %2977 = vmatpush1.msra.mxu0 %v2937
    %2978 = vmatprep.subr.mxu0 0.0
    %2979 = vmatpush1.msra.mxu0 %v2936
    %2980 = vmatprep.subr.mxu0 0.0
    %2981 = vmatpush1.msra.mxu0 %v2935
    %2982 = vmatprep.subr.mxu0 0.0
    %2983 = vmatpush1.msra.mxu0 %v2934
    %2984 = vmatprep.subr.mxu0 0.0
    %2985 = vmatpush1.msra.mxu0 %v2933
    %2986 = vmatprep.subr.mxu0 0.0
    %2987 = vmatpush1.msra.mxu0 %v2932
    %2988 = vmatprep.subr.mxu0 0.0
    %2989 = vmatpush1.msra.mxu0 %v2931
    %2990 = vmatprep.subr.mxu0 0.0
    %2991 = vmatpush2.msra.mxu0 0.0
    %2992 = vmatprep.subr.mxu0 0.0
    %2993 = vmatpush2.msra.mxu0 0.0
    %2994 = vmatprep.subr.mxu0 0.0
    %2995 = vmatpush2.msra.mxu0 0.0
    %2996 = vmatprep.subr.mxu0 0.0
    %2997 = vmatpush2.msra.mxu0 0.0
    %2998 = vmatprep.subr.mxu0 0.0
    %2999 = vmatpush2.msra.mxu0 0.0
    %3000 = vmatprep.subr.mxu0 0.0
    %3001 = vmatpush2.msra.mxu0 0.0
    %3002 = vmatprep.subr.mxu0 0.0
    %3003 = vmatpush2.msra.mxu0 0.0
    %3004 = vmatprep.subr.mxu0 0.0
    %3005 = vmatpush2.msra.mxu0 0.0
    %3006 = vmatprep.subr.mxu0 0.0
    %3007 = vmatpush2.msra.mxu0 0.0
    %3008 = vmatprep.subr.mxu0 0.0
    %3009 = vmatpush2.msra.mxu0 %v2953
    %3010 = vmatprep.subr.mxu0 0.0
    %3011 = vmatpush2.msra.mxu0 %v2952
    %3012 = vmatprep.subr.mxu0 0.0
    %3013 = vmatpush2.msra.mxu0 %v2951
    %3014 = vmatprep.subr.mxu0 0.0
    %3015 = vmatpush2.msra.mxu0 %v2950
    %3016 = vmatprep.subr.mxu0 0.0
    %3017 = vmatpush2.msra.mxu0 %v2949
    %3018 = vmatprep.subr.mxu0 0.0
    %3019 = vmatpush2.msra.mxu0 %v2948
    %3020 = vmatprep.subr.mxu0 0.0
    %3021 = vmatpush2.msra.mxu0 %v2947
    %3022 = vmatprep.mubr.f32.mxu0 %v2956
    %3023 = vmatmul.mubr.f32.gmra.mxu0 %v2928
    %v3024 = vpop.f32.mrf.mxu0
    %v3025 = vadd.f32 0.0, %v3024
    %v3026 = vpop.f32.mrf.mxu0
    %3027 = vdwg.mxu0
    %v3029 = vsel %vm2954, %v2889, 0
    %3031 = vmatprep.subr.mxu0 0.0
    %3032 = vmatpush1.msra.mxu0 %v2905
    %3033 = vmatprep.subr.mxu0 0.0
    %3034 = vmatpush1.msra.mxu0 %v2904
    %3035 = vmatprep.subr.mxu0 0.0
    %3036 = vmatpush1.msra.mxu0 %v2903
    %3037 = vmatprep.subr.mxu0 0.0
    %3038 = vmatpush1.msra.mxu0 %v2902
    %3039 = vmatprep.subr.mxu0 0.0
    %3040 = vmatpush1.msra.mxu0 %v2901
    %3041 = vmatprep.subr.mxu0 0.0
    %3042 = vmatpush1.msra.mxu0 %v2900
    %3043 = vmatprep.subr.mxu0 0.0
    %3044 = vmatpush1.msra.mxu0 %v2899
    %3045 = vmatprep.subr.mxu0 0.0
    %3046 = vmatpush1.msra.mxu0 %v2898
    %3047 = vmatprep.subr.mxu0 0.0
    %3048 = vmatpush1.msra.mxu0 %v2897
    %3049 = vmatprep.subr.mxu0 0.0
    %3050 = vmatpush1.msra.mxu0 %v2896
    %3051 = vmatprep.subr.mxu0 0.0
    %3052 = vmatpush1.msra.mxu0 %v2895
    %3053 = vmatprep.subr.mxu0 0.0
    %3054 = vmatpush1.msra.mxu0 %v2894
    %3055 = vmatprep.subr.mxu0 0.0
    %3056 = vmatpush1.msra.mxu0 %v2893
    %3057 = vmatprep.subr.mxu0 0.0
    %3058 = vmatpush1.msra.mxu0 %v2892
    %3059 = vmatprep.subr.mxu0 0.0
    %3060 = vmatpush1.msra.mxu0 %v2891
    %3061 = vmatprep.subr.mxu0 0.0
    %3062 = vmatpush1.msra.mxu0 %v2890
    %3063 = vmatprep.subr.mxu0 0.0
    %3064 = vmatpush2.msra.mxu0 0.0
    %3065 = vmatprep.subr.mxu0 0.0
    %3066 = vmatpush2.msra.mxu0 0.0
    %3067 = vmatprep.subr.mxu0 0.0
    %3068 = vmatpush2.msra.mxu0 0.0
    %3069 = vmatprep.subr.mxu0 0.0
    %3070 = vmatpush2.msra.mxu0 0.0
    %3071 = vmatprep.subr.mxu0 0.0
    %3072 = vmatpush2.msra.mxu0 0.0
    %3073 = vmatprep.subr.mxu0 0.0
    %3074 = vmatpush2.msra.mxu0 0.0
    %3075 = vmatprep.subr.mxu0 0.0
    %3076 = vmatpush2.msra.mxu0 0.0
    %3077 = vmatprep.subr.mxu0 0.0
    %3078 = vmatpush2.msra.mxu0 0.0
    %3079 = vmatprep.subr.mxu0 0.0
    %3080 = vmatpush2.msra.mxu0 0.0
    %3081 = vmatprep.subr.mxu0 0.0
    %3082 = vmatpush2.msra.mxu0 %v2912
    %3083 = vmatprep.subr.mxu0 0.0
    %3084 = vmatpush2.msra.mxu0 %v2911
    %3085 = vmatprep.subr.mxu0 0.0
    %3086 = vmatpush2.msra.mxu0 %v2910
    %3087 = vmatprep.subr.mxu0 0.0
    %3088 = vmatpush2.msra.mxu0 %v2909
    %3089 = vmatprep.subr.mxu0 0.0
    %3090 = vmatpush2.msra.mxu0 %v2908
    %3091 = vmatprep.subr.mxu0 0.0
    %3092 = vmatpush2.msra.mxu0 %v2907
    %3093 = vmatprep.subr.mxu0 0.0
    %3094 = vmatpush2.msra.mxu0 %v2906
    %3095 = vmatprep.mubr.f32.mxu0 %v3029
    %3096 = vmatmul.mubr.f32.gmra.mxu0 %v2888
    %v3097 = vpop.f32.mrf.mxu0
    %v3098 = vadd.f32 %v3025, %v3097
    %v3099 = vpop.f32.mrf.mxu0
    %3100 = vdwg.mxu0
    %v3101 = vld [vmem:[#allocation3 + $0x40] sm:$0xff]
    %v3102 = vld [vmem:[#allocation3 + $0x48] sm:$0xff]
    %v3103 = vld [vmem:[#allocation3 + $0x50] sm:$0xff]
    %v3104 = vld [vmem:[#allocation3 + $0x58] sm:$0xff]
    %v3105 = vmax.f32 %v3101, %v3103
    %v3106 = vmax.f32 %v3102, %v3104
    %3109 = vrot.lane.b32.xlu0 %v3105, 120
    %v3110 = vpop.permute.xlu0 %3109
    %3111 = vrot.lane.b32.xlu0 %v3106, 120
    %v3112 = vpop.permute.xlu0 %3111
    %v3113 = vsel %vm2884, %v3110, %v3112
    %v3116 = vmax.f32 %v3105, %v3113
    %v3117 = vmax.f32 %v3106, %v3112
    %s3118 = scalar_lea.vmem [#allocation10], 368
    %v3119 = vld [vmem:[%s3118] sm:$0xff]
    %v3120 = vld [vmem:[%s3118 + $0x8] sm:$0xff]
    %v3121 = vld [vmem:[%s3118 + $0x10] sm:$0xff]
    %v3122 = vld [vmem:[%s3118 + $0x18] sm:$0xff]
    %v3123 = vld [vmem:[%s3118 + $0x20] sm:$0xff]
    %v3124 = vld [vmem:[%s3118 + $0x28] sm:$0xff]
    %v3125 = vld [vmem:[%s3118 + $0x30] sm:$0xff]
    %v3126 = vld [vmem:[%s3118 + $0x38] sm:$0xff]
    %v3127 = vld [vmem:[%s3118 + $0x40] sm:$0xff]
    %v3128 = vld [vmem:[%s3118 + $0x48] sm:$0xff]
    %v3129 = vld [vmem:[%s3118 + $0x50] sm:$0xff]
    %v3130 = vld [vmem:[%s3118 + $0x58] sm:$0xff]
    %v3131 = vld [vmem:[%s3118 + $0x60] sm:$0xff]
    %v3132 = vld [vmem:[%s3118 + $0x68] sm:$0xff]
    %v3133 = vld [vmem:[%s3118 + $0x70] sm:$0xff]
    %v3134 = vld [vmem:[%s3118 + $0x78] sm:$0xff]
    %v3135 = vld [vmem:[%s3118 + $0x80] sm:$0xff]
    %v3136 = vld [vmem:[%s3118 + $0x88] sm:$0xff]
    %v3137 = vld [vmem:[%s3118 + $0x90] sm:$0xff]
    %v3138 = vld [vmem:[%s3118 + $0x98] sm:$0xff]
    %v3139 = vld [vmem:[%s3118 + $0xa0] sm:$0xff]
    %v3140 = vld [vmem:[%s3118 + $0xa8] sm:$0xff]
    %v3141 = vld [vmem:[%s3118 + $0xb0] sm:$0xff]
    %v3143 = vsel %vm2954, %v3117, 0
    %3145 = vmatprep.subr.mxu0 0.0
    %3146 = vmatpush1.msra.mxu0 %v3134
    %3147 = vmatprep.subr.mxu0 0.0
    %3148 = vmatpush1.msra.mxu0 %v3133
    %3149 = vmatprep.subr.mxu0 0.0
    %3150 = vmatpush1.msra.mxu0 %v3132
    %3151 = vmatprep.subr.mxu0 0.0
    %3152 = vmatpush1.msra.mxu0 %v3131
    %3153 = vmatprep.subr.mxu0 0.0
    %3154 = vmatpush1.msra.mxu0 %v3130
    %3155 = vmatprep.subr.mxu0 0.0
    %3156 = vmatpush1.msra.mxu0 %v3129
    %3157 = vmatprep.subr.mxu0 0.0
    %3158 = vmatpush1.msra.mxu0 %v3128
    %3159 = vmatprep.subr.mxu0 0.0
    %3160 = vmatpush1.msra.mxu0 %v3127
    %3161 = vmatprep.subr.mxu0 0.0
    %3162 = vmatpush1.msra.mxu0 %v3126
    %3163 = vmatprep.subr.mxu0 0.0
    %3164 = vmatpush1.msra.mxu0 %v3125
    %3165 = vmatprep.subr.mxu0 0.0
    %3166 = vmatpush1.msra.mxu0 %v3124
    %3167 = vmatprep.subr.mxu0 0.0
    %3168 = vmatpush1.msra.mxu0 %v3123
    %3169 = vmatprep.subr.mxu0 0.0
    %3170 = vmatpush1.msra.mxu0 %v3122
    %3171 = vmatprep.subr.mxu0 0.0
    %3172 = vmatpush1.msra.mxu0 %v3121
    %3173 = vmatprep.subr.mxu0 0.0
    %3174 = vmatpush1.msra.mxu0 %v3120
    %3175 = vmatprep.subr.mxu0 0.0
    %3176 = vmatpush1.msra.mxu0 %v3119
    %3177 = vmatprep.subr.mxu0 0.0
    %3178 = vmatpush2.msra.mxu0 0.0
    %3179 = vmatprep.subr.mxu0 0.0
    %3180 = vmatpush2.msra.mxu0 0.0
    %3181 = vmatprep.subr.mxu0 0.0
    %3182 = vmatpush2.msra.mxu0 0.0
    %3183 = vmatprep.subr.mxu0 0.0
    %3184 = vmatpush2.msra.mxu0 0.0
    %3185 = vmatprep.subr.mxu0 0.0
    %3186 = vmatpush2.msra.mxu0 0.0
    %3187 = vmatprep.subr.mxu0 0.0
    %3188 = vmatpush2.msra.mxu0 0.0
    %3189 = vmatprep.subr.mxu0 0.0
    %3190 = vmatpush2.msra.mxu0 0.0
    %3191 = vmatprep.subr.mxu0 0.0
    %3192 = vmatpush2.msra.mxu0 0.0
    %3193 = vmatprep.subr.mxu0 0.0
    %3194 = vmatpush2.msra.mxu0 0.0
    %3195 = vmatprep.subr.mxu0 0.0
    %3196 = vmatpush2.msra.mxu0 %v3141
    %3197 = vmatprep.subr.mxu0 0.0
    %3198 = vmatpush2.msra.mxu0 %v3140
    %3199 = vmatprep.subr.mxu0 0.0
    %3200 = vmatpush2.msra.mxu0 %v3139
    %3201 = vmatprep.subr.mxu0 0.0
    %3202 = vmatpush2.msra.mxu0 %v3138
    %3203 = vmatprep.subr.mxu0 0.0
    %3204 = vmatpush2.msra.mxu0 %v3137
    %3205 = vmatprep.subr.mxu0 0.0
    %3206 = vmatpush2.msra.mxu0 %v3136
    %3207 = vmatprep.subr.mxu0 0.0
    %3208 = vmatpush2.msra.mxu0 %v3135
    %3209 = vmatprep.mubr.f32.mxu0 %v3143
    %3210 = vmatmul.mubr.f32.gmra.mxu0 %v3116
    %v3211 = vpop.f32.mrf.mxu0
    %v3212 = vadd.f32 0.0, %v3211
    %v3213 = vpop.f32.mrf.mxu0
    %3214 = vdwg.mxu0
    %v3215 = vadd.f32 %v3098, %v3212
    %v3216 = vld [vmem:[#allocation3 + $0x60] sm:$0xff]
    %v3217 = vld [vmem:[#allocation3 + $0x68] sm:$0xff]
    %v3218 = vld [vmem:[#allocation3 + $0x70] sm:$0xff]
    %v3219 = vld [vmem:[#allocation3 + $0x78] sm:$0xff]
    %v3220 = vmax.f32 %v3216, %v3218
    %v3221 = vmax.f32 %v3217, %v3219
    %3224 = vrot.lane.b32.xlu0 %v3220, 120
    %v3225 = vpop.permute.xlu0 %3224
    %3226 = vrot.lane.b32.xlu0 %v3221, 120
    %v3227 = vpop.permute.xlu0 %3226
    %v3228 = vsel %vm2884, %v3225, %v3227
    %v3231 = vmax.f32 %v3220, %v3228
    %v3232 = vmax.f32 %v3221, %v3227
    %s3233 = scalar_lea.vmem [#allocation10], 552
    %v3234 = vld [vmem:[%s3233] sm:$0xff]
    %v3235 = vld [vmem:[%s3233 + $0x8] sm:$0xff]
    %v3236 = vld [vmem:[%s3233 + $0x10] sm:$0xff]
    %v3237 = vld [vmem:[%s3233 + $0x18] sm:$0xff]
    %v3238 = vld [vmem:[%s3233 + $0x20] sm:$0xff]
    %v3239 = vld [vmem:[%s3233 + $0x28] sm:$0xff]
    %v3240 = vld [vmem:[%s3233 + $0x30] sm:$0xff]
    %v3241 = vld [vmem:[%s3233 + $0x38] sm:$0xff]
    %v3242 = vld [vmem:[%s3233 + $0x40] sm:$0xff]
    %v3243 = vld [vmem:[%s3233 + $0x48] sm:$0xff]
    %v3244 = vld [vmem:[%s3233 + $0x50] sm:$0xff]
    %v3245 = vld [vmem:[%s3233 + $0x58] sm:$0xff]
    %v3246 = vld [vmem:[%s3233 + $0x60] sm:$0xff]
    %v3247 = vld [vmem:[%s3233 + $0x68] sm:$0xff]
    %v3248 = vld [vmem:[%s3233 + $0x70] sm:$0xff]
    %v3249 = vld [vmem:[%s3233 + $0x78] sm:$0xff]
    %v3250 = vld [vmem:[%s3233 + $0x80] sm:$0xff]
    %v3251 = vld [vmem:[%s3233 + $0x88] sm:$0xff]
    %v3252 = vld [vmem:[%s3233 + $0x90] sm:$0xff]
    %v3253 = vld [vmem:[%s3233 + $0x98] sm:$0xff]
    %v3254 = vld [vmem:[%s3233 + $0xa0] sm:$0xff]
    %v3255 = vld [vmem:[%s3233 + $0xa8] sm:$0xff]
    %v3256 = vld [vmem:[%s3233 + $0xb0] sm:$0xff]
    %v3258 = vsel %vm2954, %v3232, 0
    %3260 = vmatprep.subr.mxu0 0.0
    %3261 = vmatpush1.msra.mxu0 %v3249
    %3262 = vmatprep.subr.mxu0 0.0
    %3263 = vmatpush1.msra.mxu0 %v3248
    %3264 = vmatprep.subr.mxu0 0.0
    %3265 = vmatpush1.msra.mxu0 %v3247
    %3266 = vmatprep.subr.mxu0 0.0
    %3267 = vmatpush1.msra.mxu0 %v3246
    %3268 = vmatprep.subr.mxu0 0.0
    %3269 = vmatpush1.msra.mxu0 %v3245
    %3270 = vmatprep.subr.mxu0 0.0
    %3271 = vmatpush1.msra.mxu0 %v3244
    %3272 = vmatprep.subr.mxu0 0.0
    %3273 = vmatpush1.msra.mxu0 %v3243
    %3274 = vmatprep.subr.mxu0 0.0
    %3275 = vmatpush1.msra.mxu0 %v3242
    %3276 = vmatprep.subr.mxu0 0.0
    %3277 = vmatpush1.msra.mxu0 %v3241
    %3278 = vmatprep.subr.mxu0 0.0
    %3279 = vmatpush1.msra.mxu0 %v3240
    %3280 = vmatprep.subr.mxu0 0.0
    %3281 = vmatpush1.msra.mxu0 %v3239
    %3282 = vmatprep.subr.mxu0 0.0
    %3283 = vmatpush1.msra.mxu0 %v3238
    %3284 = vmatprep.subr.mxu0 0.0
    %3285 = vmatpush1.msra.mxu0 %v3237
    %3286 = vmatprep.subr.mxu0 0.0
    %3287 = vmatpush1.msra.mxu0 %v3236
    %3288 = vmatprep.subr.mxu0 0.0
    %3289 = vmatpush1.msra.mxu0 %v3235
    %3290 = vmatprep.subr.mxu0 0.0
    %3291 = vmatpush1.msra.mxu0 %v3234
    %3292 = vmatprep.subr.mxu0 0.0
    %3293 = vmatpush2.msra.mxu0 0.0
    %3294 = vmatprep.subr.mxu0 0.0
    %3295 = vmatpush2.msra.mxu0 0.0
    %3296 = vmatprep.subr.mxu0 0.0
    %3297 = vmatpush2.msra.mxu0 0.0
    %3298 = vmatprep.subr.mxu0 0.0
    %3299 = vmatpush2.msra.mxu0 0.0
    %3300 = vmatprep.subr.mxu0 0.0
    %3301 = vmatpush2.msra.mxu0 0.0
    %3302 = vmatprep.subr.mxu0 0.0
    %3303 = vmatpush2.msra.mxu0 0.0
    %3304 = vmatprep.subr.mxu0 0.0
    %3305 = vmatpush2.msra.mxu0 0.0
    %3306 = vmatprep.subr.mxu0 0.0
    %3307 = vmatpush2.msra.mxu0 0.0
    %3308 = vmatprep.subr.mxu0 0.0
    %3309 = vmatpush2.msra.mxu0 0.0
    %3310 = vmatprep.subr.mxu0 0.0
    %3311 = vmatpush2.msra.mxu0 %v3256
    %3312 = vmatprep.subr.mxu0 0.0
    %3313 = vmatpush2.msra.mxu0 %v3255
    %3314 = vmatprep.subr.mxu0 0.0
    %3315 = vmatpush2.msra.mxu0 %v3254
    %3316 = vmatprep.subr.mxu0 0.0
    %3317 = vmatpush2.msra.mxu0 %v3253
    %3318 = vmatprep.subr.mxu0 0.0
    %3319 = vmatpush2.msra.mxu0 %v3252
    %3320 = vmatprep.subr.mxu0 0.0
    %3321 = vmatpush2.msra.mxu0 %v3251
    %3322 = vmatprep.subr.mxu0 0.0
    %3323 = vmatpush2.msra.mxu0 %v3250
    %3324 = vmatprep.mubr.f32.mxu0 %v3258
    %3325 = vmatmul.mubr.f32.gmra.mxu0 %v3231
    %v3326 = vpop.f32.mrf.mxu0
    %v3327 = vadd.f32 0.0, %v3326
    %v3328 = vpop.f32.mrf.mxu0
    %3329 = vdwg.mxu0
    %v3330 = vadd.f32 %v3215, %v3327
    %v3331 = vld [vmem:[#allocation3 + $0x80] sm:$0xff]
    %v3332 = vld [vmem:[#allocation3 + $0x88] sm:$0xff]
    %v3333 = vld [vmem:[#allocation3 + $0x90] sm:$0xff]
    %v3334 = vld [vmem:[#allocation3 + $0x98] sm:$0xff]
    %v3335 = vmax.f32 %v3331, %v3333
    %v3336 = vmax.f32 %v3332, %v3334
    %3339 = vrot.lane.b32.xlu0 %v3335, 120
    %v3340 = vpop.permute.xlu0 %3339
    %3341 = vrot.lane.b32.xlu0 %v3336, 120
    %v3342 = vpop.permute.xlu0 %3341
    %v3343 = vsel %vm2884, %v3340, %v3342
    %v3346 = vmax.f32 %v3335, %v3343
    %v3347 = vmax.f32 %v3336, %v3342
    %s3348 = scalar_lea.vmem [#allocation10], 736
    %v3349 = vld [vmem:[%s3348] sm:$0xff]
    %v3350 = vld [vmem:[%s3348 + $0x8] sm:$0xff]
    %v3351 = vld [vmem:[%s3348 + $0x10] sm:$0xff]
    %v3352 = vld [vmem:[%s3348 + $0x18] sm:$0xff]
    %v3353 = vld [vmem:[%s3348 + $0x20] sm:$0xff]
    %v3354 = vld [vmem:[%s3348 + $0x28] sm:$0xff]
    %v3355 = vld [vmem:[%s3348 + $0x30] sm:$0xff]
    %v3356 = vld [vmem:[%s3348 + $0x38] sm:$0xff]
    %v3357 = vld [vmem:[%s3348 + $0x40] sm:$0xff]
    %v3358 = vld [vmem:[%s3348 + $0x48] sm:$0xff]
    %v3359 = vld [vmem:[%s3348 + $0x50] sm:$0xff]
    %v3360 = vld [vmem:[%s3348 + $0x58] sm:$0xff]
    %v3361 = vld [vmem:[%s3348 + $0x60] sm:$0xff]
    %v3362 = vld [vmem:[%s3348 + $0x68] sm:$0xff]
    %v3363 = vld [vmem:[%s3348 + $0x70] sm:$0xff]
    %v3364 = vld [vmem:[%s3348 + $0x78] sm:$0xff]
    %v3365 = vld [vmem:[%s3348 + $0x80] sm:$0xff]
    %v3366 = vld [vmem:[%s3348 + $0x88] sm:$0xff]
    %v3367 = vld [vmem:[%s3348 + $0x90] sm:$0xff]
    %v3368 = vld [vmem:[%s3348 + $0x98] sm:$0xff]
    %v3369 = vld [vmem:[%s3348 + $0xa0] sm:$0xff]
    %v3370 = vld [vmem:[%s3348 + $0xa8] sm:$0xff]
    %v3371 = vld [vmem:[%s3348 + $0xb0] sm:$0xff]
    %v3373 = vsel %vm2954, %v3347, 0
    %3375 = vmatprep.subr.mxu0 0.0
    %3376 = vmatpush1.msra.mxu0 %v3364
    %3377 = vmatprep.subr.mxu0 0.0
    %3378 = vmatpush1.msra.mxu0 %v3363
    %3379 = vmatprep.subr.mxu0 0.0
    %3380 = vmatpush1.msra.mxu0 %v3362
    %3381 = vmatprep.subr.mxu0 0.0
    %3382 = vmatpush1.msra.mxu0 %v3361
    %3383 = vmatprep.subr.mxu0 0.0
    %3384 = vmatpush1.msra.mxu0 %v3360
    %3385 = vmatprep.subr.mxu0 0.0
    %3386 = vmatpush1.msra.mxu0 %v3359
    %3387 = vmatprep.subr.mxu0 0.0
    %3388 = vmatpush1.msra.mxu0 %v3358
    %3389 = vmatprep.subr.mxu0 0.0
    %3390 = vmatpush1.msra.mxu0 %v3357
    %3391 = vmatprep.subr.mxu0 0.0
    %3392 = vmatpush1.msra.mxu0 %v3356
    %3393 = vmatprep.subr.mxu0 0.0
    %3394 = vmatpush1.msra.mxu0 %v3355
    %3395 = vmatprep.subr.mxu0 0.0
    %3396 = vmatpush1.msra.mxu0 %v3354
    %3397 = vmatprep.subr.mxu0 0.0
    %3398 = vmatpush1.msra.mxu0 %v3353
    %3399 = vmatprep.subr.mxu0 0.0
    %3400 = vmatpush1.msra.mxu0 %v3352
    %3401 = vmatprep.subr.mxu0 0.0
    %3402 = vmatpush1.msra.mxu0 %v3351
    %3403 = vmatprep.subr.mxu0 0.0
    %3404 = vmatpush1.msra.mxu0 %v3350
    %3405 = vmatprep.subr.mxu0 0.0
    %3406 = vmatpush1.msra.mxu0 %v3349
    %3407 = vmatprep.subr.mxu0 0.0
    %3408 = vmatpush2.msra.mxu0 0.0
    %3409 = vmatprep.subr.mxu0 0.0
    %3410 = vmatpush2.msra.mxu0 0.0
    %3411 = vmatprep.subr.mxu0 0.0
    %3412 = vmatpush2.msra.mxu0 0.0
    %3413 = vmatprep.subr.mxu0 0.0
    %3414 = vmatpush2.msra.mxu0 0.0
    %3415 = vmatprep.subr.mxu0 0.0
    %3416 = vmatpush2.msra.mxu0 0.0
    %3417 = vmatprep.subr.mxu0 0.0
    %3418 = vmatpush2.msra.mxu0 0.0
    %3419 = vmatprep.subr.mxu0 0.0
    %3420 = vmatpush2.msra.mxu0 0.0
    %3421 = vmatprep.subr.mxu0 0.0
    %3422 = vmatpush2.msra.mxu0 0.0
    %3423 = vmatprep.subr.mxu0 0.0
    %3424 = vmatpush2.msra.mxu0 0.0
    %3425 = vmatprep.subr.mxu0 0.0
    %3426 = vmatpush2.msra.mxu0 %v3371
    %3427 = vmatprep.subr.mxu0 0.0
    %3428 = vmatpush2.msra.mxu0 %v3370
    %3429 = vmatprep.subr.mxu0 0.0
    %3430 = vmatpush2.msra.mxu0 %v3369
    %3431 = vmatprep.subr.mxu0 0.0
    %3432 = vmatpush2.msra.mxu0 %v3368
    %3433 = vmatprep.subr.mxu0 0.0
    %3434 = vmatpush2.msra.mxu0 %v3367
    %3435 = vmatprep.subr.mxu0 0.0
    %3436 = vmatpush2.msra.mxu0 %v3366
    %3437 = vmatprep.subr.mxu0 0.0
    %3438 = vmatpush2.msra.mxu0 %v3365
    %3439 = vmatprep.mubr.f32.mxu0 %v3373
    %3440 = vmatmul.mubr.f32.gmra.mxu0 %v3346
    %v3441 = vpop.f32.mrf.mxu0
    %v3442 = vadd.f32 0.0, %v3441
    %v3443 = vpop.f32.mrf.mxu0
    %3444 = vdwg.mxu0
    %v3445 = vadd.f32 %v3330, %v3442
    %v3446 = vld [vmem:[#allocation3 + $0xa0] sm:$0xff]
    %v3447 = vld [vmem:[#allocation3 + $0xa8] sm:$0xff]
    %v3448 = vld [vmem:[#allocation3 + $0xb0] sm:$0xff]
    %v3449 = vld [vmem:[#allocation3 + $0xb8] sm:$0xff]
    %v3450 = vmax.f32 %v3446, %v3448
    %v3451 = vmax.f32 %v3447, %v3449
    %3454 = vrot.lane.b32.xlu0 %v3450, 120
    %v3455 = vpop.permute.xlu0 %3454
    %3456 = vrot.lane.b32.xlu0 %v3451, 120
    %v3457 = vpop.permute.xlu0 %3456
    %v3458 = vsel %vm2884, %v3455, %v3457
    %v3461 = vmax.f32 %v3450, %v3458
    %v3462 = vmax.f32 %v3451, %v3457
    %s3463 = scalar_lea.vmem [#allocation10], 920
    %v3464 = vld [vmem:[%s3463] sm:$0xff]
    %v3465 = vld [vmem:[%s3463 + $0x8] sm:$0xff]
    %v3466 = vld [vmem:[%s3463 + $0x10] sm:$0xff]
    %v3467 = vld [vmem:[%s3463 + $0x18] sm:$0xff]
    %v3468 = vld [vmem:[%s3463 + $0x20] sm:$0xff]
    %v3469 = vld [vmem:[%s3463 + $0x28] sm:$0xff]
    %v3470 = vld [vmem:[%s3463 + $0x30] sm:$0xff]
    %v3471 = vld [vmem:[%s3463 + $0x38] sm:$0xff]
    %v3472 = vld [vmem:[%s3463 + $0x40] sm:$0xff]
    %v3473 = vld [vmem:[%s3463 + $0x48] sm:$0xff]
    %v3474 = vld [vmem:[%s3463 + $0x50] sm:$0xff]
    %v3475 = vld [vmem:[%s3463 + $0x58] sm:$0xff]
    %v3476 = vld [vmem:[%s3463 + $0x60] sm:$0xff]
    %v3477 = vld [vmem:[%s3463 + $0x68] sm:$0xff]
    %v3478 = vld [vmem:[%s3463 + $0x70] sm:$0xff]
    %v3479 = vld [vmem:[%s3463 + $0x78] sm:$0xff]
    %v3480 = vld [vmem:[%s3463 + $0x80] sm:$0xff]
    %v3481 = vld [vmem:[%s3463 + $0x88] sm:$0xff]
    %v3482 = vld [vmem:[%s3463 + $0x90] sm:$0xff]
    %v3483 = vld [vmem:[%s3463 + $0x98] sm:$0xff]
    %v3484 = vld [vmem:[%s3463 + $0xa0] sm:$0xff]
    %v3485 = vld [vmem:[%s3463 + $0xa8] sm:$0xff]
    %v3486 = vld [vmem:[%s3463 + $0xb0] sm:$0xff]
    %v3488 = vsel %vm2954, %v3462, 0
    %3490 = vmatprep.subr.mxu0 0.0
    %3491 = vmatpush1.msra.mxu0 %v3479
    %3492 = vmatprep.subr.mxu0 0.0
    %3493 = vmatpush1.msra.mxu0 %v3478
    %3494 = vmatprep.subr.mxu0 0.0
    %3495 = vmatpush1.msra.mxu0 %v3477
    %3496 = vmatprep.subr.mxu0 0.0
    %3497 = vmatpush1.msra.mxu0 %v3476
    %3498 = vmatprep.subr.mxu0 0.0
    %3499 = vmatpush1.msra.mxu0 %v3475
    %3500 = vmatprep.subr.mxu0 0.0
    %3501 = vmatpush1.msra.mxu0 %v3474
    %3502 = vmatprep.subr.mxu0 0.0
    %3503 = vmatpush1.msra.mxu0 %v3473
    %3504 = vmatprep.subr.mxu0 0.0
    %3505 = vmatpush1.msra.mxu0 %v3472
    %3506 = vmatprep.subr.mxu0 0.0
    %3507 = vmatpush1.msra.mxu0 %v3471
    %3508 = vmatprep.subr.mxu0 0.0
    %3509 = vmatpush1.msra.mxu0 %v3470
    %3510 = vmatprep.subr.mxu0 0.0
    %3511 = vmatpush1.msra.mxu0 %v3469
    %3512 = vmatprep.subr.mxu0 0.0
    %3513 = vmatpush1.msra.mxu0 %v3468
    %3514 = vmatprep.subr.mxu0 0.0
    %3515 = vmatpush1.msra.mxu0 %v3467
    %3516 = vmatprep.subr.mxu0 0.0
    %3517 = vmatpush1.msra.mxu0 %v3466
    %3518 = vmatprep.subr.mxu0 0.0
    %3519 = vmatpush1.msra.mxu0 %v3465
    %3520 = vmatprep.subr.mxu0 0.0
    %3521 = vmatpush1.msra.mxu0 %v3464
    %3522 = vmatprep.subr.mxu0 0.0
    %3523 = vmatpush2.msra.mxu0 0.0
    %3524 = vmatprep.subr.mxu0 0.0
    %3525 = vmatpush2.msra.mxu0 0.0
    %3526 = vmatprep.subr.mxu0 0.0
    %3527 = vmatpush2.msra.mxu0 0.0
    %3528 = vmatprep.subr.mxu0 0.0
    %3529 = vmatpush2.msra.mxu0 0.0
    %3530 = vmatprep.subr.mxu0 0.0
    %3531 = vmatpush2.msra.mxu0 0.0
    %3532 = vmatprep.subr.mxu0 0.0
    %3533 = vmatpush2.msra.mxu0 0.0
    %3534 = vmatprep.subr.mxu0 0.0
    %3535 = vmatpush2.msra.mxu0 0.0
    %3536 = vmatprep.subr.mxu0 0.0
    %3537 = vmatpush2.msra.mxu0 0.0
    %3538 = vmatprep.subr.mxu0 0.0
    %3539 = vmatpush2.msra.mxu0 0.0
    %3540 = vmatprep.subr.mxu0 0.0
    %3541 = vmatpush2.msra.mxu0 %v3486
    %3542 = vmatprep.subr.mxu0 0.0
    %3543 = vmatpush2.msra.mxu0 %v3485
    %3544 = vmatprep.subr.mxu0 0.0
    %3545 = vmatpush2.msra.mxu0 %v3484
    %3546 = vmatprep.subr.mxu0 0.0
    %3547 = vmatpush2.msra.mxu0 %v3483
    %3548 = vmatprep.subr.mxu0 0.0
    %3549 = vmatpush2.msra.mxu0 %v3482
    %3550 = vmatprep.subr.mxu0 0.0
    %3551 = vmatpush2.msra.mxu0 %v3481
    %3552 = vmatprep.subr.mxu0 0.0
    %3553 = vmatpush2.msra.mxu0 %v3480
    %3554 = vmatprep.mubr.f32.mxu0 %v3488
    %3555 = vmatmul.mubr.f32.gmra.mxu0 %v3461
    %v3556 = vpop.f32.mrf.mxu0
    %v3557 = vadd.f32 0.0, %v3556
    %v3558 = vpop.f32.mrf.mxu0
    %3559 = vdwg.mxu0
    %v3560 = vadd.f32 %v3445, %v3557
    %v3561 = vld [vmem:[#allocation3 + $0xc0] sm:$0xff]
    %v3562 = vld [vmem:[#allocation3 + $0xc8] sm:$0xff]
    %v3563 = vld [vmem:[#allocation3 + $0xd0] sm:$0xff]
    %v3564 = vld [vmem:[#allocation3 + $0xd8] sm:$0xff]
    %v3565 = vmax.f32 %v3561, %v3563
    %v3566 = vmax.f32 %v3562, %v3564
    %3569 = vrot.lane.b32.xlu0 %v3565, 120
    %v3570 = vpop.permute.xlu0 %3569
    %3571 = vrot.lane.b32.xlu0 %v3566, 120
    %v3572 = vpop.permute.xlu0 %3571
    %v3573 = vsel %vm2884, %v3570, %v3572
    %v3576 = vmax.f32 %v3565, %v3573
    %v3577 = vmax.f32 %v3566, %v3572
    %s3578 = scalar_lea.vmem [#allocation10], 1104
    %v3579 = vld [vmem:[%s3578] sm:$0xff]
    %v3580 = vld [vmem:[%s3578 + $0x8] sm:$0xff]
    %v3581 = vld [vmem:[%s3578 + $0x10] sm:$0xff]
    %v3582 = vld [vmem:[%s3578 + $0x18] sm:$0xff]
    %v3583 = vld [vmem:[%s3578 + $0x20] sm:$0xff]
    %v3584 = vld [vmem:[%s3578 + $0x28] sm:$0xff]
    %v3585 = vld [vmem:[%s3578 + $0x30] sm:$0xff]
    %v3586 = vld [vmem:[%s3578 + $0x38] sm:$0xff]
    %v3587 = vld [vmem:[%s3578 + $0x40] sm:$0xff]
    %v3588 = vld [vmem:[%s3578 + $0x48] sm:$0xff]
    %v3589 = vld [vmem:[%s3578 + $0x50] sm:$0xff]
    %v3590 = vld [vmem:[%s3578 + $0x58] sm:$0xff]
    %v3591 = vld [vmem:[%s3578 + $0x60] sm:$0xff]
    %v3592 = vld [vmem:[%s3578 + $0x68] sm:$0xff]
    %v3593 = vld [vmem:[%s3578 + $0x70] sm:$0xff]
    %v3594 = vld [vmem:[%s3578 + $0x78] sm:$0xff]
    %v3595 = vld [vmem:[%s3578 + $0x80] sm:$0xff]
    %v3596 = vld [vmem:[%s3578 + $0x88] sm:$0xff]
    %v3597 = vld [vmem:[%s3578 + $0x90] sm:$0xff]
    %v3598 = vld [vmem:[%s3578 + $0x98] sm:$0xff]
    %v3599 = vld [vmem:[%s3578 + $0xa0] sm:$0xff]
    %v3600 = vld [vmem:[%s3578 + $0xa8] sm:$0xff]
    %v3601 = vld [vmem:[%s3578 + $0xb0] sm:$0xff]
    %v3603 = vsel %vm2954, %v3577, 0
    %3605 = vmatprep.subr.mxu0 0.0
    %3606 = vmatpush1.msra.mxu0 %v3594
    %3607 = vmatprep.subr.mxu0 0.0
    %3608 = vmatpush1.msra.mxu0 %v3593
    %3609 = vmatprep.subr.mxu0 0.0
    %3610 = vmatpush1.msra.mxu0 %v3592
    %3611 = vmatprep.subr.mxu0 0.0
    %3612 = vmatpush1.msra.mxu0 %v3591
    %3613 = vmatprep.subr.mxu0 0.0
    %3614 = vmatpush1.msra.mxu0 %v3590
    %3615 = vmatprep.subr.mxu0 0.0
    %3616 = vmatpush1.msra.mxu0 %v3589
    %3617 = vmatprep.subr.mxu0 0.0
    %3618 = vmatpush1.msra.mxu0 %v3588
    %3619 = vmatprep.subr.mxu0 0.0
    %3620 = vmatpush1.msra.mxu0 %v3587
    %3621 = vmatprep.subr.mxu0 0.0
    %3622 = vmatpush1.msra.mxu0 %v3586
    %3623 = vmatprep.subr.mxu0 0.0
    %3624 = vmatpush1.msra.mxu0 %v3585
    %3625 = vmatprep.subr.mxu0 0.0
    %3626 = vmatpush1.msra.mxu0 %v3584
    %3627 = vmatprep.subr.mxu0 0.0
    %3628 = vmatpush1.msra.mxu0 %v3583
    %3629 = vmatprep.subr.mxu0 0.0
    %3630 = vmatpush1.msra.mxu0 %v3582
    %3631 = vmatprep.subr.mxu0 0.0
    %3632 = vmatpush1.msra.mxu0 %v3581
    %3633 = vmatprep.subr.mxu0 0.0
    %3634 = vmatpush1.msra.mxu0 %v3580
    %3635 = vmatprep.subr.mxu0 0.0
    %3636 = vmatpush1.msra.mxu0 %v3579
    %3637 = vmatprep.subr.mxu0 0.0
    %3638 = vmatpush2.msra.mxu0 0.0
    %3639 = vmatprep.subr.mxu0 0.0
    %3640 = vmatpush2.msra.mxu0 0.0
    %3641 = vmatprep.subr.mxu0 0.0
    %3642 = vmatpush2.msra.mxu0 0.0
    %3643 = vmatprep.subr.mxu0 0.0
    %3644 = vmatpush2.msra.mxu0 0.0
    %3645 = vmatprep.subr.mxu0 0.0
    %3646 = vmatpush2.msra.mxu0 0.0
    %3647 = vmatprep.subr.mxu0 0.0
    %3648 = vmatpush2.msra.mxu0 0.0
    %3649 = vmatprep.subr.mxu0 0.0
    %3650 = vmatpush2.msra.mxu0 0.0
    %3651 = vmatprep.subr.mxu0 0.0
    %3652 = vmatpush2.msra.mxu0 0.0
    %3653 = vmatprep.subr.mxu0 0.0
    %3654 = vmatpush2.msra.mxu0 0.0
    %3655 = vmatprep.subr.mxu0 0.0
    %3656 = vmatpush2.msra.mxu0 %v3601
    %3657 = vmatprep.subr.mxu0 0.0
    %3658 = vmatpush2.msra.mxu0 %v3600
    %3659 = vmatprep.subr.mxu0 0.0
    %3660 = vmatpush2.msra.mxu0 %v3599
    %3661 = vmatprep.subr.mxu0 0.0
    %3662 = vmatpush2.msra.mxu0 %v3598
    %3663 = vmatprep.subr.mxu0 0.0
    %3664 = vmatpush2.msra.mxu0 %v3597
    %3665 = vmatprep.subr.mxu0 0.0
    %3666 = vmatpush2.msra.mxu0 %v3596
    %3667 = vmatprep.subr.mxu0 0.0
    %3668 = vmatpush2.msra.mxu0 %v3595
    %3669 = vmatprep.mubr.f32.mxu0 %v3603
    %3670 = vmatmul.mubr.f32.gmra.mxu0 %v3576
    %v3671 = vpop.f32.mrf.mxu0
    %v3672 = vadd.f32 0.0, %v3671
    %v3673 = vpop.f32.mrf.mxu0
    %3674 = vdwg.mxu0
    %v3675 = vadd.f32 %v3560, %v3672
    %v3676 = vld [vmem:[#allocation3 + $0xe0] sm:$0xff]
    %v3677 = vld [vmem:[#allocation3 + $0xe8] sm:$0xff]
    %v3678 = vld [vmem:[#allocation3 + $0xf0] sm:$0xff]
    %v3679 = vld [vmem:[#allocation3 + $0xf8] sm:$0xff]
    %v3680 = vmax.f32 %v3676, %v3678
    %v3681 = vmax.f32 %v3677, %v3679
    %3684 = vrot.lane.b32.xlu0 %v3680, 120
    %v3685 = vpop.permute.xlu0 %3684
    %3686 = vrot.lane.b32.xlu0 %v3681, 120
    %v3687 = vpop.permute.xlu0 %3686
    %v3688 = vsel %vm2884, %v3685, %v3687
    %v3691 = vmax.f32 %v3680, %v3688
    %v3692 = vmax.f32 %v3681, %v3687
    %s3693 = scalar_lea.vmem [#allocation10], 1288
    %v3694 = vld [vmem:[%s3693] sm:$0xff]
    %v3695 = vld [vmem:[%s3693 + $0x8] sm:$0xff]
    %v3696 = vld [vmem:[%s3693 + $0x10] sm:$0xff]
    %v3697 = vld [vmem:[%s3693 + $0x18] sm:$0xff]
    %v3698 = vld [vmem:[%s3693 + $0x20] sm:$0xff]
    %v3699 = vld [vmem:[%s3693 + $0x28] sm:$0xff]
    %v3700 = vld [vmem:[%s3693 + $0x30] sm:$0xff]
    %v3701 = vld [vmem:[%s3693 + $0x38] sm:$0xff]
    %v3702 = vld [vmem:[%s3693 + $0x40] sm:$0xff]
    %v3703 = vld [vmem:[%s3693 + $0x48] sm:$0xff]
    %v3704 = vld [vmem:[%s3693 + $0x50] sm:$0xff]
    %v3705 = vld [vmem:[%s3693 + $0x58] sm:$0xff]
    %v3706 = vld [vmem:[%s3693 + $0x60] sm:$0xff]
    %v3707 = vld [vmem:[%s3693 + $0x68] sm:$0xff]
    %v3708 = vld [vmem:[%s3693 + $0x70] sm:$0xff]
    %v3709 = vld [vmem:[%s3693 + $0x78] sm:$0xff]
    %v3710 = vld [vmem:[%s3693 + $0x80] sm:$0xff]
    %v3711 = vld [vmem:[%s3693 + $0x88] sm:$0xff]
    %v3712 = vld [vmem:[%s3693 + $0x90] sm:$0xff]
    %v3713 = vld [vmem:[%s3693 + $0x98] sm:$0xff]
    %v3714 = vld [vmem:[%s3693 + $0xa0] sm:$0xff]
    %v3715 = vld [vmem:[%s3693 + $0xa8] sm:$0xff]
    %v3716 = vld [vmem:[%s3693 + $0xb0] sm:$0xff]
    %v3718 = vsel %vm2954, %v3692, 0
    %3720 = vmatprep.subr.mxu0 0.0
    %3721 = vmatpush1.msra.mxu0 %v3709
    %3722 = vmatprep.subr.mxu0 0.0
    %3723 = vmatpush1.msra.mxu0 %v3708
    %3724 = vmatprep.subr.mxu0 0.0
    %3725 = vmatpush1.msra.mxu0 %v3707
    %3726 = vmatprep.subr.mxu0 0.0
    %3727 = vmatpush1.msra.mxu0 %v3706
    %3728 = vmatprep.subr.mxu0 0.0
    %3729 = vmatpush1.msra.mxu0 %v3705
    %3730 = vmatprep.subr.mxu0 0.0
    %3731 = vmatpush1.msra.mxu0 %v3704
    %3732 = vmatprep.subr.mxu0 0.0
    %3733 = vmatpush1.msra.mxu0 %v3703
    %3734 = vmatprep.subr.mxu0 0.0
    %3735 = vmatpush1.msra.mxu0 %v3702
    %3736 = vmatprep.subr.mxu0 0.0
    %3737 = vmatpush1.msra.mxu0 %v3701
    %3738 = vmatprep.subr.mxu0 0.0
    %3739 = vmatpush1.msra.mxu0 %v3700
    %3740 = vmatprep.subr.mxu0 0.0
    %3741 = vmatpush1.msra.mxu0 %v3699
    %3742 = vmatprep.subr.mxu0 0.0
    %3743 = vmatpush1.msra.mxu0 %v3698
    %3744 = vmatprep.subr.mxu0 0.0
    %3745 = vmatpush1.msra.mxu0 %v3697
    %3746 = vmatprep.subr.mxu0 0.0
    %3747 = vmatpush1.msra.mxu0 %v3696
    %3748 = vmatprep.subr.mxu0 0.0
    %3749 = vmatpush1.msra.mxu0 %v3695
    %3750 = vmatprep.subr.mxu0 0.0
    %3751 = vmatpush1.msra.mxu0 %v3694
    %3752 = vmatprep.subr.mxu0 0.0
    %3753 = vmatpush2.msra.mxu0 0.0
    %3754 = vmatprep.subr.mxu0 0.0
    %3755 = vmatpush2.msra.mxu0 0.0
    %3756 = vmatprep.subr.mxu0 0.0
    %3757 = vmatpush2.msra.mxu0 0.0
    %3758 = vmatprep.subr.mxu0 0.0
    %3759 = vmatpush2.msra.mxu0 0.0
    %3760 = vmatprep.subr.mxu0 0.0
    %3761 = vmatpush2.msra.mxu0 0.0
    %3762 = vmatprep.subr.mxu0 0.0
    %3763 = vmatpush2.msra.mxu0 0.0
    %3764 = vmatprep.subr.mxu0 0.0
    %3765 = vmatpush2.msra.mxu0 0.0
    %3766 = vmatprep.subr.mxu0 0.0
    %3767 = vmatpush2.msra.mxu0 0.0
    %3768 = vmatprep.subr.mxu0 0.0
    %3769 = vmatpush2.msra.mxu0 0.0
    %3770 = vmatprep.subr.mxu0 0.0
    %3771 = vmatpush2.msra.mxu0 %v3716
    %3772 = vmatprep.subr.mxu0 0.0
    %3773 = vmatpush2.msra.mxu0 %v3715
    %3774 = vmatprep.subr.mxu0 0.0
    %3775 = vmatpush2.msra.mxu0 %v3714
    %3776 = vmatprep.subr.mxu0 0.0
    %3777 = vmatpush2.msra.mxu0 %v3713
    %3778 = vmatprep.subr.mxu0 0.0
    %3779 = vmatpush2.msra.mxu0 %v3712
    %3780 = vmatprep.subr.mxu0 0.0
    %3781 = vmatpush2.msra.mxu0 %v3711
    %3782 = vmatprep.subr.mxu0 0.0
    %3783 = vmatpush2.msra.mxu0 %v3710
    %3784 = vmatprep.mubr.f32.mxu0 %v3718
    %3785 = vmatmul.mubr.f32.gmra.mxu0 %v3691
    %v3786 = vpop.f32.mrf.mxu0
    %v3787 = vadd.f32 0.0, %v3786
    %v3788 = vpop.f32.mrf.mxu0
    %3789 = vdwg.mxu0
    %v3790 = vadd.f32 %v3675, %v3787
    %v3791 = vld [vmem:[#allocation3 + $0x100] sm:$0xff]
    %v3792 = vld [vmem:[#allocation3 + $0x108] sm:$0xff]
    %v3793 = vld [vmem:[#allocation3 + $0x110] sm:$0xff]
    %v3794 = vld [vmem:[#allocation3 + $0x118] sm:$0xff]
    %v3795 = vmax.f32 %v3791, %v3793
    %v3796 = vmax.f32 %v3792, %v3794
    %3799 = vrot.lane.b32.xlu0 %v3795, 120
    %v3800 = vpop.permute.xlu0 %3799
    %3801 = vrot.lane.b32.xlu0 %v3796, 120
    %v3802 = vpop.permute.xlu0 %3801
    %v3803 = vsel %vm2884, %v3800, %v3802
    %v3806 = vmax.f32 %v3795, %v3803
    %v3807 = vmax.f32 %v3796, %v3802
    %s3808 = scalar_lea.vmem [#allocation10], 1472
    %v3809 = vld [vmem:[%s3808] sm:$0xff]
    %v3810 = vld [vmem:[%s3808 + $0x8] sm:$0xff]
    %v3811 = vld [vmem:[%s3808 + $0x10] sm:$0xff]
    %v3812 = vld [vmem:[%s3808 + $0x18] sm:$0xff]
    %v3813 = vld [vmem:[%s3808 + $0x20] sm:$0xff]
    %v3814 = vld [vmem:[%s3808 + $0x28] sm:$0xff]
    %v3815 = vld [vmem:[%s3808 + $0x30] sm:$0xff]
    %v3816 = vld [vmem:[%s3808 + $0x38] sm:$0xff]
    %v3817 = vld [vmem:[%s3808 + $0x40] sm:$0xff]
    %v3818 = vld [vmem:[%s3808 + $0x48] sm:$0xff]
    %v3819 = vld [vmem:[%s3808 + $0x50] sm:$0xff]
    %v3820 = vld [vmem:[%s3808 + $0x58] sm:$0xff]
    %v3821 = vld [vmem:[%s3808 + $0x60] sm:$0xff]
    %v3822 = vld [vmem:[%s3808 + $0x68] sm:$0xff]
    %v3823 = vld [vmem:[%s3808 + $0x70] sm:$0xff]
    %v3824 = vld [vmem:[%s3808 + $0x78] sm:$0xff]
    %v3825 = vld [vmem:[%s3808 + $0x80] sm:$0xff]
    %v3826 = vld [vmem:[%s3808 + $0x88] sm:$0xff]
    %v3827 = vld [vmem:[%s3808 + $0x90] sm:$0xff]
    %v3828 = vld [vmem:[%s3808 + $0x98] sm:$0xff]
    %v3829 = vld [vmem:[%s3808 + $0xa0] sm:$0xff]
    %v3830 = vld [vmem:[%s3808 + $0xa8] sm:$0xff]
    %v3831 = vld [vmem:[%s3808 + $0xb0] sm:$0xff]
    %v3833 = vsel %vm2954, %v3807, 0
    %3835 = vmatprep.subr.mxu0 0.0
    %3836 = vmatpush1.msra.mxu0 %v3824
    %3837 = vmatprep.subr.mxu0 0.0
    %3838 = vmatpush1.msra.mxu0 %v3823
    %3839 = vmatprep.subr.mxu0 0.0
    %3840 = vmatpush1.msra.mxu0 %v3822
    %3841 = vmatprep.subr.mxu0 0.0
    %3842 = vmatpush1.msra.mxu0 %v3821
    %3843 = vmatprep.subr.mxu0 0.0
    %3844 = vmatpush1.msra.mxu0 %v3820
    %3845 = vmatprep.subr.mxu0 0.0
    %3846 = vmatpush1.msra.mxu0 %v3819
    %3847 = vmatprep.subr.mxu0 0.0
    %3848 = vmatpush1.msra.mxu0 %v3818
    %3849 = vmatprep.subr.mxu0 0.0
    %3850 = vmatpush1.msra.mxu0 %v3817
    %3851 = vmatprep.subr.mxu0 0.0
    %3852 = vmatpush1.msra.mxu0 %v3816
    %3853 = vmatprep.subr.mxu0 0.0
    %3854 = vmatpush1.msra.mxu0 %v3815
    %3855 = vmatprep.subr.mxu0 0.0
    %3856 = vmatpush1.msra.mxu0 %v3814
    %3857 = vmatprep.subr.mxu0 0.0
    %3858 = vmatpush1.msra.mxu0 %v3813
    %3859 = vmatprep.subr.mxu0 0.0
    %3860 = vmatpush1.msra.mxu0 %v3812
    %3861 = vmatprep.subr.mxu0 0.0
    %3862 = vmatpush1.msra.mxu0 %v3811
    %3863 = vmatprep.subr.mxu0 0.0
    %3864 = vmatpush1.msra.mxu0 %v3810
    %3865 = vmatprep.subr.mxu0 0.0
    %3866 = vmatpush1.msra.mxu0 %v3809
    %3867 = vmatprep.subr.mxu0 0.0
    %3868 = vmatpush2.msra.mxu0 0.0
    %3869 = vmatprep.subr.mxu0 0.0
    %3870 = vmatpush2.msra.mxu0 0.0
    %3871 = vmatprep.subr.mxu0 0.0
    %3872 = vmatpush2.msra.mxu0 0.0
    %3873 = vmatprep.subr.mxu0 0.0
    %3874 = vmatpush2.msra.mxu0 0.0
    %3875 = vmatprep.subr.mxu0 0.0
    %3876 = vmatpush2.msra.mxu0 0.0
    %3877 = vmatprep.subr.mxu0 0.0
    %3878 = vmatpush2.msra.mxu0 0.0
    %3879 = vmatprep.subr.mxu0 0.0
    %3880 = vmatpush2.msra.mxu0 0.0
    %3881 = vmatprep.subr.mxu0 0.0
    %3882 = vmatpush2.msra.mxu0 0.0
    %3883 = vmatprep.subr.mxu0 0.0
    %3884 = vmatpush2.msra.mxu0 0.0
    %3885 = vmatprep.subr.mxu0 0.0
    %3886 = vmatpush2.msra.mxu0 %v3831
    %3887 = vmatprep.subr.mxu0 0.0
    %3888 = vmatpush2.msra.mxu0 %v3830
    %3889 = vmatprep.subr.mxu0 0.0
    %3890 = vmatpush2.msra.mxu0 %v3829
    %3891 = vmatprep.subr.mxu0 0.0
    %3892 = vmatpush2.msra.mxu0 %v3828
    %3893 = vmatprep.subr.mxu0 0.0
    %3894 = vmatpush2.msra.mxu0 %v3827
    %3895 = vmatprep.subr.mxu0 0.0
    %3896 = vmatpush2.msra.mxu0 %v3826
    %3897 = vmatprep.subr.mxu0 0.0
    %3898 = vmatpush2.msra.mxu0 %v3825
    %3899 = vmatprep.mubr.f32.mxu0 %v3833
    %3900 = vmatmul.mubr.f32.gmra.mxu0 %v3806
    %v3901 = vpop.f32.mrf.mxu0
    %v3902 = vadd.f32 0.0, %v3901
    %v3903 = vpop.f32.mrf.mxu0
    %3904 = vdwg.mxu0
    %v3905 = vadd.f32 %v3790, %v3902
    %v3906 = vld [vmem:[#allocation3 + $0x120] sm:$0xff]
    %v3907 = vld [vmem:[#allocation3 + $0x128] sm:$0xff]
    %v3908 = vld [vmem:[#allocation3 + $0x130] sm:$0xff]
    %v3909 = vld [vmem:[#allocation3 + $0x138] sm:$0xff]
    %v3910 = vmax.f32 %v3906, %v3908
    %v3911 = vmax.f32 %v3907, %v3909
    %3914 = vrot.lane.b32.xlu0 %v3910, 120
    %v3915 = vpop.permute.xlu0 %3914
    %3916 = vrot.lane.b32.xlu0 %v3911, 120
    %v3917 = vpop.permute.xlu0 %3916
    %v3918 = vsel %vm2884, %v3915, %v3917
    %v3921 = vmax.f32 %v3910, %v3918
    %v3922 = vmax.f32 %v3911, %v3917
    %s3923 = scalar_lea.vmem [#allocation10], 1656
    %v3924 = vld [vmem:[%s3923] sm:$0xff]
    %v3925 = vld [vmem:[%s3923 + $0x8] sm:$0xff]
    %v3926 = vld [vmem:[%s3923 + $0x10] sm:$0xff]
    %v3927 = vld [vmem:[%s3923 + $0x18] sm:$0xff]
    %v3928 = vld [vmem:[%s3923 + $0x20] sm:$0xff]
    %v3929 = vld [vmem:[%s3923 + $0x28] sm:$0xff]
    %v3930 = vld [vmem:[%s3923 + $0x30] sm:$0xff]
    %v3931 = vld [vmem:[%s3923 + $0x38] sm:$0xff]
    %v3932 = vld [vmem:[%s3923 + $0x40] sm:$0xff]
    %v3933 = vld [vmem:[%s3923 + $0x48] sm:$0xff]
    %v3934 = vld [vmem:[%s3923 + $0x50] sm:$0xff]
    %v3935 = vld [vmem:[%s3923 + $0x58] sm:$0xff]
    %v3936 = vld [vmem:[%s3923 + $0x60] sm:$0xff]
    %v3937 = vld [vmem:[%s3923 + $0x68] sm:$0xff]
    %v3938 = vld [vmem:[%s3923 + $0x70] sm:$0xff]
    %v3939 = vld [vmem:[%s3923 + $0x78] sm:$0xff]
    %v3940 = vld [vmem:[%s3923 + $0x80] sm:$0xff]
    %v3941 = vld [vmem:[%s3923 + $0x88] sm:$0xff]
    %v3942 = vld [vmem:[%s3923 + $0x90] sm:$0xff]
    %v3943 = vld [vmem:[%s3923 + $0x98] sm:$0xff]
    %v3944 = vld [vmem:[%s3923 + $0xa0] sm:$0xff]
    %v3945 = vld [vmem:[%s3923 + $0xa8] sm:$0xff]
    %v3946 = vld [vmem:[%s3923 + $0xb0] sm:$0xff]
    %v3948 = vsel %vm2954, %v3922, 0
    %3950 = vmatprep.subr.mxu0 0.0
    %3951 = vmatpush1.msra.mxu0 %v3939
    %3952 = vmatprep.subr.mxu0 0.0
    %3953 = vmatpush1.msra.mxu0 %v3938
    %3954 = vmatprep.subr.mxu0 0.0
    %3955 = vmatpush1.msra.mxu0 %v3937
    %3956 = vmatprep.subr.mxu0 0.0
    %3957 = vmatpush1.msra.mxu0 %v3936
    %3958 = vmatprep.subr.mxu0 0.0
    %3959 = vmatpush1.msra.mxu0 %v3935
    %3960 = vmatprep.subr.mxu0 0.0
    %3961 = vmatpush1.msra.mxu0 %v3934
    %3962 = vmatprep.subr.mxu0 0.0
    %3963 = vmatpush1.msra.mxu0 %v3933
    %3964 = vmatprep.subr.mxu0 0.0
    %3965 = vmatpush1.msra.mxu0 %v3932
    %3966 = vmatprep.subr.mxu0 0.0
    %3967 = vmatpush1.msra.mxu0 %v3931
    %3968 = vmatprep.subr.mxu0 0.0
    %3969 = vmatpush1.msra.mxu0 %v3930
    %3970 = vmatprep.subr.mxu0 0.0
    %3971 = vmatpush1.msra.mxu0 %v3929
    %3972 = vmatprep.subr.mxu0 0.0
    %3973 = vmatpush1.msra.mxu0 %v3928
    %3974 = vmatprep.subr.mxu0 0.0
    %3975 = vmatpush1.msra.mxu0 %v3927
    %3976 = vmatprep.subr.mxu0 0.0
    %3977 = vmatpush1.msra.mxu0 %v3926
    %3978 = vmatprep.subr.mxu0 0.0
    %3979 = vmatpush1.msra.mxu0 %v3925
    %3980 = vmatprep.subr.mxu0 0.0
    %3981 = vmatpush1.msra.mxu0 %v3924
    %3982 = vmatprep.subr.mxu0 0.0
    %3983 = vmatpush2.msra.mxu0 0.0
    %3984 = vmatprep.subr.mxu0 0.0
    %3985 = vmatpush2.msra.mxu0 0.0
    %3986 = vmatprep.subr.mxu0 0.0
    %3987 = vmatpush2.msra.mxu0 0.0
    %3988 = vmatprep.subr.mxu0 0.0
    %3989 = vmatpush2.msra.mxu0 0.0
    %3990 = vmatprep.subr.mxu0 0.0
    %3991 = vmatpush2.msra.mxu0 0.0
    %3992 = vmatprep.subr.mxu0 0.0
    %3993 = vmatpush2.msra.mxu0 0.0
    %3994 = vmatprep.subr.mxu0 0.0
    %3995 = vmatpush2.msra.mxu0 0.0
    %3996 = vmatprep.subr.mxu0 0.0
    %3997 = vmatpush2.msra.mxu0 0.0
    %3998 = vmatprep.subr.mxu0 0.0
    %3999 = vmatpush2.msra.mxu0 0.0
    %4000 = vmatprep.subr.mxu0 0.0
    %4001 = vmatpush2.msra.mxu0 %v3946
    %4002 = vmatprep.subr.mxu0 0.0
    %4003 = vmatpush2.msra.mxu0 %v3945
    %4004 = vmatprep.subr.mxu0 0.0
    %4005 = vmatpush2.msra.mxu0 %v3944
    %4006 = vmatprep.subr.mxu0 0.0
    %4007 = vmatpush2.msra.mxu0 %v3943
    %4008 = vmatprep.subr.mxu0 0.0
    %4009 = vmatpush2.msra.mxu0 %v3942
    %4010 = vmatprep.subr.mxu0 0.0
    %4011 = vmatpush2.msra.mxu0 %v3941
    %4012 = vmatprep.subr.mxu0 0.0
    %4013 = vmatpush2.msra.mxu0 %v3940
    %4014 = vmatprep.mubr.f32.mxu0 %v3948
    %4015 = vmatmul.mubr.f32.gmra.mxu0 %v3921
    %v4016 = vpop.f32.mrf.mxu0
    %v4017 = vadd.f32 0.0, %v4016
    %v4018 = vpop.f32.mrf.mxu0
    %4019 = vdwg.mxu0
    %v4020 = vadd.f32 %v3905, %v4017
    %v4021 = vld [vmem:[#allocation3 + $0x140] sm:$0xff]
    %v4022 = vld [vmem:[#allocation3 + $0x148] sm:$0xff]
    %v4023 = vld [vmem:[#allocation3 + $0x150] sm:$0xff]
    %v4024 = vld [vmem:[#allocation3 + $0x158] sm:$0xff]
    %v4025 = vmax.f32 %v4021, %v4023
    %v4026 = vmax.f32 %v4022, %v4024
    %4029 = vrot.lane.b32.xlu0 %v4025, 120
    %v4030 = vpop.permute.xlu0 %4029
    %4031 = vrot.lane.b32.xlu0 %v4026, 120
    %v4032 = vpop.permute.xlu0 %4031
    %v4033 = vsel %vm2884, %v4030, %v4032
    %v4036 = vmax.f32 %v4025, %v4033
    %v4037 = vmax.f32 %v4026, %v4032
    %s4038 = scalar_lea.vmem [#allocation10], 1840
    %v4039 = vld [vmem:[%s4038] sm:$0xff]
    %v4040 = vld [vmem:[%s4038 + $0x8] sm:$0xff]
    %v4041 = vld [vmem:[%s4038 + $0x10] sm:$0xff]
    %v4042 = vld [vmem:[%s4038 + $0x18] sm:$0xff]
    %v4043 = vld [vmem:[%s4038 + $0x20] sm:$0xff]
    %v4044 = vld [vmem:[%s4038 + $0x28] sm:$0xff]
    %v4045 = vld [vmem:[%s4038 + $0x30] sm:$0xff]
    %v4046 = vld [vmem:[%s4038 + $0x38] sm:$0xff]
    %v4047 = vld [vmem:[%s4038 + $0x40] sm:$0xff]
    %v4048 = vld [vmem:[%s4038 + $0x48] sm:$0xff]
    %v4049 = vld [vmem:[%s4038 + $0x50] sm:$0xff]
    %v4050 = vld [vmem:[%s4038 + $0x58] sm:$0xff]
    %v4051 = vld [vmem:[%s4038 + $0x60] sm:$0xff]
    %v4052 = vld [vmem:[%s4038 + $0x68] sm:$0xff]
    %v4053 = vld [vmem:[%s4038 + $0x70] sm:$0xff]
    %v4054 = vld [vmem:[%s4038 + $0x78] sm:$0xff]
    %v4055 = vld [vmem:[%s4038 + $0x80] sm:$0xff]
    %v4056 = vld [vmem:[%s4038 + $0x88] sm:$0xff]
    %v4057 = vld [vmem:[%s4038 + $0x90] sm:$0xff]
    %v4058 = vld [vmem:[%s4038 + $0x98] sm:$0xff]
    %v4059 = vld [vmem:[%s4038 + $0xa0] sm:$0xff]
    %v4060 = vld [vmem:[%s4038 + $0xa8] sm:$0xff]
    %v4061 = vld [vmem:[%s4038 + $0xb0] sm:$0xff]
    %v4063 = vsel %vm2954, %v4037, 0
    %4065 = vmatprep.subr.mxu0 0.0
    %4066 = vmatpush1.msra.mxu0 %v4054
    %4067 = vmatprep.subr.mxu0 0.0
    %4068 = vmatpush1.msra.mxu0 %v4053
    %4069 = vmatprep.subr.mxu0 0.0
    %4070 = vmatpush1.msra.mxu0 %v4052
    %4071 = vmatprep.subr.mxu0 0.0
    %4072 = vmatpush1.msra.mxu0 %v4051
    %4073 = vmatprep.subr.mxu0 0.0
    %4074 = vmatpush1.msra.mxu0 %v4050
    %4075 = vmatprep.subr.mxu0 0.0
    %4076 = vmatpush1.msra.mxu0 %v4049
    %4077 = vmatprep.subr.mxu0 0.0
    %4078 = vmatpush1.msra.mxu0 %v4048
    %4079 = vmatprep.subr.mxu0 0.0
    %4080 = vmatpush1.msra.mxu0 %v4047
    %4081 = vmatprep.subr.mxu0 0.0
    %4082 = vmatpush1.msra.mxu0 %v4046
    %4083 = vmatprep.subr.mxu0 0.0
    %4084 = vmatpush1.msra.mxu0 %v4045
    %4085 = vmatprep.subr.mxu0 0.0
    %4086 = vmatpush1.msra.mxu0 %v4044
    %4087 = vmatprep.subr.mxu0 0.0
    %4088 = vmatpush1.msra.mxu0 %v4043
    %4089 = vmatprep.subr.mxu0 0.0
    %4090 = vmatpush1.msra.mxu0 %v4042
    %4091 = vmatprep.subr.mxu0 0.0
    %4092 = vmatpush1.msra.mxu0 %v4041
    %4093 = vmatprep.subr.mxu0 0.0
    %4094 = vmatpush1.msra.mxu0 %v4040
    %4095 = vmatprep.subr.mxu0 0.0
    %4096 = vmatpush1.msra.mxu0 %v4039
    %4097 = vmatprep.subr.mxu0 0.0
    %4098 = vmatpush2.msra.mxu0 0.0
    %4099 = vmatprep.subr.mxu0 0.0
    %4100 = vmatpush2.msra.mxu0 0.0
    %4101 = vmatprep.subr.mxu0 0.0
    %4102 = vmatpush2.msra.mxu0 0.0
    %4103 = vmatprep.subr.mxu0 0.0
    %4104 = vmatpush2.msra.mxu0 0.0
    %4105 = vmatprep.subr.mxu0 0.0
    %4106 = vmatpush2.msra.mxu0 0.0
    %4107 = vmatprep.subr.mxu0 0.0
    %4108 = vmatpush2.msra.mxu0 0.0
    %4109 = vmatprep.subr.mxu0 0.0
    %4110 = vmatpush2.msra.mxu0 0.0
    %4111 = vmatprep.subr.mxu0 0.0
    %4112 = vmatpush2.msra.mxu0 0.0
    %4113 = vmatprep.subr.mxu0 0.0
    %4114 = vmatpush2.msra.mxu0 0.0
    %4115 = vmatprep.subr.mxu0 0.0
    %4116 = vmatpush2.msra.mxu0 %v4061
    %4117 = vmatprep.subr.mxu0 0.0
    %4118 = vmatpush2.msra.mxu0 %v4060
    %4119 = vmatprep.subr.mxu0 0.0
    %4120 = vmatpush2.msra.mxu0 %v4059
    %4121 = vmatprep.subr.mxu0 0.0
    %4122 = vmatpush2.msra.mxu0 %v4058
    %4123 = vmatprep.subr.mxu0 0.0
    %4124 = vmatpush2.msra.mxu0 %v4057
    %4125 = vmatprep.subr.mxu0 0.0
    %4126 = vmatpush2.msra.mxu0 %v4056
    %4127 = vmatprep.subr.mxu0 0.0
    %4128 = vmatpush2.msra.mxu0 %v4055
    %4129 = vmatprep.mubr.f32.mxu0 %v4063
    %4130 = vmatmul.mubr.f32.gmra.mxu0 %v4036
    %v4131 = vpop.f32.mrf.mxu0
    %v4132 = vadd.f32 0.0, %v4131
    %v4133 = vpop.f32.mrf.mxu0
    %4134 = vdwg.mxu0
    %v4135 = vadd.f32 %v4020, %v4132
    %v4136 = vld [vmem:[#allocation3 + $0x160] sm:$0xff]
    %v4137 = vld [vmem:[#allocation3 + $0x168] sm:$0xff]
    %v4138 = vld [vmem:[#allocation3 + $0x170] sm:$0xff]
    %v4139 = vld [vmem:[#allocation3 + $0x178] sm:$0xff]
    %v4140 = vmax.f32 %v4136, %v4138
    %v4141 = vmax.f32 %v4137, %v4139
    %4144 = vrot.lane.b32.xlu0 %v4140, 120
    %v4145 = vpop.permute.xlu0 %4144
    %4146 = vrot.lane.b32.xlu0 %v4141, 120
    %v4147 = vpop.permute.xlu0 %4146
    %v4148 = vsel %vm2884, %v4145, %v4147
    %v4151 = vmax.f32 %v4140, %v4148
    %v4152 = vmax.f32 %v4141, %v4147
    %s4153 = scalar_lea.vmem [#allocation10], 2024
    %v4154 = vld [vmem:[%s4153] sm:$0xff]
    %v4155 = vld [vmem:[%s4153 + $0x8] sm:$0xff]
    %v4156 = vld [vmem:[%s4153 + $0x10] sm:$0xff]
    %v4157 = vld [vmem:[%s4153 + $0x18] sm:$0xff]
    %v4158 = vld [vmem:[%s4153 + $0x20] sm:$0xff]
    %v4159 = vld [vmem:[%s4153 + $0x28] sm:$0xff]
    %v4160 = vld [vmem:[%s4153 + $0x30] sm:$0xff]
    %v4161 = vld [vmem:[%s4153 + $0x38] sm:$0xff]
    %v4162 = vld [vmem:[%s4153 + $0x40] sm:$0xff]
    %v4163 = vld [vmem:[%s4153 + $0x48] sm:$0xff]
    %v4164 = vld [vmem:[%s4153 + $0x50] sm:$0xff]
    %v4165 = vld [vmem:[%s4153 + $0x58] sm:$0xff]
    %v4166 = vld [vmem:[%s4153 + $0x60] sm:$0xff]
    %v4167 = vld [vmem:[%s4153 + $0x68] sm:$0xff]
    %v4168 = vld [vmem:[%s4153 + $0x70] sm:$0xff]
    %v4169 = vld [vmem:[%s4153 + $0x78] sm:$0xff]
    %v4170 = vld [vmem:[%s4153 + $0x80] sm:$0xff]
    %v4171 = vld [vmem:[%s4153 + $0x88] sm:$0xff]
    %v4172 = vld [vmem:[%s4153 + $0x90] sm:$0xff]
    %v4173 = vld [vmem:[%s4153 + $0x98] sm:$0xff]
    %v4174 = vld [vmem:[%s4153 + $0xa0] sm:$0xff]
    %v4175 = vld [vmem:[%s4153 + $0xa8] sm:$0xff]
    %v4176 = vld [vmem:[%s4153 + $0xb0] sm:$0xff]
    %v4178 = vsel %vm2954, %v4152, 0
    %4180 = vmatprep.subr.mxu0 0.0
    %4181 = vmatpush1.msra.mxu0 %v4169
    %4182 = vmatprep.subr.mxu0 0.0
    %4183 = vmatpush1.msra.mxu0 %v4168
    %4184 = vmatprep.subr.mxu0 0.0
    %4185 = vmatpush1.msra.mxu0 %v4167
    %4186 = vmatprep.subr.mxu0 0.0
    %4187 = vmatpush1.msra.mxu0 %v4166
    %4188 = vmatprep.subr.mxu0 0.0
    %4189 = vmatpush1.msra.mxu0 %v4165
    %4190 = vmatprep.subr.mxu0 0.0
    %4191 = vmatpush1.msra.mxu0 %v4164
    %4192 = vmatprep.subr.mxu0 0.0
    %4193 = vmatpush1.msra.mxu0 %v4163
    %4194 = vmatprep.subr.mxu0 0.0
    %4195 = vmatpush1.msra.mxu0 %v4162
    %4196 = vmatprep.subr.mxu0 0.0
    %4197 = vmatpush1.msra.mxu0 %v4161
    %4198 = vmatprep.subr.mxu0 0.0
    %4199 = vmatpush1.msra.mxu0 %v4160
    %4200 = vmatprep.subr.mxu0 0.0
    %4201 = vmatpush1.msra.mxu0 %v4159
    %4202 = vmatprep.subr.mxu0 0.0
    %4203 = vmatpush1.msra.mxu0 %v4158
    %4204 = vmatprep.subr.mxu0 0.0
    %4205 = vmatpush1.msra.mxu0 %v4157
    %4206 = vmatprep.subr.mxu0 0.0
    %4207 = vmatpush1.msra.mxu0 %v4156
    %4208 = vmatprep.subr.mxu0 0.0
    %4209 = vmatpush1.msra.mxu0 %v4155
    %4210 = vmatprep.subr.mxu0 0.0
    %4211 = vmatpush1.msra.mxu0 %v4154
    %4212 = vmatprep.subr.mxu0 0.0
    %4213 = vmatpush2.msra.mxu0 0.0
    %4214 = vmatprep.subr.mxu0 0.0
    %4215 = vmatpush2.msra.mxu0 0.0
    %4216 = vmatprep.subr.mxu0 0.0
    %4217 = vmatpush2.msra.mxu0 0.0
    %4218 = vmatprep.subr.mxu0 0.0
    %4219 = vmatpush2.msra.mxu0 0.0
    %4220 = vmatprep.subr.mxu0 0.0
    %4221 = vmatpush2.msra.mxu0 0.0
    %4222 = vmatprep.subr.mxu0 0.0
    %4223 = vmatpush2.msra.mxu0 0.0
    %4224 = vmatprep.subr.mxu0 0.0
    %4225 = vmatpush2.msra.mxu0 0.0
    %4226 = vmatprep.subr.mxu0 0.0
    %4227 = vmatpush2.msra.mxu0 0.0
    %4228 = vmatprep.subr.mxu0 0.0
    %4229 = vmatpush2.msra.mxu0 0.0
    %4230 = vmatprep.subr.mxu0 0.0
    %4231 = vmatpush2.msra.mxu0 %v4176
    %4232 = vmatprep.subr.mxu0 0.0
    %4233 = vmatpush2.msra.mxu0 %v4175
    %4234 = vmatprep.subr.mxu0 0.0
    %4235 = vmatpush2.msra.mxu0 %v4174
    %4236 = vmatprep.subr.mxu0 0.0
    %4237 = vmatpush2.msra.mxu0 %v4173
    %4238 = vmatprep.subr.mxu0 0.0
    %4239 = vmatpush2.msra.mxu0 %v4172
    %4240 = vmatprep.subr.mxu0 0.0
    %4241 = vmatpush2.msra.mxu0 %v4171
    %4242 = vmatprep.subr.mxu0 0.0
    %4243 = vmatpush2.msra.mxu0 %v4170
    %4244 = vmatprep.mubr.f32.mxu0 %v4178
    %4245 = vmatmul.mubr.f32.gmra.mxu0 %v4151
    %v4246 = vpop.f32.mrf.mxu0
    %v4247 = vadd.f32 0.0, %v4246
    %v4248 = vpop.f32.mrf.mxu0
    %4249 = vdwg.mxu0
    %v4250 = vadd.f32 %v4135, %v4247
    %v4251 = vld [vmem:[#allocation12] sm:$0x1]
    %v4253 = vlaneseq
    %v4254 = vshrl.u32 %v4253, 7
    %v4255 = vsub.s32 0, %v4254
    %v4256 = vrot.slane %v4251, %v4255
    %v4258 = vadd.f32 %v4250, %v4256
    %v4259 = vmax.f32 %v4258, 0.0
    %v4260 = vld [vmem:[#allocation13] sm:$0xff]
    %v4261 = vld [vmem:[#allocation13 + $0x8] sm:$0xff]
    %v4262 = vld [vmem:[#allocation13 + $0x10] sm:$0xff]
    %v4263 = vld [vmem:[#allocation13 + $0x18] sm:$0xff]
    %v4264 = vld [vmem:[#allocation13 + $0x20] sm:$0xff]
    %v4265 = vld [vmem:[#allocation13 + $0x28] sm:$0xff]
    %v4266 = vld [vmem:[#allocation13 + $0x30] sm:$0xff]
    %v4267 = vld [vmem:[#allocation13 + $0x38] sm:$0xff]
    %v4268 = vld [vmem:[#allocation13 + $0x40] sm:$0xff]
    %v4269 = vld [vmem:[#allocation13 + $0x48] sm:$0xff]
    %v4270 = vld [vmem:[#allocation13 + $0x50] sm:$0xff]
    %v4271 = vld [vmem:[#allocation13 + $0x58] sm:$0xff]
    %v4272 = vld [vmem:[#allocation13 + $0x60] sm:$0xff]
    %v4273 = vld [vmem:[#allocation13 + $0x68] sm:$0xff]
    %v4274 = vld [vmem:[#allocation13 + $0x70] sm:$0xff]
    %v4275 = vld [vmem:[#allocation13 + $0x78] sm:$0xff]
    %v4276 = vld [vmem:[#allocation15] sm:$0x1]
    %v4278 = vlaneseq
    %v4279 = vshrl.u32 %v4278, 7
    %v4280 = vsub.s32 0, %v4279
    %v4281 = vrot.slane %v4276, %v4280
    %4283 = vmatprep.subr.mxu0 0.0
    %4284 = vmatpush1.msra.mxu0 %v4275
    %4285 = vmatprep.subr.mxu0 0.0
    %4286 = vmatpush1.msra.mxu0 %v4274
    %4287 = vmatprep.subr.mxu0 0.0
    %4288 = vmatpush1.msra.mxu0 %v4273
    %4289 = vmatprep.subr.mxu0 0.0
    %4290 = vmatpush1.msra.mxu0 %v4272
    %4291 = vmatprep.subr.mxu0 0.0
    %4292 = vmatpush1.msra.mxu0 %v4271
    %4293 = vmatprep.subr.mxu0 0.0
    %4294 = vmatpush1.msra.mxu0 %v4270
    %4295 = vmatprep.subr.mxu0 0.0
    %4296 = vmatpush1.msra.mxu0 %v4269
    %4297 = vmatprep.subr.mxu0 0.0
    %4298 = vmatpush1.msra.mxu0 %v4268
    %4299 = vmatprep.subr.mxu0 0.0
    %4300 = vmatpush1.msra.mxu0 %v4267
    %4301 = vmatprep.subr.mxu0 0.0
    %4302 = vmatpush1.msra.mxu0 %v4266
    %4303 = vmatprep.subr.mxu0 0.0
    %4304 = vmatpush1.msra.mxu0 %v4265
    %4305 = vmatprep.subr.mxu0 0.0
    %4306 = vmatpush1.msra.mxu0 %v4264
    %4307 = vmatprep.subr.mxu0 0.0
    %4308 = vmatpush1.msra.mxu0 %v4263
    %4309 = vmatprep.subr.mxu0 0.0
    %4310 = vmatpush1.msra.mxu0 %v4262
    %4311 = vmatprep.subr.mxu0 0.0
    %4312 = vmatpush1.msra.mxu0 %v4261
    %4313 = vmatprep.subr.mxu0 0.0
    %4314 = vmatpush1.msra.mxu0 %v4260
    %4315 = vmatprep.subr.mxu0 0.0
    %4316 = vmatpush2.msra.mxu0 0.0
    %4317 = vmatprep.subr.mxu0 0.0
    %4318 = vmatpush2.msra.mxu0 0.0
    %4319 = vmatprep.subr.mxu0 0.0
    %4320 = vmatpush2.msra.mxu0 0.0
    %4321 = vmatprep.subr.mxu0 0.0
    %4322 = vmatpush2.msra.mxu0 0.0
    %4323 = vmatprep.subr.mxu0 0.0
    %4324 = vmatpush2.msra.mxu0 0.0
    %4325 = vmatprep.subr.mxu0 0.0
    %4326 = vmatpush2.msra.mxu0 0.0
    %4327 = vmatprep.subr.mxu0 0.0
    %4328 = vmatpush2.msra.mxu0 0.0
    %4329 = vmatprep.subr.mxu0 0.0
    %4330 = vmatpush2.msra.mxu0 0.0
    %4331 = vmatprep.subr.mxu0 0.0
    %4332 = vmatpush2.msra.mxu0 0.0
    %4333 = vmatprep.subr.mxu0 0.0
    %4334 = vmatpush2.msra.mxu0 0.0
    %4335 = vmatprep.subr.mxu0 0.0
    %4336 = vmatpush2.msra.mxu0 0.0
    %4337 = vmatprep.subr.mxu0 0.0
    %4338 = vmatpush2.msra.mxu0 0.0
    %4339 = vmatprep.subr.mxu0 0.0
    %4340 = vmatpush2.msra.mxu0 0.0
    %4341 = vmatprep.subr.mxu0 0.0
    %4342 = vmatpush2.msra.mxu0 0.0
    %4343 = vmatprep.subr.mxu0 0.0
    %4344 = vmatpush2.msra.mxu0 0.0
    %4345 = vmatprep.subr.mxu0 0.0
    %4346 = vmatpush2.msra.mxu0 0.0
    %4347 = vmatprep.mubr.f32.mxu0 0.0
    %4348 = vmatmul.mubr.f32.gmra.mxu0 %v4259
    %v4349 = vpop.f32.mrf.mxu0
    %v4350 = vadd.f32 %v4281, %v4349
    %v4351 = vpop.f32.mrf.mxu0
    %4352 = vdwg.mxu0
    %4353 = vst [vmem:[#allocation16] sm:$0xff] %v4350
    // Predicated region
    $region66: #{tpu_custom_call.1} parent=1 // pred_check
      _
    $region67: #{tpu_custom_call.1} parent=1 // pred_check_branch
      %4355 = sbr.rel (0) target = $region69
    $region68: #{tpu_custom_call.1} parent=1 // pred_region
      %s4357 = ssub.s32 128, 128
      %4358 = vsyncadd [#allocation6], %s4357
      %s4360 = sshll.u32 [#allocation16], 4
      %s4361 = int_to_ptr.vmem [resolvable:$true] %s4360
      %4363 = dma.vmem_to_hbm [thread:$0]  %s4361, 128, %s9, [#allocation6]
    $region69: #{tpu_custom_call.1} parent=1 // pred_fallthru
      _
    // Predicated region
    $region70: #{tpu_custom_call.1} parent=1 // pred_check
      _
    $region71: #{tpu_custom_call.1} parent=1 // pred_check_branch
      %4365 = sbr.rel (0) target = $region73
    $region72: #{tpu_custom_call.1} parent=1 // pred_region
      %4366 = dma.done [#allocation6], 128
    $region73: #{tpu_custom_call.1} parent=1 // pred_fallthru
      _
    %4367 = vsyncpa [#allocation5], 1
    %4368 = vsyncpa [#allocation8], 1
    %4369 = vsyncpa [#allocation11], 1
    %4370 = vsyncpa [#allocation14], 1
    %4371 = vsyncpa [#allocation6], 1

</llo_original>
